<compile_context>
chip_gen: v7x
topology: tpu7x:2x2x1
jax: 0.10.0
libtpu: 0.0.40
codegen_flags: <defaults>
</compile_context>

<pallas_src>
import functools
import math

import jax
import jax.numpy as jnp
from jax.experimental import pallas as pl
from jax.experimental.pallas import tpu as pltpu

_LN_EPS = 1e-5
_INV_SQRT2 = 1.0 / math.sqrt(2.0)


# ----------------------------- in-kernel math -----------------------------

def _erf_approx(x):
    # Abramowitz & Stegun 7.1.26 (|err| < 1.5e-7); only exp/mul/add/where.
    a1, a2, a3, a4, a5 = 0.254829592, -0.284496736, 1.421413741, -1.453152027, 1.061405429
    p = 0.3275911
    ax = jnp.abs(x)
    t = 1.0 / (1.0 + p * ax)
    poly = ((((a5 * t + a4) * t + a3) * t + a2) * t + a1) * t
    e = 1.0 - poly * jnp.exp(-ax * ax)
    return jnp.where(x >= 0, e, -e)


def _gelu(x):
    # exact (erf-based) GELU == torch.nn.functional.gelu default.
    return 0.5 * x * (1.0 + _erf_approx(x * _INV_SQRT2))


def _ln_2d(x, gamma, beta):
    # LayerNorm over the whole (P, C) slab (PyTorch LayerNorm([patches, channels])).
    mu = jnp.mean(jnp.mean(x, axis=1, keepdims=True), axis=0, keepdims=True)
    xc = x - mu
    var = jnp.mean(jnp.mean(xc * xc, axis=1, keepdims=True), axis=0, keepdims=True)
    return xc * jax.lax.rsqrt(var + _LN_EPS) * gamma + beta


# ----------------------------- fused kernel --------------------------------

def _fused_mixer_kernel(xp_ref, wpe_ref, bpe_ref,
                        g1_ref, bt1_ref, w1_ref, b1_ref, w2_ref, b2_ref,
                        g2_ref, bt2_ref, w3_ref, b3_ref, w4_ref, b4_ref,
                        pool_ref, hw_ref, hb_ref, o_ref,
                        *, bt, patches, n_blocks):
    P = patches

    # -- patch embedding over the flattened (bt*P, K) M dimension -------------
    y = (jnp.dot(xp_ref[...], wpe_ref[...], preferred_element_type=jnp.float32)
         + bpe_ref[...])                                                    # (bt*P, C)

    # -- mixer blocks (weights resident; loops unrolled at trace time) --------
    for i in range(n_blocks):
        g1, bt1 = g1_ref[i], bt1_ref[i]
        w1, b1 = w1_ref[i], b1_ref[i]
        w2, b2 = w2_ref[i], b2_ref[i]
        g2, bt2 = g2_ref[i], bt2_ref[i]
        w3t, b3 = w3_ref[i], b3_ref[i]
        w4t, b4 = w4_ref[i], b4_ref[i]

        # Token mixing needs per-sample (P, C) slabs (LayerNorm stats and the
        # patch-axis matmuls are per sample).  Slices stay sublane-aligned
        # because P is a multiple of 8; the small loop is unrolled.
        res_rows, ln2_rows = [], []
        for b in range(bt):
            yb = y[b * P:(b + 1) * P, :]                                    # (P, C)
            yln = _ln_2d(yb, g1, bt1)
            # Linear over the patch axis expressed as W @ x (no transposes).
            h = _gelu(jnp.dot(w1, yln, preferred_element_type=jnp.float32) + b1)  # (d_s, C)
            yb = yb + jnp.dot(w2, h, preferred_element_type=jnp.float32) + b2     # (P, C)
            res_rows.append(yb)
            ln2_rows.append(_ln_2d(yb, g2, bt2))
        y = res_rows[0] if bt == 1 else jnp.concatenate(res_rows, axis=0)         # (bt*P, C)
        yln2 = ln2_rows[0] if bt == 1 else jnp.concatenate(ln2_rows, axis=0)

        # Channel mixing, batched over all bt*P rows at once.
        h2 = _gelu(jnp.dot(yln2, w3t, preferred_element_type=jnp.float32) + b3)   # (bt*P, d_c)
        y = y + jnp.dot(h2, w4t, preferred_element_type=jnp.float32) + b4         # (bt*P, C)

    # -- head: patch-mean via one pooling matmul + one (bt, C) @ (C, O) matmul --
    ym = jnp.dot(pool_ref[...], y, preferred_element_type=jnp.float32)            # (bt, C)
    o_ref[...] = (jnp.dot(ym, hw_ref[...], preferred_element_type=jnp.float32)
                  + hb_ref[...])                                                  # (bt, O)


# ----------------------------- pallas wrapper -------------------------------

def _const_spec(shape):
    n = len(shape)
    return pl.BlockSpec(shape, lambda t, _n=n: (0,) * _n)


def _fused_forward(xp2, pool, params, *, bt, patches, n_blocks, out_class):
    (wpe, bpe, g1s, bt1s, w1s, b1s, w2s, b2s, g2s, bt2s,
     w3s, b3s, w4s, b4s, hw, hb) = params
    M, K = xp2.shape
    B = M // patches
    n_tiles = B // bt

    consts = (wpe, bpe, g1s, bt1s, w1s, b1s, w2s, b2s, g2s, bt2s,
              w3s, b3s, w4s, b4s, pool, hw, hb)
    kernel = functools.partial(_fused_mixer_kernel, bt=bt, patches=patches,
                               n_blocks=n_blocks)
    in_specs = [pl.BlockSpec((bt * patches, K), lambda t: (t, 0))]
    in_specs += [_const_spec(a.shape) for a in consts]

    return pl.pallas_call(
        kernel,
        out_shape=jax.ShapeDtypeStruct((B, out_class), jnp.float32),
        grid=(n_tiles,),
        in_specs=in_specs,
        out_specs=pl.BlockSpec((bt, out_class), lambda t: (t, 0)),
        compiler_params=pltpu.CompilerParams(
            dimension_semantics=("parallel",)),
    )(xp2, *consts)


def _forward_impl(x, params, *, patch_size, patches, n_blocks, out_class):
    B, cin, H, W = x.shape
    p = patch_size
    s1, s2 = H // p, W // p
    # Patch extraction is pure reshape/transpose glue (fused by XLA under jit).
    xp2 = (x.reshape(B, cin, s1, p, s2, p)
            .transpose(0, 2, 4, 1, 3, 5)
            .reshape(B * s1 * s2, cin * p * p))                 # (B*P, K)
    # Batch tile: whole batch per grid step when small; 8-sample tiles when the
    # batch is large and divisible (keeps BlockSpec sublane alignment).
    bt = 8 if (B > 8 and B % 8 == 0) else B
    # Block-diagonal pooling matrix (1/P) for the batched patch-mean in the head.
    pool = jnp.kron(jnp.eye(bt, dtype=jnp.float32),
                    jnp.full((1, patches), 1.0 / patches, jnp.float32))
    return _fused_forward(xp2, pool, params, bt=bt, patches=patches,
                          n_blocks=n_blocks, out_class=out_class)


# ------------------------------- model ---------------------------------------

def _init_linear(key, fan_in, w_shape, b_shape):
    kw, kb = jax.random.split(key)
    bound = 1.0 / math.sqrt(fan_in)
    w = jax.random.uniform(kw, w_shape, jnp.float32, -bound, bound)
    b = jax.random.uniform(kb, b_shape, jnp.float32, -bound, bound)
    return w, b


class MlpMixerPallas:
    def __init__(self, image_size, patch_size, hidden_channels, d_s, d_c,
                 mixer_blocks, out_class, key):
        cin, h, w = image_size
        assert h % patch_size == 0 and w % patch_size == 0, "Wrong size of image and patch!"
        self.patch_size = patch_size
        self.hidden = hidden_channels
        self.patches = (h // patch_size) * (w // patch_size)
        self.n_blocks = mixer_blocks
        self.out_class = out_class
        P, C = self.patches, hidden_channels
        K = cin * patch_size * patch_size

        keys = jax.random.split(key, 2 + mixer_blocks)

        # Conv2d(kernel=stride=patch_size) == per-patch Linear.
        conv_w, conv_b = _init_linear(keys[0], K, (C, cin, patch_size, patch_size), (C,))

        g1s, bt1s, w1s, b1s, w2s, b2s = [], [], [], [], [], []
        g2s, bt2s, w3s, b3s, w4s, b4s = [], [], [], [], [], []
        for i in range(mixer_blocks):
            bkeys = jax.random.split(keys[1 + i], 4)
            w1, b1 = _init_linear(bkeys[0], P, (d_s, P), (d_s,))    # mlp1.fc1
            w2, b2 = _init_linear(bkeys[1], d_s, (P, d_s), (P,))    # mlp1.fc2
            w3, b3 = _init_linear(bkeys[2], C, (d_c, C), (d_c,))    # mlp2.fc1
            w4, b4 = _init_linear(bkeys[3], d_c, (C, d_c), (C,))    # mlp2.fc2
            g1s.append(jnp.ones((P, C), jnp.float32))
            bt1s.append(jnp.zeros((P, C), jnp.float32))
            g2s.append(jnp.ones((P, C), jnp.float32))
            bt2s.append(jnp.zeros((P, C), jnp.float32))
            w1s.append(w1); b1s.append(b1.reshape(d_s, 1))
            w2s.append(w2); b2s.append(b2.reshape(P, 1))
            w3s.append(w3.T); b3s.append(b3.reshape(1, d_c))
            w4s.append(w4.T); b4s.append(b4.reshape(1, C))

        head_w, head_b = _init_linear(keys[-1], C, (out_class, C), (out_class,))

        # All kernel-facing reshapes / transposes / stacking are hoisted here so
        # the jitted forward does no per-call parameter massaging.
        self.params = (
            conv_w.reshape(C, K).T,            # (K, C)
            conv_b.reshape(1, C),
            jnp.stack(g1s), jnp.stack(bt1s),
            jnp.stack(w1s), jnp.stack(b1s),
            jnp.stack(w2s), jnp.stack(b2s),
            jnp.stack(g2s), jnp.stack(bt2s),
            jnp.stack(w3s), jnp.stack(b3s),
            jnp.stack(w4s), jnp.stack(b4s),
            head_w.T,                          # (C, O)
            head_b.reshape(1, out_class),
        )

        self._jit_forward = jax.jit(functools.partial(
            _forward_impl, patch_size=patch_size, patches=P,
            n_blocks=mixer_blocks, out_class=out_class))

    def __call__(self, x):
        return self._jit_forward(x, self.params)


# ------------------------- pure-JAX reference --------------------------------

def _ref_gelu(x):
    return 0.5 * x * (1.0 + jax.lax.erf(x * _INV_SQRT2))


def ref_forward(model, x):
    (wpe, bpe, g1s, bt1s, w1s, b1s, w2s, b2s, g2s, bt2s,
     w3s, b3s, w4s, b4s, hw, hb) = model.params
    B, cin, H, W = x.shape
    p = model.patch_size
    s1, s2 = H // p, W // p
    xp = (x.reshape(B, cin, s1, p, s2, p)
           .transpose(0, 2, 4, 1, 3, 5)
           .reshape(B, s1 * s2, cin * p * p))
    y = xp @ wpe + bpe
    for i in range(model.n_blocks):
        skip1 = y
        mu = jnp.mean(y, axis=(1, 2), keepdims=True)
        var = jnp.mean((y - mu) ** 2, axis=(1, 2), keepdims=True)
        yln = (y - mu) / jnp.sqrt(var + _LN_EPS) * g1s[i] + bt1s[i]
        t = jnp.swapaxes(yln, 1, 2)                        # (B, C, P)
        h = _ref_gelu(t @ w1s[i].T + b1s[i][:, 0])         # (B, C, d_s)
        t = h @ w2s[i].T + b2s[i][:, 0]                    # (B, C, P)
        y = skip1 + jnp.swapaxes(t, 1, 2)
        skip2 = y
        mu = jnp.mean(y, axis=(1, 2), keepdims=True)
        var = jnp.mean((y - mu) ** 2, axis=(1, 2), keepdims=True)
        yln = (y - mu) / jnp.sqrt(var + _LN_EPS) * g2s[i] + bt2s[i]
        h = _ref_gelu(yln @ w3s[i] + b3s[i])               # (B, P, d_c)
        y = skip2 + h @ w4s[i] + b4s[i]
    ym = jnp.mean(y, axis=1)
    return ym @ hw + hb


# ------------------------------- main -----------------------------------------

if __name__ == "__main__":
    key = jax.random.PRNGKey(0)
    kparam, kx = jax.random.split(key)

    image_size = (3, 16, 16)   # (Cin, H, W)
    model = MlpMixerPallas(image_size=image_size, patch_size=4,
                           hidden_channels=32, d_s=32, d_c=64,
                           mixer_blocks=2, out_class=10, key=kparam)

    x = jax.random.normal(kx, (2,) + image_size, jnp.float32)   # NCHW, like PyTorch

    out = jax.block_until_ready(model(x))
    assert out.shape == (2, 10), out.shape

    ref = ref_forward(model, x)
    max_err = float(jnp.max(jnp.abs(out - ref)))
    assert max_err < 1e-3, f"mismatch vs reference: {max_err}"

    print("KERNEL_OK")
</pallas_src>

<mosaic_0001>
module attributes {stable_mosaic.version = 11 : i64} {
  func.func @_fused_mixer_kernel(%arg0: i32, %arg1: memref<32x48xf32, #tpu.memory_space<vmem>>, %arg2: memref<48x32xf32, #tpu.memory_space<vmem>>, %arg3: memref<1x32xf32, #tpu.memory_space<vmem>>, %arg4: memref<2x16x32xf32, #tpu.memory_space<vmem>>, %arg5: memref<2x16x32xf32, #tpu.memory_space<vmem>>, %arg6: memref<2x32x16xf32, #tpu.memory_space<vmem>>, %arg7: memref<2x32x1xf32, #tpu.memory_space<vmem>>, %arg8: memref<2x16x32xf32, #tpu.memory_space<vmem>>, %arg9: memref<2x16x1xf32, #tpu.memory_space<vmem>>, %arg10: memref<2x16x32xf32, #tpu.memory_space<vmem>>, %arg11: memref<2x16x32xf32, #tpu.memory_space<vmem>>, %arg12: memref<2x32x64xf32, #tpu.memory_space<vmem>>, %arg13: memref<2x1x64xf32, #tpu.memory_space<vmem>>, %arg14: memref<2x64x32xf32, #tpu.memory_space<vmem>>, %arg15: memref<2x1x32xf32, #tpu.memory_space<vmem>>, %arg16: memref<2x32xf32, #tpu.memory_space<vmem>>, %arg17: memref<32x10xf32, #tpu.memory_space<vmem>>, %arg18: memref<1x10xf32, #tpu.memory_space<vmem>>, %arg19: memref<2x10xf32, #tpu.memory_space<vmem>>) attributes {dimension_semantics = [#tpu.dimension_semantics<parallel>], iteration_bounds = array<i64: 1>, scalar_prefetch = 0 : i64, scratch_operands = 0 : i64, tpu.core_type = #tpu.core_type<tc>, window_params = [{transform_indices = @transform_0, window_bounds = array<i64: 32, 48>}, {pipeline_mode = #tpu.pipeline_mode<synchronous>, transform_indices = @transform_1, window_bounds = array<i64: 48, 32>}, {pipeline_mode = #tpu.pipeline_mode<synchronous>, transform_indices = @transform_2, window_bounds = array<i64: 1, 32>}, {pipeline_mode = #tpu.pipeline_mode<synchronous>, transform_indices = @transform_3, window_bounds = array<i64: 2, 16, 32>}, {pipeline_mode = #tpu.pipeline_mode<synchronous>, transform_indices = @transform_4, window_bounds = array<i64: 2, 16, 32>}, {pipeline_mode = #tpu.pipeline_mode<synchronous>, transform_indices = @transform_5, window_bounds = array<i64: 2, 32, 16>}, {pipeline_mode = #tpu.pipeline_mode<synchronous>, transform_indices = @transform_6, window_bounds = array<i64: 2, 32, 1>}, {pipeline_mode = #tpu.pipeline_mode<synchronous>, transform_indices = @transform_7, window_bounds = array<i64: 2, 16, 32>}, {pipeline_mode = #tpu.pipeline_mode<synchronous>, transform_indices = @transform_8, window_bounds = array<i64: 2, 16, 1>}, {pipeline_mode = #tpu.pipeline_mode<synchronous>, transform_indices = @transform_9, window_bounds = array<i64: 2, 16, 32>}, {pipeline_mode = #tpu.pipeline_mode<synchronous>, transform_indices = @transform_10, window_bounds = array<i64: 2, 16, 32>}, {pipeline_mode = #tpu.pipeline_mode<synchronous>, transform_indices = @transform_11, window_bounds = array<i64: 2, 32, 64>}, {pipeline_mode = #tpu.pipeline_mode<synchronous>, transform_indices = @transform_12, window_bounds = array<i64: 2, 1, 64>}, {pipeline_mode = #tpu.pipeline_mode<synchronous>, transform_indices = @transform_13, window_bounds = array<i64: 2, 64, 32>}, {pipeline_mode = #tpu.pipeline_mode<synchronous>, transform_indices = @transform_14, window_bounds = array<i64: 2, 1, 32>}, {pipeline_mode = #tpu.pipeline_mode<synchronous>, transform_indices = @transform_15, window_bounds = array<i64: 2, 32>}, {pipeline_mode = #tpu.pipeline_mode<synchronous>, transform_indices = @transform_16, window_bounds = array<i64: 32, 10>}, {pipeline_mode = #tpu.pipeline_mode<synchronous>, transform_indices = @transform_17, window_bounds = array<i64: 1, 10>}, {transform_indices = @transform_18, window_bounds = array<i64: 2, 10>}]} {
    %c0 = arith.constant 0 : index
    %c0_0 = arith.constant 0 : index
    %0 = vector.load %arg1[%c0, %c0_0] : memref<32x48xf32, #tpu.memory_space<vmem>>, vector<32x48xf32>
    %c0_1 = arith.constant 0 : index
    %c0_2 = arith.constant 0 : index
    %1 = vector.load %arg2[%c0_1, %c0_2] : memref<48x32xf32, #tpu.memory_space<vmem>>, vector<48x32xf32>
    %cst = arith.constant dense<0.000000e+00> : vector<32x32xf32>
    %2 = tpu.matmul %0, %1, %cst {dimension_numbers = #tpu.dot_dimension_numbers<[1], [0], [0], [1], [0, 0, 1, 1], [], []>} : vector<32x48xf32>, vector<48x32xf32>, vector<32x32xf32> -> vector<32x32xf32>
    %c0_3 = arith.constant 0 : index
    %c0_4 = arith.constant 0 : index
    %3 = vector.load %arg3[%c0_3, %c0_4] : memref<1x32xf32, #tpu.memory_space<vmem>>, vector<1x32xf32>
    %4 = vector.broadcast %3 : vector<1x32xf32> to vector<32x32xf32>
    %5 = arith.addf %2, %4 : vector<32x32xf32>
    %c0_5 = arith.constant 0 : index
    %c0_6 = arith.constant 0 : index
    %c0_7 = arith.constant 0 : index
    %6 = vector.load %arg4[%c0_5, %c0_6, %c0_7] : memref<2x16x32xf32, #tpu.memory_space<vmem>>, vector<1x16x32xf32>
    %7 = vector.shape_cast %6 : vector<1x16x32xf32> to vector<16x32xf32>
    %c0_8 = arith.constant 0 : index
    %c0_9 = arith.constant 0 : index
    %c0_10 = arith.constant 0 : index
    %8 = vector.load %arg5[%c0_8, %c0_9, %c0_10] : memref<2x16x32xf32, #tpu.memory_space<vmem>>, vector<1x16x32xf32>
    %9 = vector.shape_cast %8 : vector<1x16x32xf32> to vector<16x32xf32>
    %c0_11 = arith.constant 0 : index
    %c0_12 = arith.constant 0 : index
    %c0_13 = arith.constant 0 : index
    %10 = vector.load %arg6[%c0_11, %c0_12, %c0_13] : memref<2x32x16xf32, #tpu.memory_space<vmem>>, vector<1x32x16xf32>
    %11 = vector.shape_cast %10 : vector<1x32x16xf32> to vector<32x16xf32>
    %c0_14 = arith.constant 0 : index
    %c0_15 = arith.constant 0 : index
    %c0_16 = arith.constant 0 : index
    %12 = vector.load %arg7[%c0_14, %c0_15, %c0_16] : memref<2x32x1xf32, #tpu.memory_space<vmem>>, vector<1x32x1xf32>
    %13 = vector.shape_cast %12 : vector<1x32x1xf32> to vector<32x1xf32>
    %c0_17 = arith.constant 0 : index
    %c0_18 = arith.constant 0 : index
    %c0_19 = arith.constant 0 : index
    %14 = vector.load %arg8[%c0_17, %c0_18, %c0_19] : memref<2x16x32xf32, #tpu.memory_space<vmem>>, vector<1x16x32xf32>
    %15 = vector.shape_cast %14 : vector<1x16x32xf32> to vector<16x32xf32>
    %c0_20 = arith.constant 0 : index
    %c0_21 = arith.constant 0 : index
    %c0_22 = arith.constant 0 : index
    %16 = vector.load %arg9[%c0_20, %c0_21, %c0_22] : memref<2x16x1xf32, #tpu.memory_space<vmem>>, vector<1x16x1xf32>
    %17 = vector.shape_cast %16 : vector<1x16x1xf32> to vector<16x1xf32>
    %c0_23 = arith.constant 0 : index
    %c0_24 = arith.constant 0 : index
    %c0_25 = arith.constant 0 : index
    %18 = vector.load %arg10[%c0_23, %c0_24, %c0_25] : memref<2x16x32xf32, #tpu.memory_space<vmem>>, vector<1x16x32xf32>
    %19 = vector.shape_cast %18 : vector<1x16x32xf32> to vector<16x32xf32>
    %c0_26 = arith.constant 0 : index
    %c0_27 = arith.constant 0 : index
    %c0_28 = arith.constant 0 : index
    %20 = vector.load %arg11[%c0_26, %c0_27, %c0_28] : memref<2x16x32xf32, #tpu.memory_space<vmem>>, vector<1x16x32xf32>
    %21 = vector.shape_cast %20 : vector<1x16x32xf32> to vector<16x32xf32>
    %c0_29 = arith.constant 0 : index
    %c0_30 = arith.constant 0 : index
    %c0_31 = arith.constant 0 : index
    %22 = vector.load %arg12[%c0_29, %c0_30, %c0_31] : memref<2x32x64xf32, #tpu.memory_space<vmem>>, vector<1x32x64xf32>
    %23 = vector.shape_cast %22 : vector<1x32x64xf32> to vector<32x64xf32>
    %c0_32 = arith.constant 0 : index
    %c0_33 = arith.constant 0 : index
    %c0_34 = arith.constant 0 : index
    %24 = vector.load %arg13[%c0_32, %c0_33, %c0_34] : memref<2x1x64xf32, #tpu.memory_space<vmem>>, vector<1x1x64xf32>
    %25 = vector.shape_cast %24 : vector<1x1x64xf32> to vector<1x64xf32>
    %c0_35 = arith.constant 0 : index
    %c0_36 = arith.constant 0 : index
    %c0_37 = arith.constant 0 : index
    %26 = vector.load %arg14[%c0_35, %c0_36, %c0_37] : memref<2x64x32xf32, #tpu.memory_space<vmem>>, vector<1x64x32xf32>
    %27 = vector.shape_cast %26 : vector<1x64x32xf32> to vector<64x32xf32>
    %c0_38 = arith.constant 0 : index
    %c0_39 = arith.constant 0 : index
    %c0_40 = arith.constant 0 : index
    %28 = vector.load %arg15[%c0_38, %c0_39, %c0_40] : memref<2x1x32xf32, #tpu.memory_space<vmem>>, vector<1x1x32xf32>
    %29 = vector.shape_cast %28 : vector<1x1x32xf32> to vector<1x32xf32>
    %30 = vector.extract_strided_slice %5 {offsets = [0, 0], sizes = [16, 32], strides = [1, 1]} : vector<32x32xf32> to vector<16x32xf32>
    %cst_41 = arith.constant dense<0.000000e+00> : vector<16xf32>
    %31 = vector.multi_reduction <add>, %30, %cst_41 [1] : vector<16x32xf32> to vector<16xf32>
    %32 = vector.shape_cast %31 : vector<16xf32> to vector<16x1xf32>
    %cst_42 = arith.constant 3.200000e+01 : f32
    %33 = vector.broadcast %cst_42 : f32 to vector<16x1xf32>
    %34 = arith.divf %32, %33 : vector<16x1xf32>
    %cst_43 = arith.constant dense<0.000000e+00> : vector<1xf32>
    %35 = vector.multi_reduction <add>, %34, %cst_43 [0] : vector<16x1xf32> to vector<1xf32>
    %36 = vector.shape_cast %35 : vector<1xf32> to vector<1x1xf32>
    %cst_44 = arith.constant 1.600000e+01 : f32
    %37 = vector.broadcast %cst_44 : f32 to vector<1x1xf32>
    %38 = arith.divf %36, %37 : vector<1x1xf32>
    %39 = vector.broadcast %38 : vector<1x1xf32> to vector<16x32xf32>
    %40 = arith.subf %30, %39 : vector<16x32xf32>
    %41 = arith.mulf %40, %40 : vector<16x32xf32>
    %cst_45 = arith.constant dense<0.000000e+00> : vector<16xf32>
    %42 = vector.multi_reduction <add>, %41, %cst_45 [1] : vector<16x32xf32> to vector<16xf32>
    %43 = vector.shape_cast %42 : vector<16xf32> to vector<16x1xf32>
    %cst_46 = arith.constant 3.200000e+01 : f32
    %44 = vector.broadcast %cst_46 : f32 to vector<16x1xf32>
    %45 = arith.divf %43, %44 : vector<16x1xf32>
    %cst_47 = arith.constant dense<0.000000e+00> : vector<1xf32>
    %46 = vector.multi_reduction <add>, %45, %cst_47 [0] : vector<16x1xf32> to vector<1xf32>
    %47 = vector.shape_cast %46 : vector<1xf32> to vector<1x1xf32>
    %cst_48 = arith.constant 1.600000e+01 : f32
    %48 = vector.broadcast %cst_48 : f32 to vector<1x1xf32>
    %49 = arith.divf %47, %48 : vector<1x1xf32>
    %cst_49 = arith.constant 9.99999974E-6 : f32
    %50 = vector.broadcast %cst_49 : f32 to vector<1x1xf32>
    %51 = arith.addf %49, %50 : vector<1x1xf32>
    %52 = math.rsqrt %51 : vector<1x1xf32>
    %53 = vector.broadcast %52 : vector<1x1xf32> to vector<16x32xf32>
    %54 = arith.mulf %40, %53 : vector<16x32xf32>
    %55 = arith.mulf %54, %7 : vector<16x32xf32>
    %56 = arith.addf %55, %9 : vector<16x32xf32>
    %cst_50 = arith.constant dense<0.000000e+00> : vector<32x32xf32>
    %57 = tpu.matmul %11, %56, %cst_50 {dimension_numbers = #tpu.dot_dimension_numbers<[1], [0], [0], [1], [0, 0, 1, 1], [], []>} : vector<32x16xf32>, vector<16x32xf32>, vector<32x32xf32> -> vector<32x32xf32>
    %58 = vector.broadcast %13 : vector<32x1xf32> to vector<32x32xf32>
    %59 = arith.addf %57, %58 : vector<32x32xf32>
    %cst_51 = arith.constant 5.000000e-01 : f32
    %60 = vector.broadcast %cst_51 : f32 to vector<32x32xf32>
    %61 = arith.mulf %60, %59 : vector<32x32xf32>
    %cst_52 = arith.constant 0.707106769 : f32
    %62 = vector.broadcast %cst_52 : f32 to vector<32x32xf32>
    %63 = arith.mulf %59, %62 : vector<32x32xf32>
    %64 = math.absf %63 : vector<32x32xf32>
    %cst_53 = arith.constant 0.327591091 : f32
    %65 = vector.broadcast %cst_53 : f32 to vector<32x32xf32>
    %66 = arith.mulf %65, %64 : vector<32x32xf32>
    %cst_54 = arith.constant 1.000000e+00 : f32
    %67 = vector.broadcast %cst_54 : f32 to vector<32x32xf32>
    %68 = arith.addf %67, %66 : vector<32x32xf32>
    %cst_55 = arith.constant 1.000000e+00 : f32
    %69 = vector.broadcast %cst_55 : f32 to vector<32x32xf32>
    %70 = arith.divf %69, %68 : vector<32x32xf32>
    %cst_56 = arith.constant 1.06140542 : f32
    %71 = vector.broadcast %cst_56 : f32 to vector<32x32xf32>
    %72 = arith.mulf %71, %70 : vector<32x32xf32>
    %cst_57 = arith.constant -1.45315206 : f32
    %73 = vector.broadcast %cst_57 : f32 to vector<32x32xf32>
    %74 = arith.addf %72, %73 : vector<32x32xf32>
    %75 = arith.mulf %74, %70 : vector<32x32xf32>
    %cst_58 = arith.constant 1.42141378 : f32
    %76 = vector.broadcast %cst_58 : f32 to vector<32x32xf32>
    %77 = arith.addf %75, %76 : vector<32x32xf32>
    %78 = arith.mulf %77, %70 : vector<32x32xf32>
    %cst_59 = arith.constant -0.284496725 : f32
    %79 = vector.broadcast %cst_59 : f32 to vector<32x32xf32>
    %80 = arith.addf %78, %79 : vector<32x32xf32>
    %81 = arith.mulf %80, %70 : vector<32x32xf32>
    %cst_60 = arith.constant 0.254829586 : f32
    %82 = vector.broadcast %cst_60 : f32 to vector<32x32xf32>
    %83 = arith.addf %81, %82 : vector<32x32xf32>
    %84 = arith.mulf %83, %70 : vector<32x32xf32>
    %cst_61 = arith.constant 0.000000e+00 : f32
    %85 = vector.broadcast %cst_61 : f32 to vector<32x32xf32>
    %86 = arith.subf %85, %64 : vector<32x32xf32>
    %87 = arith.mulf %86, %64 : vector<32x32xf32>
    %88 = math.exp %87 : vector<32x32xf32>
    %89 = arith.mulf %84, %88 : vector<32x32xf32>
    %cst_62 = arith.constant 1.000000e+00 : f32
    %90 = vector.broadcast %cst_62 : f32 to vector<32x32xf32>
    %91 = arith.subf %90, %89 : vector<32x32xf32>
    %cst_63 = arith.constant 0.000000e+00 : f32
    %92 = vector.broadcast %cst_63 : f32 to vector<32x32xf32>
    %93 = arith.cmpf oge, %63, %92 : vector<32x32xf32>
    %cst_64 = arith.constant 0.000000e+00 : f32
    %94 = vector.broadcast %cst_64 : f32 to vector<32x32xf32>
    %95 = arith.subf %94, %91 : vector<32x32xf32>
    %96 = arith.select %93, %91, %95 : vector<32x32xi1>, vector<32x32xf32>
    %cst_65 = arith.constant 1.000000e+00 : f32
    %97 = vector.broadcast %cst_65 : f32 to vector<32x32xf32>
    %98 = arith.addf %97, %96 : vector<32x32xf32>
    %99 = arith.mulf %61, %98 : vector<32x32xf32>
    %cst_66 = arith.constant dense<0.000000e+00> : vector<16x32xf32>
    %100 = tpu.matmul %15, %99, %cst_66 {dimension_numbers = #tpu.dot_dimension_numbers<[1], [0], [0], [1], [0, 0, 1, 1], [], []>} : vector<16x32xf32>, vector<32x32xf32>, vector<16x32xf32> -> vector<16x32xf32>
    %101 = arith.addf %30, %100 : vector<16x32xf32>
    %102 = vector.broadcast %17 : vector<16x1xf32> to vector<16x32xf32>
    %103 = arith.addf %101, %102 : vector<16x32xf32>
    %cst_67 = arith.constant dense<0.000000e+00> : vector<16xf32>
    %104 = vector.multi_reduction <add>, %103, %cst_67 [1] : vector<16x32xf32> to vector<16xf32>
    %105 = vector.shape_cast %104 : vector<16xf32> to vector<16x1xf32>
    %cst_68 = arith.constant 3.200000e+01 : f32
    %106 = vector.broadcast %cst_68 : f32 to vector<16x1xf32>
    %107 = arith.divf %105, %106 : vector<16x1xf32>
    %cst_69 = arith.constant dense<0.000000e+00> : vector<1xf32>
    %108 = vector.multi_reduction <add>, %107, %cst_69 [0] : vector<16x1xf32> to vector<1xf32>
    %109 = vector.shape_cast %108 : vector<1xf32> to vector<1x1xf32>
    %cst_70 = arith.constant 1.600000e+01 : f32
    %110 = vector.broadcast %cst_70 : f32 to vector<1x1xf32>
    %111 = arith.divf %109, %110 : vector<1x1xf32>
    %112 = vector.broadcast %111 : vector<1x1xf32> to vector<16x32xf32>
    %113 = arith.subf %103, %112 : vector<16x32xf32>
    %114 = arith.mulf %113, %113 : vector<16x32xf32>
    %cst_71 = arith.constant dense<0.000000e+00> : vector<16xf32>
    %115 = vector.multi_reduction <add>, %114, %cst_71 [1] : vector<16x32xf32> to vector<16xf32>
    %116 = vector.shape_cast %115 : vector<16xf32> to vector<16x1xf32>
    %cst_72 = arith.constant 3.200000e+01 : f32
    %117 = vector.broadcast %cst_72 : f32 to vector<16x1xf32>
    %118 = arith.divf %116, %117 : vector<16x1xf32>
    %cst_73 = arith.constant dense<0.000000e+00> : vector<1xf32>
    %119 = vector.multi_reduction <add>, %118, %cst_73 [0] : vector<16x1xf32> to vector<1xf32>
    %120 = vector.shape_cast %119 : vector<1xf32> to vector<1x1xf32>
    %cst_74 = arith.constant 1.600000e+01 : f32
    %121 = vector.broadcast %cst_74 : f32 to vector<1x1xf32>
    %122 = arith.divf %120, %121 : vector<1x1xf32>
    %cst_75 = arith.constant 9.99999974E-6 : f32
    %123 = vector.broadcast %cst_75 : f32 to vector<1x1xf32>
    %124 = arith.addf %122, %123 : vector<1x1xf32>
    %125 = math.rsqrt %124 : vector<1x1xf32>
    %126 = vector.broadcast %125 : vector<1x1xf32> to vector<16x32xf32>
    %127 = arith.mulf %113, %126 : vector<16x32xf32>
    %128 = arith.mulf %127, %19 : vector<16x32xf32>
    %129 = arith.addf %128, %21 : vector<16x32xf32>
    %130 = vector.extract_strided_slice %5 {offsets = [16, 0], sizes = [16, 32], strides = [1, 1]} : vector<32x32xf32> to vector<16x32xf32>
    %cst_76 = arith.constant dense<0.000000e+00> : vector<16xf32>
    %131 = vector.multi_reduction <add>, %130, %cst_76 [1] : vector<16x32xf32> to vector<16xf32>
    %132 = vector.shape_cast %131 : vector<16xf32> to vector<16x1xf32>
    %cst_77 = arith.constant 3.200000e+01 : f32
    %133 = vector.broadcast %cst_77 : f32 to vector<16x1xf32>
    %134 = arith.divf %132, %133 : vector<16x1xf32>
    %cst_78 = arith.constant dense<0.000000e+00> : vector<1xf32>
    %135 = vector.multi_reduction <add>, %134, %cst_78 [0] : vector<16x1xf32> to vector<1xf32>
    %136 = vector.shape_cast %135 : vector<1xf32> to vector<1x1xf32>
    %cst_79 = arith.constant 1.600000e+01 : f32
    %137 = vector.broadcast %cst_79 : f32 to vector<1x1xf32>
    %138 = arith.divf %136, %137 : vector<1x1xf32>
    %139 = vector.broadcast %138 : vector<1x1xf32> to vector<16x32xf32>
    %140 = arith.subf %130, %139 : vector<16x32xf32>
    %141 = arith.mulf %140, %140 : vector<16x32xf32>
    %cst_80 = arith.constant dense<0.000000e+00> : vector<16xf32>
    %142 = vector.multi_reduction <add>, %141, %cst_80 [1] : vector<16x32xf32> to vector<16xf32>
    %143 = vector.shape_cast %142 : vector<16xf32> to vector<16x1xf32>
    %cst_81 = arith.constant 3.200000e+01 : f32
    %144 = vector.broadcast %cst_81 : f32 to vector<16x1xf32>
    %145 = arith.divf %143, %144 : vector<16x1xf32>
    %cst_82 = arith.constant dense<0.000000e+00> : vector<1xf32>
    %146 = vector.multi_reduction <add>, %145, %cst_82 [0] : vector<16x1xf32> to vector<1xf32>
    %147 = vector.shape_cast %146 : vector<1xf32> to vector<1x1xf32>
    %cst_83 = arith.constant 1.600000e+01 : f32
    %148 = vector.broadcast %cst_83 : f32 to vector<1x1xf32>
    %149 = arith.divf %147, %148 : vector<1x1xf32>
    %cst_84 = arith.constant 9.99999974E-6 : f32
    %150 = vector.broadcast %cst_84 : f32 to vector<1x1xf32>
    %151 = arith.addf %149, %150 : vector<1x1xf32>
    %152 = math.rsqrt %151 : vector<1x1xf32>
    %153 = vector.broadcast %152 : vector<1x1xf32> to vector<16x32xf32>
    %154 = arith.mulf %140, %153 : vector<16x32xf32>
    %155 = arith.mulf %154, %7 : vector<16x32xf32>
    %156 = arith.addf %155, %9 : vector<16x32xf32>
    %cst_85 = arith.constant dense<0.000000e+00> : vector<32x32xf32>
    %157 = tpu.matmul %11, %156, %cst_85 {dimension_numbers = #tpu.dot_dimension_numbers<[1], [0], [0], [1], [0, 0, 1, 1], [], []>} : vector<32x16xf32>, vector<16x32xf32>, vector<32x32xf32> -> vector<32x32xf32>
    %158 = vector.broadcast %13 : vector<32x1xf32> to vector<32x32xf32>
    %159 = arith.addf %157, %158 : vector<32x32xf32>
    %cst_86 = arith.constant 5.000000e-01 : f32
    %160 = vector.broadcast %cst_86 : f32 to vector<32x32xf32>
    %161 = arith.mulf %160, %159 : vector<32x32xf32>
    %cst_87 = arith.constant 0.707106769 : f32
    %162 = vector.broadcast %cst_87 : f32 to vector<32x32xf32>
    %163 = arith.mulf %159, %162 : vector<32x32xf32>
    %164 = math.absf %163 : vector<32x32xf32>
    %cst_88 = arith.constant 0.327591091 : f32
    %165 = vector.broadcast %cst_88 : f32 to vector<32x32xf32>
    %166 = arith.mulf %165, %164 : vector<32x32xf32>
    %cst_89 = arith.constant 1.000000e+00 : f32
    %167 = vector.broadcast %cst_89 : f32 to vector<32x32xf32>
    %168 = arith.addf %167, %166 : vector<32x32xf32>
    %cst_90 = arith.constant 1.000000e+00 : f32
    %169 = vector.broadcast %cst_90 : f32 to vector<32x32xf32>
    %170 = arith.divf %169, %168 : vector<32x32xf32>
    %cst_91 = arith.constant 1.06140542 : f32
    %171 = vector.broadcast %cst_91 : f32 to vector<32x32xf32>
    %172 = arith.mulf %171, %170 : vector<32x32xf32>
    %cst_92 = arith.constant -1.45315206 : f32
    %173 = vector.broadcast %cst_92 : f32 to vector<32x32xf32>
    %174 = arith.addf %172, %173 : vector<32x32xf32>
    %175 = arith.mulf %174, %170 : vector<32x32xf32>
    %cst_93 = arith.constant 1.42141378 : f32
    %176 = vector.broadcast %cst_93 : f32 to vector<32x32xf32>
    %177 = arith.addf %175, %176 : vector<32x32xf32>
    %178 = arith.mulf %177, %170 : vector<32x32xf32>
    %cst_94 = arith.constant -0.284496725 : f32
    %179 = vector.broadcast %cst_94 : f32 to vector<32x32xf32>
    %180 = arith.addf %178, %179 : vector<32x32xf32>
    %181 = arith.mulf %180, %170 : vector<32x32xf32>
    %cst_95 = arith.constant 0.254829586 : f32
    %182 = vector.broadcast %cst_95 : f32 to vector<32x32xf32>
    %183 = arith.addf %181, %182 : vector<32x32xf32>
    %184 = arith.mulf %183, %170 : vector<32x32xf32>
    %cst_96 = arith.constant 0.000000e+00 : f32
    %185 = vector.broadcast %cst_96 : f32 to vector<32x32xf32>
    %186 = arith.subf %185, %164 : vector<32x32xf32>
    %187 = arith.mulf %186, %164 : vector<32x32xf32>
    %188 = math.exp %187 : vector<32x32xf32>
    %189 = arith.mulf %184, %188 : vector<32x32xf32>
    %cst_97 = arith.constant 1.000000e+00 : f32
    %190 = vector.broadcast %cst_97 : f32 to vector<32x32xf32>
    %191 = arith.subf %190, %189 : vector<32x32xf32>
    %cst_98 = arith.constant 0.000000e+00 : f32
    %192 = vector.broadcast %cst_98 : f32 to vector<32x32xf32>
    %193 = arith.cmpf oge, %163, %192 : vector<32x32xf32>
    %cst_99 = arith.constant 0.000000e+00 : f32
    %194 = vector.broadcast %cst_99 : f32 to vector<32x32xf32>
    %195 = arith.subf %194, %191 : vector<32x32xf32>
    %196 = arith.select %193, %191, %195 : vector<32x32xi1>, vector<32x32xf32>
    %cst_100 = arith.constant 1.000000e+00 : f32
    %197 = vector.broadcast %cst_100 : f32 to vector<32x32xf32>
    %198 = arith.addf %197, %196 : vector<32x32xf32>
    %199 = arith.mulf %161, %198 : vector<32x32xf32>
    %cst_101 = arith.constant dense<0.000000e+00> : vector<16x32xf32>
    %200 = tpu.matmul %15, %199, %cst_101 {dimension_numbers = #tpu.dot_dimension_numbers<[1], [0], [0], [1], [0, 0, 1, 1], [], []>} : vector<16x32xf32>, vector<32x32xf32>, vector<16x32xf32> -> vector<16x32xf32>
    %201 = arith.addf %130, %200 : vector<16x32xf32>
    %202 = vector.broadcast %17 : vector<16x1xf32> to vector<16x32xf32>
    %203 = arith.addf %201, %202 : vector<16x32xf32>
    %cst_102 = arith.constant dense<0.000000e+00> : vector<16xf32>
    %204 = vector.multi_reduction <add>, %203, %cst_102 [1] : vector<16x32xf32> to vector<16xf32>
    %205 = vector.shape_cast %204 : vector<16xf32> to vector<16x1xf32>
    %cst_103 = arith.constant 3.200000e+01 : f32
    %206 = vector.broadcast %cst_103 : f32 to vector<16x1xf32>
    %207 = arith.divf %205, %206 : vector<16x1xf32>
    %cst_104 = arith.constant dense<0.000000e+00> : vector<1xf32>
    %208 = vector.multi_reduction <add>, %207, %cst_104 [0] : vector<16x1xf32> to vector<1xf32>
    %209 = vector.shape_cast %208 : vector<1xf32> to vector<1x1xf32>
    %cst_105 = arith.constant 1.600000e+01 : f32
    %210 = vector.broadcast %cst_105 : f32 to vector<1x1xf32>
    %211 = arith.divf %209, %210 : vector<1x1xf32>
    %212 = vector.broadcast %211 : vector<1x1xf32> to vector<16x32xf32>
    %213 = arith.subf %203, %212 : vector<16x32xf32>
    %214 = arith.mulf %213, %213 : vector<16x32xf32>
    %cst_106 = arith.constant dense<0.000000e+00> : vector<16xf32>
    %215 = vector.multi_reduction <add>, %214, %cst_106 [1] : vector<16x32xf32> to vector<16xf32>
    %216 = vector.shape_cast %215 : vector<16xf32> to vector<16x1xf32>
    %cst_107 = arith.constant 3.200000e+01 : f32
    %217 = vector.broadcast %cst_107 : f32 to vector<16x1xf32>
    %218 = arith.divf %216, %217 : vector<16x1xf32>
    %cst_108 = arith.constant dense<0.000000e+00> : vector<1xf32>
    %219 = vector.multi_reduction <add>, %218, %cst_108 [0] : vector<16x1xf32> to vector<1xf32>
    %220 = vector.shape_cast %219 : vector<1xf32> to vector<1x1xf32>
    %cst_109 = arith.constant 1.600000e+01 : f32
    %221 = vector.broadcast %cst_109 : f32 to vector<1x1xf32>
    %222 = arith.divf %220, %221 : vector<1x1xf32>
    %cst_110 = arith.constant 9.99999974E-6 : f32
    %223 = vector.broadcast %cst_110 : f32 to vector<1x1xf32>
    %224 = arith.addf %222, %223 : vector<1x1xf32>
    %225 = math.rsqrt %224 : vector<1x1xf32>
    %226 = vector.broadcast %225 : vector<1x1xf32> to vector<16x32xf32>
    %227 = arith.mulf %213, %226 : vector<16x32xf32>
    %228 = arith.mulf %227, %19 : vector<16x32xf32>
    %229 = arith.addf %228, %21 : vector<16x32xf32>
    %230 = tpu.concatenate %103, %203 in 0 : vector<16x32xf32>, vector<16x32xf32> -> vector<32x32xf32>
    %231 = tpu.concatenate %129, %229 in 0 : vector<16x32xf32>, vector<16x32xf32> -> vector<32x32xf32>
    %cst_111 = arith.constant dense<0.000000e+00> : vector<32x64xf32>
    %232 = tpu.matmul %231, %23, %cst_111 {dimension_numbers = #tpu.dot_dimension_numbers<[1], [0], [0], [1], [0, 0, 1, 1], [], []>} : vector<32x32xf32>, vector<32x64xf32>, vector<32x64xf32> -> vector<32x64xf32>
    %233 = vector.broadcast %25 : vector<1x64xf32> to vector<32x64xf32>
    %234 = arith.addf %232, %233 : vector<32x64xf32>
    %cst_112 = arith.constant 5.000000e-01 : f32
    %235 = vector.broadcast %cst_112 : f32 to vector<32x64xf32>
    %236 = arith.mulf %235, %234 : vector<32x64xf32>
    %cst_113 = arith.constant 0.707106769 : f32
    %237 = vector.broadcast %cst_113 : f32 to vector<32x64xf32>
    %238 = arith.mulf %234, %237 : vector<32x64xf32>
    %239 = math.absf %238 : vector<32x64xf32>
    %cst_114 = arith.constant 0.327591091 : f32
    %240 = vector.broadcast %cst_114 : f32 to vector<32x64xf32>
    %241 = arith.mulf %240, %239 : vector<32x64xf32>
    %cst_115 = arith.constant 1.000000e+00 : f32
    %242 = vector.broadcast %cst_115 : f32 to vector<32x64xf32>
    %243 = arith.addf %242, %241 : vector<32x64xf32>
    %cst_116 = arith.constant 1.000000e+00 : f32
    %244 = vector.broadcast %cst_116 : f32 to vector<32x64xf32>
    %245 = arith.divf %244, %243 : vector<32x64xf32>
    %cst_117 = arith.constant 1.06140542 : f32
    %246 = vector.broadcast %cst_117 : f32 to vector<32x64xf32>
    %247 = arith.mulf %246, %245 : vector<32x64xf32>
    %cst_118 = arith.constant -1.45315206 : f32
    %248 = vector.broadcast %cst_118 : f32 to vector<32x64xf32>
    %249 = arith.addf %247, %248 : vector<32x64xf32>
    %250 = arith.mulf %249, %245 : vector<32x64xf32>
    %cst_119 = arith.constant 1.42141378 : f32
    %251 = vector.broadcast %cst_119 : f32 to vector<32x64xf32>
    %252 = arith.addf %250, %251 : vector<32x64xf32>
    %253 = arith.mulf %252, %245 : vector<32x64xf32>
    %cst_120 = arith.constant -0.284496725 : f32
    %254 = vector.broadcast %cst_120 : f32 to vector<32x64xf32>
    %255 = arith.addf %253, %254 : vector<32x64xf32>
    %256 = arith.mulf %255, %245 : vector<32x64xf32>
    %cst_121 = arith.constant 0.254829586 : f32
    %257 = vector.broadcast %cst_121 : f32 to vector<32x64xf32>
    %258 = arith.addf %256, %257 : vector<32x64xf32>
    %259 = arith.mulf %258, %245 : vector<32x64xf32>
    %cst_122 = arith.constant 0.000000e+00 : f32
    %260 = vector.broadcast %cst_122 : f32 to vector<32x64xf32>
    %261 = arith.subf %260, %239 : vector<32x64xf32>
    %262 = arith.mulf %261, %239 : vector<32x64xf32>
    %263 = math.exp %262 : vector<32x64xf32>
    %264 = arith.mulf %259, %263 : vector<32x64xf32>
    %cst_123 = arith.constant 1.000000e+00 : f32
    %265 = vector.broadcast %cst_123 : f32 to vector<32x64xf32>
    %266 = arith.subf %265, %264 : vector<32x64xf32>
    %cst_124 = arith.constant 0.000000e+00 : f32
    %267 = vector.broadcast %cst_124 : f32 to vector<32x64xf32>
    %268 = arith.cmpf oge, %238, %267 : vector<32x64xf32>
    %cst_125 = arith.constant 0.000000e+00 : f32
    %269 = vector.broadcast %cst_125 : f32 to vector<32x64xf32>
    %270 = arith.subf %269, %266 : vector<32x64xf32>
    %271 = arith.select %268, %266, %270 : vector<32x64xi1>, vector<32x64xf32>
    %cst_126 = arith.constant 1.000000e+00 : f32
    %272 = vector.broadcast %cst_126 : f32 to vector<32x64xf32>
    %273 = arith.addf %272, %271 : vector<32x64xf32>
    %274 = arith.mulf %236, %273 : vector<32x64xf32>
    %cst_127 = arith.constant dense<0.000000e+00> : vector<32x32xf32>
    %275 = tpu.matmul %274, %27, %cst_127 {dimension_numbers = #tpu.dot_dimension_numbers<[1], [0], [0], [1], [0, 0, 1, 1], [], []>} : vector<32x64xf32>, vector<64x32xf32>, vector<32x32xf32> -> vector<32x32xf32>
    %276 = arith.addf %230, %275 : vector<32x32xf32>
    %277 = vector.broadcast %29 : vector<1x32xf32> to vector<32x32xf32>
    %278 = arith.addf %276, %277 : vector<32x32xf32>
    %c1 = arith.constant 1 : index
    %c0_128 = arith.constant 0 : index
    %c0_129 = arith.constant 0 : index
    %279 = vector.load %arg4[%c1, %c0_128, %c0_129] : memref<2x16x32xf32, #tpu.memory_space<vmem>>, vector<1x16x32xf32>
    %280 = vector.shape_cast %279 : vector<1x16x32xf32> to vector<16x32xf32>
    %c1_130 = arith.constant 1 : index
    %c0_131 = arith.constant 0 : index
    %c0_132 = arith.constant 0 : index
    %281 = vector.load %arg5[%c1_130, %c0_131, %c0_132] : memref<2x16x32xf32, #tpu.memory_space<vmem>>, vector<1x16x32xf32>
    %282 = vector.shape_cast %281 : vector<1x16x32xf32> to vector<16x32xf32>
    %c1_133 = arith.constant 1 : index
    %c0_134 = arith.constant 0 : index
    %c0_135 = arith.constant 0 : index
    %283 = vector.load %arg6[%c1_133, %c0_134, %c0_135] : memref<2x32x16xf32, #tpu.memory_space<vmem>>, vector<1x32x16xf32>
    %284 = vector.shape_cast %283 : vector<1x32x16xf32> to vector<32x16xf32>
    %c1_136 = arith.constant 1 : index
    %c0_137 = arith.constant 0 : index
    %c0_138 = arith.constant 0 : index
    %285 = vector.load %arg7[%c1_136, %c0_137, %c0_138] : memref<2x32x1xf32, #tpu.memory_space<vmem>>, vector<1x32x1xf32>
    %286 = vector.shape_cast %285 : vector<1x32x1xf32> to vector<32x1xf32>
    %c1_139 = arith.constant 1 : index
    %c0_140 = arith.constant 0 : index
    %c0_141 = arith.constant 0 : index
    %287 = vector.load %arg8[%c1_139, %c0_140, %c0_141] : memref<2x16x32xf32, #tpu.memory_space<vmem>>, vector<1x16x32xf32>
    %288 = vector.shape_cast %287 : vector<1x16x32xf32> to vector<16x32xf32>
    %c1_142 = arith.constant 1 : index
    %c0_143 = arith.constant 0 : index
    %c0_144 = arith.constant 0 : index
    %289 = vector.load %arg9[%c1_142, %c0_143, %c0_144] : memref<2x16x1xf32, #tpu.memory_space<vmem>>, vector<1x16x1xf32>
    %290 = vector.shape_cast %289 : vector<1x16x1xf32> to vector<16x1xf32>
    %c1_145 = arith.constant 1 : index
    %c0_146 = arith.constant 0 : index
    %c0_147 = arith.constant 0 : index
    %291 = vector.load %arg10[%c1_145, %c0_146, %c0_147] : memref<2x16x32xf32, #tpu.memory_space<vmem>>, vector<1x16x32xf32>
    %292 = vector.shape_cast %291 : vector<1x16x32xf32> to vector<16x32xf32>
    %c1_148 = arith.constant 1 : index
    %c0_149 = arith.constant 0 : index
    %c0_150 = arith.constant 0 : index
    %293 = vector.load %arg11[%c1_148, %c0_149, %c0_150] : memref<2x16x32xf32, #tpu.memory_space<vmem>>, vector<1x16x32xf32>
    %294 = vector.shape_cast %293 : vector<1x16x32xf32> to vector<16x32xf32>
    %c1_151 = arith.constant 1 : index
    %c0_152 = arith.constant 0 : index
    %c0_153 = arith.constant 0 : index
    %295 = vector.load %arg12[%c1_151, %c0_152, %c0_153] : memref<2x32x64xf32, #tpu.memory_space<vmem>>, vector<1x32x64xf32>
    %296 = vector.shape_cast %295 : vector<1x32x64xf32> to vector<32x64xf32>
    %c1_154 = arith.constant 1 : index
    %c0_155 = arith.constant 0 : index
    %c0_156 = arith.constant 0 : index
    %297 = vector.load %arg13[%c1_154, %c0_155, %c0_156] : memref<2x1x64xf32, #tpu.memory_space<vmem>>, vector<1x1x64xf32>
    %298 = vector.shape_cast %297 : vector<1x1x64xf32> to vector<1x64xf32>
    %c1_157 = arith.constant 1 : index
    %c0_158 = arith.constant 0 : index
    %c0_159 = arith.constant 0 : index
    %299 = vector.load %arg14[%c1_157, %c0_158, %c0_159] : memref<2x64x32xf32, #tpu.memory_space<vmem>>, vector<1x64x32xf32>
    %300 = vector.shape_cast %299 : vector<1x64x32xf32> to vector<64x32xf32>
    %c1_160 = arith.constant 1 : index
    %c0_161 = arith.constant 0 : index
    %c0_162 = arith.constant 0 : index
    %301 = vector.load %arg15[%c1_160, %c0_161, %c0_162] : memref<2x1x32xf32, #tpu.memory_space<vmem>>, vector<1x1x32xf32>
    %302 = vector.shape_cast %301 : vector<1x1x32xf32> to vector<1x32xf32>
    %303 = vector.extract_strided_slice %278 {offsets = [0, 0], sizes = [16, 32], strides = [1, 1]} : vector<32x32xf32> to vector<16x32xf32>
    %cst_163 = arith.constant dense<0.000000e+00> : vector<16xf32>
    %304 = vector.multi_reduction <add>, %303, %cst_163 [1] : vector<16x32xf32> to vector<16xf32>
    %305 = vector.shape_cast %304 : vector<16xf32> to vector<16x1xf32>
    %cst_164 = arith.constant 3.200000e+01 : f32
    %306 = vector.broadcast %cst_164 : f32 to vector<16x1xf32>
    %307 = arith.divf %305, %306 : vector<16x1xf32>
    %cst_165 = arith.constant dense<0.000000e+00> : vector<1xf32>
    %308 = vector.multi_reduction <add>, %307, %cst_165 [0] : vector<16x1xf32> to vector<1xf32>
    %309 = vector.shape_cast %308 : vector<1xf32> to vector<1x1xf32>
    %cst_166 = arith.constant 1.600000e+01 : f32
    %310 = vector.broadcast %cst_166 : f32 to vector<1x1xf32>
    %311 = arith.divf %309, %310 : vector<1x1xf32>
    %312 = vector.broadcast %311 : vector<1x1xf32> to vector<16x32xf32>
    %313 = arith.subf %303, %312 : vector<16x32xf32>
    %314 = arith.mulf %313, %313 : vector<16x32xf32>
    %cst_167 = arith.constant dense<0.000000e+00> : vector<16xf32>
    %315 = vector.multi_reduction <add>, %314, %cst_167 [1] : vector<16x32xf32> to vector<16xf32>
    %316 = vector.shape_cast %315 : vector<16xf32> to vector<16x1xf32>
    %cst_168 = arith.constant 3.200000e+01 : f32
    %317 = vector.broadcast %cst_168 : f32 to vector<16x1xf32>
    %318 = arith.divf %316, %317 : vector<16x1xf32>
    %cst_169 = arith.constant dense<0.000000e+00> : vector<1xf32>
    %319 = vector.multi_reduction <add>, %318, %cst_169 [0] : vector<16x1xf32> to vector<1xf32>
    %320 = vector.shape_cast %319 : vector<1xf32> to vector<1x1xf32>
    %cst_170 = arith.constant 1.600000e+01 : f32
    %321 = vector.broadcast %cst_170 : f32 to vector<1x1xf32>
    %322 = arith.divf %320, %321 : vector<1x1xf32>
    %cst_171 = arith.constant 9.99999974E-6 : f32
    %323 = vector.broadcast %cst_171 : f32 to vector<1x1xf32>
    %324 = arith.addf %322, %323 : vector<1x1xf32>
    %325 = math.rsqrt %324 : vector<1x1xf32>
    %326 = vector.broadcast %325 : vector<1x1xf32> to vector<16x32xf32>
    %327 = arith.mulf %313, %326 : vector<16x32xf32>
    %328 = arith.mulf %327, %280 : vector<16x32xf32>
    %329 = arith.addf %328, %282 : vector<16x32xf32>
    %cst_172 = arith.constant dense<0.000000e+00> : vector<32x32xf32>
    %330 = tpu.matmul %284, %329, %cst_172 {dimension_numbers = #tpu.dot_dimension_numbers<[1], [0], [0], [1], [0, 0, 1, 1], [], []>} : vector<32x16xf32>, vector<16x32xf32>, vector<32x32xf32> -> vector<32x32xf32>
    %331 = vector.broadcast %286 : vector<32x1xf32> to vector<32x32xf32>
    %332 = arith.addf %330, %331 : vector<32x32xf32>
    %cst_173 = arith.constant 5.000000e-01 : f32
    %333 = vector.broadcast %cst_173 : f32 to vector<32x32xf32>
    %334 = arith.mulf %333, %332 : vector<32x32xf32>
    %cst_174 = arith.constant 0.707106769 : f32
    %335 = vector.broadcast %cst_174 : f32 to vector<32x32xf32>
    %336 = arith.mulf %332, %335 : vector<32x32xf32>
    %337 = math.absf %336 : vector<32x32xf32>
    %cst_175 = arith.constant 0.327591091 : f32
    %338 = vector.broadcast %cst_175 : f32 to vector<32x32xf32>
    %339 = arith.mulf %338, %337 : vector<32x32xf32>
    %cst_176 = arith.constant 1.000000e+00 : f32
    %340 = vector.broadcast %cst_176 : f32 to vector<32x32xf32>
    %341 = arith.addf %340, %339 : vector<32x32xf32>
    %cst_177 = arith.constant 1.000000e+00 : f32
    %342 = vector.broadcast %cst_177 : f32 to vector<32x32xf32>
    %343 = arith.divf %342, %341 : vector<32x32xf32>
    %cst_178 = arith.constant 1.06140542 : f32
    %344 = vector.broadcast %cst_178 : f32 to vector<32x32xf32>
    %345 = arith.mulf %344, %343 : vector<32x32xf32>
    %cst_179 = arith.constant -1.45315206 : f32
    %346 = vector.broadcast %cst_179 : f32 to vector<32x32xf32>
    %347 = arith.addf %345, %346 : vector<32x32xf32>
    %348 = arith.mulf %347, %343 : vector<32x32xf32>
    %cst_180 = arith.constant 1.42141378 : f32
    %349 = vector.broadcast %cst_180 : f32 to vector<32x32xf32>
    %350 = arith.addf %348, %349 : vector<32x32xf32>
    %351 = arith.mulf %350, %343 : vector<32x32xf32>
    %cst_181 = arith.constant -0.284496725 : f32
    %352 = vector.broadcast %cst_181 : f32 to vector<32x32xf32>
    %353 = arith.addf %351, %352 : vector<32x32xf32>
    %354 = arith.mulf %353, %343 : vector<32x32xf32>
    %cst_182 = arith.constant 0.254829586 : f32
    %355 = vector.broadcast %cst_182 : f32 to vector<32x32xf32>
    %356 = arith.addf %354, %355 : vector<32x32xf32>
    %357 = arith.mulf %356, %343 : vector<32x32xf32>
    %cst_183 = arith.constant 0.000000e+00 : f32
    %358 = vector.broadcast %cst_183 : f32 to vector<32x32xf32>
    %359 = arith.subf %358, %337 : vector<32x32xf32>
    %360 = arith.mulf %359, %337 : vector<32x32xf32>
    %361 = math.exp %360 : vector<32x32xf32>
    %362 = arith.mulf %357, %361 : vector<32x32xf32>
    %cst_184 = arith.constant 1.000000e+00 : f32
    %363 = vector.broadcast %cst_184 : f32 to vector<32x32xf32>
    %364 = arith.subf %363, %362 : vector<32x32xf32>
    %cst_185 = arith.constant 0.000000e+00 : f32
    %365 = vector.broadcast %cst_185 : f32 to vector<32x32xf32>
    %366 = arith.cmpf oge, %336, %365 : vector<32x32xf32>
    %cst_186 = arith.constant 0.000000e+00 : f32
    %367 = vector.broadcast %cst_186 : f32 to vector<32x32xf32>
    %368 = arith.subf %367, %364 : vector<32x32xf32>
    %369 = arith.select %366, %364, %368 : vector<32x32xi1>, vector<32x32xf32>
    %cst_187 = arith.constant 1.000000e+00 : f32
    %370 = vector.broadcast %cst_187 : f32 to vector<32x32xf32>
    %371 = arith.addf %370, %369 : vector<32x32xf32>
    %372 = arith.mulf %334, %371 : vector<32x32xf32>
    %cst_188 = arith.constant dense<0.000000e+00> : vector<16x32xf32>
    %373 = tpu.matmul %288, %372, %cst_188 {dimension_numbers = #tpu.dot_dimension_numbers<[1], [0], [0], [1], [0, 0, 1, 1], [], []>} : vector<16x32xf32>, vector<32x32xf32>, vector<16x32xf32> -> vector<16x32xf32>
    %374 = arith.addf %303, %373 : vector<16x32xf32>
    %375 = vector.broadcast %290 : vector<16x1xf32> to vector<16x32xf32>
    %376 = arith.addf %374, %375 : vector<16x32xf32>
    %cst_189 = arith.constant dense<0.000000e+00> : vector<16xf32>
    %377 = vector.multi_reduction <add>, %376, %cst_189 [1] : vector<16x32xf32> to vector<16xf32>
    %378 = vector.shape_cast %377 : vector<16xf32> to vector<16x1xf32>
    %cst_190 = arith.constant 3.200000e+01 : f32
    %379 = vector.broadcast %cst_190 : f32 to vector<16x1xf32>
    %380 = arith.divf %378, %379 : vector<16x1xf32>
    %cst_191 = arith.constant dense<0.000000e+00> : vector<1xf32>
    %381 = vector.multi_reduction <add>, %380, %cst_191 [0] : vector<16x1xf32> to vector<1xf32>
    %382 = vector.shape_cast %381 : vector<1xf32> to vector<1x1xf32>
    %cst_192 = arith.constant 1.600000e+01 : f32
    %383 = vector.broadcast %cst_192 : f32 to vector<1x1xf32>
    %384 = arith.divf %382, %383 : vector<1x1xf32>
    %385 = vector.broadcast %384 : vector<1x1xf32> to vector<16x32xf32>
    %386 = arith.subf %376, %385 : vector<16x32xf32>
    %387 = arith.mulf %386, %386 : vector<16x32xf32>
    %cst_193 = arith.constant dense<0.000000e+00> : vector<16xf32>
    %388 = vector.multi_reduction <add>, %387, %cst_193 [1] : vector<16x32xf32> to vector<16xf32>
    %389 = vector.shape_cast %388 : vector<16xf32> to vector<16x1xf32>
    %cst_194 = arith.constant 3.200000e+01 : f32
    %390 = vector.broadcast %cst_194 : f32 to vector<16x1xf32>
    %391 = arith.divf %389, %390 : vector<16x1xf32>
    %cst_195 = arith.constant dense<0.000000e+00> : vector<1xf32>
    %392 = vector.multi_reduction <add>, %391, %cst_195 [0] : vector<16x1xf32> to vector<1xf32>
    %393 = vector.shape_cast %392 : vector<1xf32> to vector<1x1xf32>
    %cst_196 = arith.constant 1.600000e+01 : f32
    %394 = vector.broadcast %cst_196 : f32 to vector<1x1xf32>
    %395 = arith.divf %393, %394 : vector<1x1xf32>
    %cst_197 = arith.constant 9.99999974E-6 : f32
    %396 = vector.broadcast %cst_197 : f32 to vector<1x1xf32>
    %397 = arith.addf %395, %396 : vector<1x1xf32>
    %398 = math.rsqrt %397 : vector<1x1xf32>
    %399 = vector.broadcast %398 : vector<1x1xf32> to vector<16x32xf32>
    %400 = arith.mulf %386, %399 : vector<16x32xf32>
    %401 = arith.mulf %400, %292 : vector<16x32xf32>
    %402 = arith.addf %401, %294 : vector<16x32xf32>
    %403 = vector.extract_strided_slice %278 {offsets = [16, 0], sizes = [16, 32], strides = [1, 1]} : vector<32x32xf32> to vector<16x32xf32>
    %cst_198 = arith.constant dense<0.000000e+00> : vector<16xf32>
    %404 = vector.multi_reduction <add>, %403, %cst_198 [1] : vector<16x32xf32> to vector<16xf32>
    %405 = vector.shape_cast %404 : vector<16xf32> to vector<16x1xf32>
    %cst_199 = arith.constant 3.200000e+01 : f32
    %406 = vector.broadcast %cst_199 : f32 to vector<16x1xf32>
    %407 = arith.divf %405, %406 : vector<16x1xf32>
    %cst_200 = arith.constant dense<0.000000e+00> : vector<1xf32>
    %408 = vector.multi_reduction <add>, %407, %cst_200 [0] : vector<16x1xf32> to vector<1xf32>
    %409 = vector.shape_cast %408 : vector<1xf32> to vector<1x1xf32>
    %cst_201 = arith.constant 1.600000e+01 : f32
    %410 = vector.broadcast %cst_201 : f32 to vector<1x1xf32>
    %411 = arith.divf %409, %410 : vector<1x1xf32>
    %412 = vector.broadcast %411 : vector<1x1xf32> to vector<16x32xf32>
    %413 = arith.subf %403, %412 : vector<16x32xf32>
    %414 = arith.mulf %413, %413 : vector<16x32xf32>
    %cst_202 = arith.constant dense<0.000000e+00> : vector<16xf32>
    %415 = vector.multi_reduction <add>, %414, %cst_202 [1] : vector<16x32xf32> to vector<16xf32>
    %416 = vector.shape_cast %415 : vector<16xf32> to vector<16x1xf32>
    %cst_203 = arith.constant 3.200000e+01 : f32
    %417 = vector.broadcast %cst_203 : f32 to vector<16x1xf32>
    %418 = arith.divf %416, %417 : vector<16x1xf32>
    %cst_204 = arith.constant dense<0.000000e+00> : vector<1xf32>
    %419 = vector.multi_reduction <add>, %418, %cst_204 [0] : vector<16x1xf32> to vector<1xf32>
    %420 = vector.shape_cast %419 : vector<1xf32> to vector<1x1xf32>
    %cst_205 = arith.constant 1.600000e+01 : f32
    %421 = vector.broadcast %cst_205 : f32 to vector<1x1xf32>
    %422 = arith.divf %420, %421 : vector<1x1xf32>
    %cst_206 = arith.constant 9.99999974E-6 : f32
    %423 = vector.broadcast %cst_206 : f32 to vector<1x1xf32>
    %424 = arith.addf %422, %423 : vector<1x1xf32>
    %425 = math.rsqrt %424 : vector<1x1xf32>
    %426 = vector.broadcast %425 : vector<1x1xf32> to vector<16x32xf32>
    %427 = arith.mulf %413, %426 : vector<16x32xf32>
    %428 = arith.mulf %427, %280 : vector<16x32xf32>
    %429 = arith.addf %428, %282 : vector<16x32xf32>
    %cst_207 = arith.constant dense<0.000000e+00> : vector<32x32xf32>
    %430 = tpu.matmul %284, %429, %cst_207 {dimension_numbers = #tpu.dot_dimension_numbers<[1], [0], [0], [1], [0, 0, 1, 1], [], []>} : vector<32x16xf32>, vector<16x32xf32>, vector<32x32xf32> -> vector<32x32xf32>
    %431 = vector.broadcast %286 : vector<32x1xf32> to vector<32x32xf32>
    %432 = arith.addf %430, %431 : vector<32x32xf32>
    %cst_208 = arith.constant 5.000000e-01 : f32
    %433 = vector.broadcast %cst_208 : f32 to vector<32x32xf32>
    %434 = arith.mulf %433, %432 : vector<32x32xf32>
    %cst_209 = arith.constant 0.707106769 : f32
    %435 = vector.broadcast %cst_209 : f32 to vector<32x32xf32>
    %436 = arith.mulf %432, %435 : vector<32x32xf32>
    %437 = math.absf %436 : vector<32x32xf32>
    %cst_210 = arith.constant 0.327591091 : f32
    %438 = vector.broadcast %cst_210 : f32 to vector<32x32xf32>
    %439 = arith.mulf %438, %437 : vector<32x32xf32>
    %cst_211 = arith.constant 1.000000e+00 : f32
    %440 = vector.broadcast %cst_211 : f32 to vector<32x32xf32>
    %441 = arith.addf %440, %439 : vector<32x32xf32>
    %cst_212 = arith.constant 1.000000e+00 : f32
    %442 = vector.broadcast %cst_212 : f32 to vector<32x32xf32>
    %443 = arith.divf %442, %441 : vector<32x32xf32>
    %cst_213 = arith.constant 1.06140542 : f32
    %444 = vector.broadcast %cst_213 : f32 to vector<32x32xf32>
    %445 = arith.mulf %444, %443 : vector<32x32xf32>
    %cst_214 = arith.constant -1.45315206 : f32
    %446 = vector.broadcast %cst_214 : f32 to vector<32x32xf32>
    %447 = arith.addf %445, %446 : vector<32x32xf32>
    %448 = arith.mulf %447, %443 : vector<32x32xf32>
    %cst_215 = arith.constant 1.42141378 : f32
    %449 = vector.broadcast %cst_215 : f32 to vector<32x32xf32>
    %450 = arith.addf %448, %449 : vector<32x32xf32>
    %451 = arith.mulf %450, %443 : vector<32x32xf32>
    %cst_216 = arith.constant -0.284496725 : f32
    %452 = vector.broadcast %cst_216 : f32 to vector<32x32xf32>
    %453 = arith.addf %451, %452 : vector<32x32xf32>
    %454 = arith.mulf %453, %443 : vector<32x32xf32>
    %cst_217 = arith.constant 0.254829586 : f32
    %455 = vector.broadcast %cst_217 : f32 to vector<32x32xf32>
    %456 = arith.addf %454, %455 : vector<32x32xf32>
    %457 = arith.mulf %456, %443 : vector<32x32xf32>
    %cst_218 = arith.constant 0.000000e+00 : f32
    %458 = vector.broadcast %cst_218 : f32 to vector<32x32xf32>
    %459 = arith.subf %458, %437 : vector<32x32xf32>
    %460 = arith.mulf %459, %437 : vector<32x32xf32>
    %461 = math.exp %460 : vector<32x32xf32>
    %462 = arith.mulf %457, %461 : vector<32x32xf32>
    %cst_219 = arith.constant 1.000000e+00 : f32
    %463 = vector.broadcast %cst_219 : f32 to vector<32x32xf32>
    %464 = arith.subf %463, %462 : vector<32x32xf32>
    %cst_220 = arith.constant 0.000000e+00 : f32
    %465 = vector.broadcast %cst_220 : f32 to vector<32x32xf32>
    %466 = arith.cmpf oge, %436, %465 : vector<32x32xf32>
    %cst_221 = arith.constant 0.000000e+00 : f32
    %467 = vector.broadcast %cst_221 : f32 to vector<32x32xf32>
    %468 = arith.subf %467, %464 : vector<32x32xf32>
    %469 = arith.select %466, %464, %468 : vector<32x32xi1>, vector<32x32xf32>
    %cst_222 = arith.constant 1.000000e+00 : f32
    %470 = vector.broadcast %cst_222 : f32 to vector<32x32xf32>
    %471 = arith.addf %470, %469 : vector<32x32xf32>
    %472 = arith.mulf %434, %471 : vector<32x32xf32>
    %cst_223 = arith.constant dense<0.000000e+00> : vector<16x32xf32>
    %473 = tpu.matmul %288, %472, %cst_223 {dimension_numbers = #tpu.dot_dimension_numbers<[1], [0], [0], [1], [0, 0, 1, 1], [], []>} : vector<16x32xf32>, vector<32x32xf32>, vector<16x32xf32> -> vector<16x32xf32>
    %474 = arith.addf %403, %473 : vector<16x32xf32>
    %475 = vector.broadcast %290 : vector<16x1xf32> to vector<16x32xf32>
    %476 = arith.addf %474, %475 : vector<16x32xf32>
    %cst_224 = arith.constant dense<0.000000e+00> : vector<16xf32>
    %477 = vector.multi_reduction <add>, %476, %cst_224 [1] : vector<16x32xf32> to vector<16xf32>
    %478 = vector.shape_cast %477 : vector<16xf32> to vector<16x1xf32>
    %cst_225 = arith.constant 3.200000e+01 : f32
    %479 = vector.broadcast %cst_225 : f32 to vector<16x1xf32>
    %480 = arith.divf %478, %479 : vector<16x1xf32>
    %cst_226 = arith.constant dense<0.000000e+00> : vector<1xf32>
    %481 = vector.multi_reduction <add>, %480, %cst_226 [0] : vector<16x1xf32> to vector<1xf32>
    %482 = vector.shape_cast %481 : vector<1xf32> to vector<1x1xf32>
    %cst_227 = arith.constant 1.600000e+01 : f32
    %483 = vector.broadcast %cst_227 : f32 to vector<1x1xf32>
    %484 = arith.divf %482, %483 : vector<1x1xf32>
    %485 = vector.broadcast %484 : vector<1x1xf32> to vector<16x32xf32>
    %486 = arith.subf %476, %485 : vector<16x32xf32>
    %487 = arith.mulf %486, %486 : vector<16x32xf32>
    %cst_228 = arith.constant dense<0.000000e+00> : vector<16xf32>
    %488 = vector.multi_reduction <add>, %487, %cst_228 [1] : vector<16x32xf32> to vector<16xf32>
    %489 = vector.shape_cast %488 : vector<16xf32> to vector<16x1xf32>
    %cst_229 = arith.constant 3.200000e+01 : f32
    %490 = vector.broadcast %cst_229 : f32 to vector<16x1xf32>
    %491 = arith.divf %489, %490 : vector<16x1xf32>
    %cst_230 = arith.constant dense<0.000000e+00> : vector<1xf32>
    %492 = vector.multi_reduction <add>, %491, %cst_230 [0] : vector<16x1xf32> to vector<1xf32>
    %493 = vector.shape_cast %492 : vector<1xf32> to vector<1x1xf32>
    %cst_231 = arith.constant 1.600000e+01 : f32
    %494 = vector.broadcast %cst_231 : f32 to vector<1x1xf32>
    %495 = arith.divf %493, %494 : vector<1x1xf32>
    %cst_232 = arith.constant 9.99999974E-6 : f32
    %496 = vector.broadcast %cst_232 : f32 to vector<1x1xf32>
    %497 = arith.addf %495, %496 : vector<1x1xf32>
    %498 = math.rsqrt %497 : vector<1x1xf32>
    %499 = vector.broadcast %498 : vector<1x1xf32> to vector<16x32xf32>
    %500 = arith.mulf %486, %499 : vector<16x32xf32>
    %501 = arith.mulf %500, %292 : vector<16x32xf32>
    %502 = arith.addf %501, %294 : vector<16x32xf32>
    %503 = tpu.concatenate %376, %476 in 0 : vector<16x32xf32>, vector<16x32xf32> -> vector<32x32xf32>
    %504 = tpu.concatenate %402, %502 in 0 : vector<16x32xf32>, vector<16x32xf32> -> vector<32x32xf32>
    %cst_233 = arith.constant dense<0.000000e+00> : vector<32x64xf32>
    %505 = tpu.matmul %504, %296, %cst_233 {dimension_numbers = #tpu.dot_dimension_numbers<[1], [0], [0], [1], [0, 0, 1, 1], [], []>} : vector<32x32xf32>, vector<32x64xf32>, vector<32x64xf32> -> vector<32x64xf32>
    %506 = vector.broadcast %298 : vector<1x64xf32> to vector<32x64xf32>
    %507 = arith.addf %505, %506 : vector<32x64xf32>
    %cst_234 = arith.constant 5.000000e-01 : f32
    %508 = vector.broadcast %cst_234 : f32 to vector<32x64xf32>
    %509 = arith.mulf %508, %507 : vector<32x64xf32>
    %cst_235 = arith.constant 0.707106769 : f32
    %510 = vector.broadcast %cst_235 : f32 to vector<32x64xf32>
    %511 = arith.mulf %507, %510 : vector<32x64xf32>
    %512 = math.absf %511 : vector<32x64xf32>
    %cst_236 = arith.constant 0.327591091 : f32
    %513 = vector.broadcast %cst_236 : f32 to vector<32x64xf32>
    %514 = arith.mulf %513, %512 : vector<32x64xf32>
    %cst_237 = arith.constant 1.000000e+00 : f32
    %515 = vector.broadcast %cst_237 : f32 to vector<32x64xf32>
    %516 = arith.addf %515, %514 : vector<32x64xf32>
    %cst_238 = arith.constant 1.000000e+00 : f32
    %517 = vector.broadcast %cst_238 : f32 to vector<32x64xf32>
    %518 = arith.divf %517, %516 : vector<32x64xf32>
    %cst_239 = arith.constant 1.06140542 : f32
    %519 = vector.broadcast %cst_239 : f32 to vector<32x64xf32>
    %520 = arith.mulf %519, %518 : vector<32x64xf32>
    %cst_240 = arith.constant -1.45315206 : f32
    %521 = vector.broadcast %cst_240 : f32 to vector<32x64xf32>
    %522 = arith.addf %520, %521 : vector<32x64xf32>
    %523 = arith.mulf %522, %518 : vector<32x64xf32>
    %cst_241 = arith.constant 1.42141378 : f32
    %524 = vector.broadcast %cst_241 : f32 to vector<32x64xf32>
    %525 = arith.addf %523, %524 : vector<32x64xf32>
    %526 = arith.mulf %525, %518 : vector<32x64xf32>
    %cst_242 = arith.constant -0.284496725 : f32
    %527 = vector.broadcast %cst_242 : f32 to vector<32x64xf32>
    %528 = arith.addf %526, %527 : vector<32x64xf32>
    %529 = arith.mulf %528, %518 : vector<32x64xf32>
    %cst_243 = arith.constant 0.254829586 : f32
    %530 = vector.broadcast %cst_243 : f32 to vector<32x64xf32>
    %531 = arith.addf %529, %530 : vector<32x64xf32>
    %532 = arith.mulf %531, %518 : vector<32x64xf32>
    %cst_244 = arith.constant 0.000000e+00 : f32
    %533 = vector.broadcast %cst_244 : f32 to vector<32x64xf32>
    %534 = arith.subf %533, %512 : vector<32x64xf32>
    %535 = arith.mulf %534, %512 : vector<32x64xf32>
    %536 = math.exp %535 : vector<32x64xf32>
    %537 = arith.mulf %532, %536 : vector<32x64xf32>
    %cst_245 = arith.constant 1.000000e+00 : f32
    %538 = vector.broadcast %cst_245 : f32 to vector<32x64xf32>
    %539 = arith.subf %538, %537 : vector<32x64xf32>
    %cst_246 = arith.constant 0.000000e+00 : f32
    %540 = vector.broadcast %cst_246 : f32 to vector<32x64xf32>
    %541 = arith.cmpf oge, %511, %540 : vector<32x64xf32>
    %cst_247 = arith.constant 0.000000e+00 : f32
    %542 = vector.broadcast %cst_247 : f32 to vector<32x64xf32>
    %543 = arith.subf %542, %539 : vector<32x64xf32>
    %544 = arith.select %541, %539, %543 : vector<32x64xi1>, vector<32x64xf32>
    %cst_248 = arith.constant 1.000000e+00 : f32
    %545 = vector.broadcast %cst_248 : f32 to vector<32x64xf32>
    %546 = arith.addf %545, %544 : vector<32x64xf32>
    %547 = arith.mulf %509, %546 : vector<32x64xf32>
    %cst_249 = arith.constant dense<0.000000e+00> : vector<32x32xf32>
    %548 = tpu.matmul %547, %300, %cst_249 {dimension_numbers = #tpu.dot_dimension_numbers<[1], [0], [0], [1], [0, 0, 1, 1], [], []>} : vector<32x64xf32>, vector<64x32xf32>, vector<32x32xf32> -> vector<32x32xf32>
    %549 = arith.addf %503, %548 : vector<32x32xf32>
    %550 = vector.broadcast %302 : vector<1x32xf32> to vector<32x32xf32>
    %551 = arith.addf %549, %550 : vector<32x32xf32>
    %c0_250 = arith.constant 0 : index
    %c0_251 = arith.constant 0 : index
    %552 = vector.load %arg16[%c0_250, %c0_251] : memref<2x32xf32, #tpu.memory_space<vmem>>, vector<2x32xf32>
    %cst_252 = arith.constant dense<0.000000e+00> : vector<2x32xf32>
    %553 = tpu.matmul %552, %551, %cst_252 {dimension_numbers = #tpu.dot_dimension_numbers<[1], [0], [0], [1], [0, 0, 1, 1], [], []>} : vector<2x32xf32>, vector<32x32xf32>, vector<2x32xf32> -> vector<2x32xf32>
    %c0_253 = arith.constant 0 : index
    %c0_254 = arith.constant 0 : index
    %554 = vector.load %arg17[%c0_253, %c0_254] : memref<32x10xf32, #tpu.memory_space<vmem>>, vector<32x10xf32>
    %cst_255 = arith.constant dense<0.000000e+00> : vector<2x10xf32>
    %555 = tpu.matmul %553, %554, %cst_255 {dimension_numbers = #tpu.dot_dimension_numbers<[1], [0], [0], [1], [0, 0, 1, 1], [], []>} : vector<2x32xf32>, vector<32x10xf32>, vector<2x10xf32> -> vector<2x10xf32>
    %c0_256 = arith.constant 0 : index
    %c0_257 = arith.constant 0 : index
    %556 = vector.load %arg18[%c0_256, %c0_257] : memref<1x10xf32, #tpu.memory_space<vmem>>, vector<1x10xf32>
    %557 = vector.broadcast %556 : vector<1x10xf32> to vector<2x10xf32>
    %558 = arith.addf %555, %557 : vector<2x10xf32>
    %c0_258 = arith.constant 0 : index
    %c0_259 = arith.constant 0 : index
    %559 = vector.load %arg19[%c0_258, %c0_259] : memref<2x10xf32, #tpu.memory_space<vmem>>, vector<2x10xf32>
    tpu.vector_store %arg19[%c0_258, %c0_259], %558 {strides = array<i32>} : memref<2x10xf32, #tpu.memory_space<vmem>>, vector<2x10xf32>,
    return
  }
  func.func @transform_0(%arg0: i32) -> (i32, i32) {
    %c0_i32 = arith.constant 0 : i32
    %c0_i32_0 = arith.constant 0 : i32
    return %arg0, %c0_i32 : i32, i32
  }
  func.func @transform_1(%arg0: i32) -> (i32, i32) {
    %c0_i32 = arith.constant 0 : i32
    %c0_i32_0 = arith.constant 0 : i32
    %c0_i32_1 = arith.constant 0 : i32
    return %c0_i32, %c0_i32_0 : i32, i32
  }
  func.func @transform_2(%arg0: i32) -> (i32, i32) {
    %c0_i32 = arith.constant 0 : i32
    %c0_i32_0 = arith.constant 0 : i32
    %c0_i32_1 = arith.constant 0 : i32
    return %c0_i32, %c0_i32_0 : i32, i32
  }
  func.func @transform_3(%arg0: i32) -> (i32, i32, i32) {
    %c0_i32 = arith.constant 0 : i32
    %c0_i32_0 = arith.constant 0 : i32
    %c0_i32_1 = arith.constant 0 : i32
    %c0_i32_2 = arith.constant 0 : i32
    return %c0_i32, %c0_i32_0, %c0_i32_1 : i32, i32, i32
  }
  func.func @transform_4(%arg0: i32) -> (i32, i32, i32) {
    %c0_i32 = arith.constant 0 : i32
    %c0_i32_0 = arith.constant 0 : i32
    %c0_i32_1 = arith.constant 0 : i32
    %c0_i32_2 = arith.constant 0 : i32
    return %c0_i32, %c0_i32_0, %c0_i32_1 : i32, i32, i32
  }
  func.func @transform_5(%arg0: i32) -> (i32, i32, i32) {
    %c0_i32 = arith.constant 0 : i32
    %c0_i32_0 = arith.constant 0 : i32
    %c0_i32_1 = arith.constant 0 : i32
    %c0_i32_2 = arith.constant 0 : i32
    return %c0_i32, %c0_i32_0, %c0_i32_1 : i32, i32, i32
  }
  func.func @transform_6(%arg0: i32) -> (i32, i32, i32) {
    %c0_i32 = arith.constant 0 : i32
    %c0_i32_0 = arith.constant 0 : i32
    %c0_i32_1 = arith.constant 0 : i32
    %c0_i32_2 = arith.constant 0 : i32
    return %c0_i32, %c0_i32_0, %c0_i32_1 : i32, i32, i32
  }
  func.func @transform_7(%arg0: i32) -> (i32, i32, i32) {
    %c0_i32 = arith.constant 0 : i32
    %c0_i32_0 = arith.constant 0 : i32
    %c0_i32_1 = arith.constant 0 : i32
    %c0_i32_2 = arith.constant 0 : i32
    return %c0_i32, %c0_i32_0, %c0_i32_1 : i32, i32, i32
  }
  func.func @transform_8(%arg0: i32) -> (i32, i32, i32) {
    %c0_i32 = arith.constant 0 : i32
    %c0_i32_0 = arith.constant 0 : i32
    %c0_i32_1 = arith.constant 0 : i32
    %c0_i32_2 = arith.constant 0 : i32
    return %c0_i32, %c0_i32_0, %c0_i32_1 : i32, i32, i32
  }
  func.func @transform_9(%arg0: i32) -> (i32, i32, i32) {
    %c0_i32 = arith.constant 0 : i32
    %c0_i32_0 = arith.constant 0 : i32
    %c0_i32_1 = arith.constant 0 : i32
    %c0_i32_2 = arith.constant 0 : i32
    return %c0_i32, %c0_i32_0, %c0_i32_1 : i32, i32, i32
  }
  func.func @transform_10(%arg0: i32) -> (i32, i32, i32) {
    %c0_i32 = arith.constant 0 : i32
    %c0_i32_0 = arith.constant 0 : i32
    %c0_i32_1 = arith.constant 0 : i32
    %c0_i32_2 = arith.constant 0 : i32
    return %c0_i32, %c0_i32_0, %c0_i32_1 : i32, i32, i32
  }
  func.func @transform_11(%arg0: i32) -> (i32, i32, i32) {
    %c0_i32 = arith.constant 0 : i32
    %c0_i32_0 = arith.constant 0 : i32
    %c0_i32_1 = arith.constant 0 : i32
    %c0_i32_2 = arith.constant 0 : i32
    return %c0_i32, %c0_i32_0, %c0_i32_1 : i32, i32, i32
  }
  func.func @transform_12(%arg0: i32) -> (i32, i32, i32) {
    %c0_i32 = arith.constant 0 : i32
    %c0_i32_0 = arith.constant 0 : i32
    %c0_i32_1 = arith.constant 0 : i32
    %c0_i32_2 = arith.constant 0 : i32
    return %c0_i32, %c0_i32_0, %c0_i32_1 : i32, i32, i32
  }
  func.func @transform_13(%arg0: i32) -> (i32, i32, i32) {
    %c0_i32 = arith.constant 0 : i32
    %c0_i32_0 = arith.constant 0 : i32
    %c0_i32_1 = arith.constant 0 : i32
    %c0_i32_2 = arith.constant 0 : i32
    return %c0_i32, %c0_i32_0, %c0_i32_1 : i32, i32, i32
  }
  func.func @transform_14(%arg0: i32) -> (i32, i32, i32) {
    %c0_i32 = arith.constant 0 : i32
    %c0_i32_0 = arith.constant 0 : i32
    %c0_i32_1 = arith.constant 0 : i32
    %c0_i32_2 = arith.constant 0 : i32
    return %c0_i32, %c0_i32_0, %c0_i32_1 : i32, i32, i32
  }
  func.func @transform_15(%arg0: i32) -> (i32, i32) {
    %c0_i32 = arith.constant 0 : i32
    %c0_i32_0 = arith.constant 0 : i32
    %c0_i32_1 = arith.constant 0 : i32
    return %c0_i32, %c0_i32_0 : i32, i32
  }
  func.func @transform_16(%arg0: i32) -> (i32, i32) {
    %c0_i32 = arith.constant 0 : i32
    %c0_i32_0 = arith.constant 0 : i32
    %c0_i32_1 = arith.constant 0 : i32
    return %c0_i32, %c0_i32_0 : i32, i32
  }
  func.func @transform_17(%arg0: i32) -> (i32, i32) {
    %c0_i32 = arith.constant 0 : i32
    %c0_i32_0 = arith.constant 0 : i32
    %c0_i32_1 = arith.constant 0 : i32
    return %c0_i32, %c0_i32_0 : i32, i32
  }
  func.func @transform_18(%arg0: i32) -> (i32, i32) {
    %c0_i32 = arith.constant 0 : i32
    %c0_i32_0 = arith.constant 0 : i32
    return %arg0, %c0_i32 : i32, i32
  }
}

</mosaic_0001>

<llo_original>
// kernel: _forward_impl.1
$region0: #{_forward_impl.1}
  #allocation0 [shape = 'u32[]', space=smem, size = 0x4, offset = 0x4, fixed_abs, tag = 'smem constant byte address 0x4 - core index']
  #allocation1 [shape = 'u32[144,128]{1,0:T(1,128)}', space=vmem, size = 0x12000, scoped, tag = 'internal scratch']
  %s0 = inlined_call_operand.vmem [shape: f32[32,48], index: 0, kind: input, shape index: {}]
  %s1 = inlined_call_operand.vmem [shape: f32[48,32], index: 1, kind: input, shape index: {}]
  %s2 = inlined_call_operand.vmem [shape: f32[1,32], index: 2, kind: input, shape index: {}]
  %s3 = inlined_call_operand.vmem [shape: f32[2,16,32], index: 3, kind: input, shape index: {}]
  %s4 = inlined_call_operand.vmem [shape: f32[2,16,32], index: 4, kind: input, shape index: {}]
  %s5 = inlined_call_operand.vmem [shape: f32[2,32,16], index: 5, kind: input, shape index: {}]
  %s6 = inlined_call_operand.vmem [shape: f32[2,32,1], index: 6, kind: input, shape index: {}]
  %s7 = inlined_call_operand.vmem [shape: f32[2,16,32], index: 7, kind: input, shape index: {}]
  %s8 = inlined_call_operand.vmem [shape: f32[2,16,1], index: 8, kind: input, shape index: {}]
  %s9 = inlined_call_operand.vmem [shape: f32[2,16,32], index: 9, kind: input, shape index: {}]
  %s10 = inlined_call_operand.vmem [shape: f32[2,16,32], index: 10, kind: input, shape index: {}]
  %s11 = inlined_call_operand.vmem [shape: f32[2,32,64], index: 11, kind: input, shape index: {}]
  %s12 = inlined_call_operand.vmem [shape: f32[2,1,64], index: 12, kind: input, shape index: {}]
  %s13 = inlined_call_operand.vmem [shape: f32[2,64,32], index: 13, kind: input, shape index: {}]
  %s14 = inlined_call_operand.vmem [shape: f32[2,1,32], index: 14, kind: input, shape index: {}]
  %s15 = inlined_call_operand.vmem [shape: f32[2,32], index: 15, kind: input, shape index: {}]
  %s16 = inlined_call_operand.vmem [shape: f32[32,10], index: 16, kind: input, shape index: {}]
  %s17 = inlined_call_operand.vmem [shape: f32[1,10], index: 17, kind: input, shape index: {}]
  %s18 = inlined_call_operand.hbm [shape: f32[2,10], index: 18, kind: output, shape index: {}]
  %s19 = sld [smem:[#allocation0]]
  $region82: #{_forward_impl.1} parent=0
    _
  %s21 = ssub.s32 1, %s19
  %s22 = scalar_select 0, %s21, %s19
  $region1: #{_forward_impl.1} parent=0
    #allocation2 [shape = 'u8[1024]{0}', space=vmem, size = 0x400, scoped, tag = 'output window, operand 0, single buffered']
    #allocation3 [shape = 's32[1]{0}', space=sflag, size = 0x4, scoped, tag = 'scoped memory for _forward_impl.1']
    %23 = vsyncpa [#allocation3], 0
    // Predicated region
    $region2: #{_forward_impl.1} parent=1 // pred_check
      _
    $region3: #{_forward_impl.1} parent=1 // pred_check_branch
      %25 = sbr.rel (0) target = $region5
    $region4: #{_forward_impl.1} parent=1 // pred_region
      _
    $region5: #{_forward_impl.1} parent=1 // pred_fallthru
      _
    // Predicated region
    $region6: #{_forward_impl.1} parent=1 // pred_check
      _
    $region7: #{_forward_impl.1} parent=1 // pred_check_branch
      %27 = sbr.rel (0) target = $region9
    $region8: #{_forward_impl.1} parent=1 // pred_region
      _
    $region9: #{_forward_impl.1} parent=1 // pred_fallthru
      _
    // Predicated region
    $region10: #{_forward_impl.1} parent=1 // pred_check
      _
    $region11: #{_forward_impl.1} parent=1 // pred_check_branch
      %29 = sbr.rel (0) target = $region13
    $region12: #{_forward_impl.1} parent=1 // pred_region
      _
    $region13: #{_forward_impl.1} parent=1 // pred_fallthru
      _
    // Predicated region
    $region14: #{_forward_impl.1} parent=1 // pred_check
      _
    $region15: #{_forward_impl.1} parent=1 // pred_check_branch
      %31 = sbr.rel (0) target = $region17
    $region16: #{_forward_impl.1} parent=1 // pred_region
      _
    $region17: #{_forward_impl.1} parent=1 // pred_fallthru
      _
    // Predicated region
    $region18: #{_forward_impl.1} parent=1 // pred_check
      _
    $region19: #{_forward_impl.1} parent=1 // pred_check_branch
      %33 = sbr.rel (0) target = $region21
    $region20: #{_forward_impl.1} parent=1 // pred_region
      _
    $region21: #{_forward_impl.1} parent=1 // pred_fallthru
      _
    // Predicated region
    $region22: #{_forward_impl.1} parent=1 // pred_check
      _
    $region23: #{_forward_impl.1} parent=1 // pred_check_branch
      %35 = sbr.rel (0) target = $region25
    $region24: #{_forward_impl.1} parent=1 // pred_region
      _
    $region25: #{_forward_impl.1} parent=1 // pred_fallthru
      _
    // Predicated region
    $region26: #{_forward_impl.1} parent=1 // pred_check
      _
    $region27: #{_forward_impl.1} parent=1 // pred_check_branch
      %37 = sbr.rel (0) target = $region29
    $region28: #{_forward_impl.1} parent=1 // pred_region
      _
    $region29: #{_forward_impl.1} parent=1 // pred_fallthru
      _
    // Predicated region
    $region30: #{_forward_impl.1} parent=1 // pred_check
      _
    $region31: #{_forward_impl.1} parent=1 // pred_check_branch
      %39 = sbr.rel (0) target = $region33
    $region32: #{_forward_impl.1} parent=1 // pred_region
      _
    $region33: #{_forward_impl.1} parent=1 // pred_fallthru
      _
    // Predicated region
    $region34: #{_forward_impl.1} parent=1 // pred_check
      _
    $region35: #{_forward_impl.1} parent=1 // pred_check_branch
      %41 = sbr.rel (0) target = $region37
    $region36: #{_forward_impl.1} parent=1 // pred_region
      _
    $region37: #{_forward_impl.1} parent=1 // pred_fallthru
      _
    // Predicated region
    $region38: #{_forward_impl.1} parent=1 // pred_check
      _
    $region39: #{_forward_impl.1} parent=1 // pred_check_branch
      %43 = sbr.rel (0) target = $region41
    $region40: #{_forward_impl.1} parent=1 // pred_region
      _
    $region41: #{_forward_impl.1} parent=1 // pred_fallthru
      _
    // Predicated region
    $region42: #{_forward_impl.1} parent=1 // pred_check
      _
    $region43: #{_forward_impl.1} parent=1 // pred_check_branch
      %45 = sbr.rel (0) target = $region45
    $region44: #{_forward_impl.1} parent=1 // pred_region
      _
    $region45: #{_forward_impl.1} parent=1 // pred_fallthru
      _
    // Predicated region
    $region46: #{_forward_impl.1} parent=1 // pred_check
      _
    $region47: #{_forward_impl.1} parent=1 // pred_check_branch
      %47 = sbr.rel (0) target = $region49
    $region48: #{_forward_impl.1} parent=1 // pred_region
      _
    $region49: #{_forward_impl.1} parent=1 // pred_fallthru
      _
    // Predicated region
    $region50: #{_forward_impl.1} parent=1 // pred_check
      _
    $region51: #{_forward_impl.1} parent=1 // pred_check_branch
      %49 = sbr.rel (0) target = $region53
    $region52: #{_forward_impl.1} parent=1 // pred_region
      _
    $region53: #{_forward_impl.1} parent=1 // pred_fallthru
      _
    // Predicated region
    $region54: #{_forward_impl.1} parent=1 // pred_check
      _
    $region55: #{_forward_impl.1} parent=1 // pred_check_branch
      %51 = sbr.rel (0) target = $region57
    $region56: #{_forward_impl.1} parent=1 // pred_region
      _
    $region57: #{_forward_impl.1} parent=1 // pred_fallthru
      _
    // Predicated region
    $region58: #{_forward_impl.1} parent=1 // pred_check
      _
    $region59: #{_forward_impl.1} parent=1 // pred_check_branch
      %53 = sbr.rel (0) target = $region61
    $region60: #{_forward_impl.1} parent=1 // pred_region
      _
    $region61: #{_forward_impl.1} parent=1 // pred_fallthru
      _
    // Predicated region
    $region62: #{_forward_impl.1} parent=1 // pred_check
      _
    $region63: #{_forward_impl.1} parent=1 // pred_check_branch
      %55 = sbr.rel (0) target = $region65
    $region64: #{_forward_impl.1} parent=1 // pred_region
      _
    $region65: #{_forward_impl.1} parent=1 // pred_fallthru
      _
    // Predicated region
    $region66: #{_forward_impl.1} parent=1 // pred_check
      _
    $region67: #{_forward_impl.1} parent=1 // pred_check_branch
      %57 = sbr.rel (0) target = $region69
    $region68: #{_forward_impl.1} parent=1 // pred_region
      _
    $region69: #{_forward_impl.1} parent=1 // pred_fallthru
      _
    // Predicated region
    $region70: #{_forward_impl.1} parent=1 // pred_check
      _
    $region71: #{_forward_impl.1} parent=1 // pred_check_branch
      %59 = sbr.rel (0) target = $region73
    $region72: #{_forward_impl.1} parent=1 // pred_region
      _
    $region73: #{_forward_impl.1} parent=1 // pred_fallthru
      _
    %v60 = vld [vmem:[%s0] sm:$0xff]
    %v61 = vld [vmem:[%s0 + $0x8] sm:$0xff]
    %v62 = vld [vmem:[%s0 + $0x10] sm:$0xff]
    %v63 = vld [vmem:[%s0 + $0x18] sm:$0xff]
    %v64 = vld [vmem:[%s1] sm:$0xff]
    %v65 = vld [vmem:[%s1 + $0x8] sm:$0xff]
    %v66 = vld [vmem:[%s1 + $0x10] sm:$0xff]
    %v67 = vld [vmem:[%s1 + $0x18] sm:$0xff]
    %v68 = vld [vmem:[%s1 + $0x20] sm:$0xff]
    %v69 = vld [vmem:[%s1 + $0x28] sm:$0xff]
    %v70 = vld [vmem:[%s2] sm:$0x1]
    %v72 = vlaneseq
    %v73 = vshrl.u32 %v72, 7
    %v74 = vsub.s32 0, %v73
    %v75 = vrot.slane %v70, %v74
    %vm77 = vcmask 392192
    %v79 = vsel %vm77, %v60, 0
    %v82 = vsel %vm77, %v61, 0
    %v85 = vsel %vm77, %v62, 0
    %v88 = vsel %vm77, %v63, 0
    %90 = vmatprep.subr.mxu0 0.0
    %91 = vmatpush1.msra.mxu0 %v64
    %92 = vmatprep.subr.mxu0 0.0
    %93 = vmatpush1.msra.mxu0 %v65
    %94 = vmatprep.subr.mxu0 0.0
    %95 = vmatpush1.msra.mxu0 %v66
    %96 = vmatprep.subr.mxu0 0.0
    %97 = vmatpush1.msra.mxu0 %v67
    %98 = vmatprep.subr.mxu0 0.0
    %99 = vmatpush1.msra.mxu0 %v68
    %100 = vmatprep.subr.mxu0 0.0
    %101 = vmatpush1.msra.mxu0 %v69
    %102 = vmatprep.subr.mxu0 0.0
    %103 = vmatpush1.msra.mxu0 0.0
    %104 = vmatprep.subr.mxu0 0.0
    %105 = vmatpush1.msra.mxu0 0.0
    %106 = vmatprep.subr.mxu0 0.0
    %107 = vmatpush1.msra.mxu0 0.0
    %108 = vmatprep.subr.mxu0 0.0
    %109 = vmatpush1.msra.mxu0 0.0
    %110 = vmatprep.subr.mxu0 0.0
    %111 = vmatpush1.msra.mxu0 0.0
    %112 = vmatprep.subr.mxu0 0.0
    %113 = vmatpush1.msra.mxu0 0.0
    %114 = vmatprep.subr.mxu0 0.0
    %115 = vmatpush1.msra.mxu0 0.0
    %116 = vmatprep.subr.mxu0 0.0
    %117 = vmatpush1.msra.mxu0 0.0
    %118 = vmatprep.subr.mxu0 0.0
    %119 = vmatpush1.msra.mxu0 0.0
    %120 = vmatprep.subr.mxu0 0.0
    %121 = vmatpush1.msra.mxu0 0.0
    %122 = vmatprep.subr.mxu0 0.0
    %123 = vmatpush1.msra.mxu0 0.0
    %124 = vmatprep.subr.mxu0 0.0
    %125 = vmatpush1.msra.mxu0 0.0
    %126 = vmatprep.subr.mxu0 0.0
    %127 = vmatpush1.msra.mxu0 0.0
    %128 = vmatprep.subr.mxu0 0.0
    %129 = vmatpush1.msra.mxu0 0.0
    %130 = vmatprep.subr.mxu0 0.0
    %131 = vmatpush1.msra.mxu0 0.0
    %132 = vmatprep.subr.mxu0 0.0
    %133 = vmatpush1.msra.mxu0 0.0
    %134 = vmatprep.subr.mxu0 0.0
    %135 = vmatpush1.msra.mxu0 0.0
    %136 = vmatprep.subr.mxu0 0.0
    %137 = vmatpush1.msra.mxu0 0.0
    %138 = vmatprep.subr.mxu0 0.0
    %139 = vmatpush1.msra.mxu0 0.0
    %140 = vmatprep.subr.mxu0 0.0
    %141 = vmatpush1.msra.mxu0 0.0
    %142 = vmatprep.subr.mxu0 0.0
    %143 = vmatpush1.msra.mxu0 0.0
    %144 = vmatprep.subr.mxu0 0.0
    %145 = vmatpush1.msra.mxu0 0.0
    %146 = vmatprep.subr.mxu0 0.0
    %147 = vmatpush1.msra.mxu0 0.0
    %148 = vmatprep.subr.mxu0 0.0
    %149 = vmatpush1.msra.mxu0 0.0
    %150 = vmatprep.subr.mxu0 0.0
    %151 = vmatpush1.msra.mxu0 0.0
    %152 = vmatprep.subr.mxu0 0.0
    %153 = vmatpush1.msra.mxu0 0.0
    %154 = vmatprep.mubr.f32.mxu0 0.0
    %155 = vmatmul.mubr.f32.gmra.mrb[0].mxu0 %v79
    %v156 = vpop.f32.mrb[0].mxu0
    %v157 = vadd.f32 %v75, %v156
    %v158 = vpop.f32.mrb[0].mxu0
    %159 = vmatprep.mubr.f32.mxu0 0.0
    %160 = vmatmul.mubr.f32.gmra.mrb[0].mxu0 %v82
    %v161 = vpop.f32.mrb[0].mxu0
    %v162 = vadd.f32 %v75, %v161
    %v163 = vpop.f32.mrb[0].mxu0
    %164 = vmatprep.mubr.f32.mxu0 0.0
    %165 = vmatmul.mubr.f32.gmra.mrb[0].mxu0 %v85
    %v166 = vpop.f32.mrb[0].mxu0
    %v167 = vadd.f32 %v75, %v166
    %v168 = vpop.f32.mrb[0].mxu0
    %169 = vmatprep.mubr.f32.mxu0 0.0
    %170 = vmatmul.mubr.f32.gmra.mrb[0].mxu0 %v88
    %v171 = vpop.f32.mrb[0].mxu0
    %v172 = vadd.f32 %v75, %v171
    %v173 = vpop.f32.mrb[0].mxu0
    %174 = vdwg.mxu0
    %v175 = vld [vmem:[%s3] sm:$0xff]
    %v176 = vld [vmem:[%s3 + $0x8] sm:$0xff]
    %v177 = vld [vmem:[%s4] sm:$0xff]
    %v178 = vld [vmem:[%s4 + $0x8] sm:$0xff]
    %v179 = vld [vmem:[%s5] sm:$0xff]
    %v180 = vld [vmem:[%s5 + $0x8] sm:$0xff]
    %v181 = vld [vmem:[%s5 + $0x10] sm:$0xff]
    %v182 = vld [vmem:[%s5 + $0x18] sm:$0xff]
    %v183 = vld [vmem:[%s6] sm:$0xff]
    %v184 = vld [vmem:[%s6 + $0x8] sm:$0xff]
    %v185 = vld [vmem:[%s6 + $0x10] sm:$0xff]
    %v186 = vld [vmem:[%s6 + $0x18] sm:$0xff]
    %v187 = vld [vmem:[%s7] sm:$0xff]
    %v188 = vld [vmem:[%s7 + $0x8] sm:$0xff]
    %v189 = vld [vmem:[%s8] sm:$0xff]
    %v190 = vld [vmem:[%s8 + $0x8] sm:$0xff]
    %v191 = vld [vmem:[%s9] sm:$0xff]
    %v192 = vld [vmem:[%s9 + $0x8] sm:$0xff]
    %v193 = vld [vmem:[%s10] sm:$0xff]
    %v194 = vld [vmem:[%s10 + $0x8] sm:$0xff]
    %v195 = vld [vmem:[%s11] sm:$0xff]
    %v196 = vld [vmem:[%s11 + $0x8] sm:$0xff]
    %v197 = vld [vmem:[%s11 + $0x10] sm:$0xff]
    %v198 = vld [vmem:[%s11 + $0x18] sm:$0xff]
    %v199 = vld [vmem:[%s12] sm:$0x1]
    %v200 = vld [vmem:[%s13] sm:$0xff]
    %v201 = vld [vmem:[%s13 + $0x8] sm:$0xff]
    %v202 = vld [vmem:[%s13 + $0x10] sm:$0xff]
    %v203 = vld [vmem:[%s13 + $0x18] sm:$0xff]
    %v204 = vld [vmem:[%s13 + $0x20] sm:$0xff]
    %v205 = vld [vmem:[%s13 + $0x28] sm:$0xff]
    %v206 = vld [vmem:[%s13 + $0x30] sm:$0xff]
    %v207 = vld [vmem:[%s13 + $0x38] sm:$0xff]
    %v208 = vld [vmem:[%s14] sm:$0x1]
    %vm209 = vcmask 261120
    %v210 = vsel %vm209, %v157, 0.0
    %211 = vadd.xlane.f32.xlu0 %v210
    %v212 = vpop.xlane.xlu0 %211
    %v213 = vsel %vm209, %v162, 0.0
    %214 = vadd.xlane.f32.xlu0 %v213
    %v215 = vpop.xlane.xlu0 %214
    %v216 = vrcp.pop 32.0
    %v217 = vmul.f32 %v212, %v216
    %v218 = vmul.f32 %v215, %v216
    %v219 = vadd.f32 %v217, %v218
    %v220 = vrot.slane %v219, 4
    %v221 = vadd.f32 %v219, %v220
    %v222 = vrot.slane %v221, 2
    %v223 = vadd.f32 %v221, %v222
    %v224 = vrot.slane %v223, 1
    %v225 = vadd.f32 %v223, %v224
    %v226 = vrcp.pop 16.0
    %v227 = vmul.f32 %v225, %v226
    %v228 = vsub.f32 %v157, %v227
    %v229 = vsub.f32 %v162, %v227
    %v230 = vmul.f32 %v228, %v228
    %v231 = vmul.f32 %v229, %v229
    %v232 = vsel %vm209, %v230, 0.0
    %233 = vadd.xlane.f32.xlu0 %v232
    %v234 = vpop.xlane.xlu0 %233
    %v235 = vsel %vm209, %v231, 0.0
    %236 = vadd.xlane.f32.xlu0 %v235
    %v237 = vpop.xlane.xlu0 %236
    %v238 = vmul.f32 %v234, %v216
    %v239 = vmul.f32 %v237, %v216
    %v240 = vadd.f32 %v238, %v239
    %v241 = vrot.slane %v240, 4
    %v242 = vadd.f32 %v240, %v241
    %v243 = vrot.slane %v242, 2
    %v244 = vadd.f32 %v242, %v243
    %v245 = vrot.slane %v244, 1
    %v246 = vadd.f32 %v244, %v245
    %v247 = vmul.f32 %v246, %v226
    %v248 = vadd.f32 %v247, 1e-05
    %v249 = vrsqrt.pop %v248
    %v250 = vmul.f32 %v228, %v249
    %v251 = vmul.f32 %v229, %v249
    %v252 = vmul.f32 %v250, %v175
    %v253 = vmul.f32 %v251, %v176
    %v254 = vadd.f32 %v252, %v177
    %v255 = vadd.f32 %v253, %v178
    %257 = vset.pattern.permute.xlu0 0
    %258 = vperm.xlu0 %257, %v183
    %v259 = vpop.permute.xlu0 %258
    %262 = vset.pattern.permute.xlu0 0
    %263 = vperm.xlu0 %262, %v184
    %v264 = vpop.permute.xlu0 %263
    %267 = vset.pattern.permute.xlu0 0
    %268 = vperm.xlu0 %267, %v185
    %v269 = vpop.permute.xlu0 %268
    %272 = vset.pattern.permute.xlu0 0
    %273 = vperm.xlu0 %272, %v186
    %v274 = vpop.permute.xlu0 %273
    %vm276 = vcmask 130048
    %v278 = vsel %vm276, %v179, 0
    %v281 = vsel %vm276, %v180, 0
    %v284 = vsel %vm276, %v181, 0
    %v287 = vsel %vm276, %v182, 0
    %289 = vmatprep.subr.mxu0 0.0
    %290 = vmatpush1.msra.mxu0 %v254
    %291 = vmatprep.subr.mxu0 0.0
    %292 = vmatpush1.msra.mxu0 %v255
    %293 = vmatprep.subr.mxu0 0.0
    %294 = vmatpush1.msra.mxu0 0.0
    %295 = vmatprep.subr.mxu0 0.0
    %296 = vmatpush1.msra.mxu0 0.0
    %297 = vmatprep.subr.mxu0 0.0
    %298 = vmatpush1.msra.mxu0 0.0
    %299 = vmatprep.subr.mxu0 0.0
    %300 = vmatpush1.msra.mxu0 0.0
    %301 = vmatprep.subr.mxu0 0.0
    %302 = vmatpush1.msra.mxu0 0.0
    %303 = vmatprep.subr.mxu0 0.0
    %304 = vmatpush1.msra.mxu0 0.0
    %305 = vmatprep.subr.mxu0 0.0
    %306 = vmatpush1.msra.mxu0 0.0
    %307 = vmatprep.subr.mxu0 0.0
    %308 = vmatpush1.msra.mxu0 0.0
    %309 = vmatprep.subr.mxu0 0.0
    %310 = vmatpush1.msra.mxu0 0.0
    %311 = vmatprep.subr.mxu0 0.0
    %312 = vmatpush1.msra.mxu0 0.0
    %313 = vmatprep.subr.mxu0 0.0
    %314 = vmatpush1.msra.mxu0 0.0
    %315 = vmatprep.subr.mxu0 0.0
    %316 = vmatpush1.msra.mxu0 0.0
    %317 = vmatprep.subr.mxu0 0.0
    %318 = vmatpush1.msra.mxu0 0.0
    %319 = vmatprep.subr.mxu0 0.0
    %320 = vmatpush1.msra.mxu0 0.0
    %321 = vmatprep.subr.mxu0 0.0
    %322 = vmatpush1.msra.mxu0 0.0
    %323 = vmatprep.subr.mxu0 0.0
    %324 = vmatpush1.msra.mxu0 0.0
    %325 = vmatprep.subr.mxu0 0.0
    %326 = vmatpush1.msra.mxu0 0.0
    %327 = vmatprep.subr.mxu0 0.0
    %328 = vmatpush1.msra.mxu0 0.0
    %329 = vmatprep.subr.mxu0 0.0
    %330 = vmatpush1.msra.mxu0 0.0
    %331 = vmatprep.subr.mxu0 0.0
    %332 = vmatpush1.msra.mxu0 0.0
    %333 = vmatprep.subr.mxu0 0.0
    %334 = vmatpush1.msra.mxu0 0.0
    %335 = vmatprep.subr.mxu0 0.0
    %336 = vmatpush1.msra.mxu0 0.0
    %337 = vmatprep.subr.mxu0 0.0
    %338 = vmatpush1.msra.mxu0 0.0
    %339 = vmatprep.subr.mxu0 0.0
    %340 = vmatpush1.msra.mxu0 0.0
    %341 = vmatprep.subr.mxu0 0.0
    %342 = vmatpush1.msra.mxu0 0.0
    %343 = vmatprep.subr.mxu0 0.0
    %344 = vmatpush1.msra.mxu0 0.0
    %345 = vmatprep.subr.mxu0 0.0
    %346 = vmatpush1.msra.mxu0 0.0
    %347 = vmatprep.subr.mxu0 0.0
    %348 = vmatpush1.msra.mxu0 0.0
    %349 = vmatprep.subr.mxu0 0.0
    %350 = vmatpush1.msra.mxu0 0.0
    %351 = vmatprep.subr.mxu0 0.0
    %352 = vmatpush1.msra.mxu0 0.0
    %353 = vmatprep.mubr.f32.mxu0 0.0
    %354 = vmatmul.mubr.f32.gmra.mrb[0].mxu0 %v278
    %v355 = vpop.f32.mrb[0].mxu0
    %v356 = vadd.f32 %v259, %v355
    %v357 = vpop.f32.mrb[0].mxu0
    %358 = vmatprep.mubr.f32.mxu0 0.0
    %359 = vmatmul.mubr.f32.gmra.mrb[0].mxu0 %v281
    %v360 = vpop.f32.mrb[0].mxu0
    %v361 = vadd.f32 %v264, %v360
    %v362 = vpop.f32.mrb[0].mxu0
    %363 = vmatprep.mubr.f32.mxu0 0.0
    %364 = vmatmul.mubr.f32.gmra.mrb[0].mxu0 %v284
    %v365 = vpop.f32.mrb[0].mxu0
    %v366 = vadd.f32 %v269, %v365
    %v367 = vpop.f32.mrb[0].mxu0
    %368 = vmatprep.mubr.f32.mxu0 0.0
    %369 = vmatmul.mubr.f32.gmra.mrb[0].mxu0 %v287
    %v370 = vpop.f32.mrb[0].mxu0
    %v371 = vadd.f32 %v274, %v370
    %v372 = vpop.f32.mrb[0].mxu0
    %373 = vdwg.mxu0
    %v374 = vmul.f32 %v356, 0.5
    %v375 = vmul.f32 %v361, 0.5
    %v376 = vmul.f32 %v366, 0.5
    %v377 = vmul.f32 %v371, 0.5
    %v378 = vmul.f32 %v356, 0.70710677
    %v379 = vmul.f32 %v361, 0.70710677
    %v380 = vmul.f32 %v366, 0.70710677
    %v381 = vmul.f32 %v371, 0.70710677
    %v382 = vand.u32 2147483647, %v378
    %v383 = vand.u32 2147483647, %v379
    %v384 = vand.u32 2147483647, %v380
    %v385 = vand.u32 2147483647, %v381
    %v386 = vmul.f32 %v382, 0.3275911
    %v387 = vmul.f32 %v383, 0.3275911
    %v388 = vmul.f32 %v384, 0.3275911
    %v389 = vmul.f32 %v385, 0.3275911
    %v390 = vadd.f32 %v386, 1.0
    %v391 = vadd.f32 %v387, 1.0
    %v392 = vadd.f32 %v388, 1.0
    %v393 = vadd.f32 %v389, 1.0
    %v394 = vrcp.pop %v390
    %v395 = vmul.f32 1.0, %v394
    %v396 = vrcp.pop %v391
    %v397 = vmul.f32 1.0, %v396
    %v398 = vrcp.pop %v392
    %v399 = vmul.f32 1.0, %v398
    %v400 = vrcp.pop %v393
    %v401 = vmul.f32 1.0, %v400
    %v402 = vmul.f32 %v395, 1.0614054
    %v403 = vmul.f32 %v397, 1.0614054
    %v404 = vmul.f32 %v399, 1.0614054
    %v405 = vmul.f32 %v401, 1.0614054
    %v406 = vadd.f32 %v402, -1.4531521
    %v407 = vadd.f32 %v403, -1.4531521
    %v408 = vadd.f32 %v404, -1.4531521
    %v409 = vadd.f32 %v405, -1.4531521
    %v410 = vmul.f32 %v406, %v395
    %v411 = vmul.f32 %v407, %v397
    %v412 = vmul.f32 %v408, %v399
    %v413 = vmul.f32 %v409, %v401
    %v414 = vadd.f32 %v410, 1.4214138
    %v415 = vadd.f32 %v411, 1.4214138
    %v416 = vadd.f32 %v412, 1.4214138
    %v417 = vadd.f32 %v413, 1.4214138
    %v418 = vmul.f32 %v414, %v395
    %v419 = vmul.f32 %v415, %v397
    %v420 = vmul.f32 %v416, %v399
    %v421 = vmul.f32 %v417, %v401
    %v422 = vadd.f32 %v418, -0.28449672
    %v423 = vadd.f32 %v419, -0.28449672
    %v424 = vadd.f32 %v420, -0.28449672
    %v425 = vadd.f32 %v421, -0.28449672
    %v426 = vmul.f32 %v422, %v395
    %v427 = vmul.f32 %v423, %v397
    %v428 = vmul.f32 %v424, %v399
    %v429 = vmul.f32 %v425, %v401
    %v430 = vadd.f32 %v426, 0.2548296
    %v431 = vadd.f32 %v427, 0.2548296
    %v432 = vadd.f32 %v428, 0.2548296
    %v433 = vadd.f32 %v429, 0.2548296
    %v434 = vmul.f32 %v430, %v395
    %v435 = vmul.f32 %v431, %v397
    %v436 = vmul.f32 %v432, %v399
    %v437 = vmul.f32 %v433, %v401
    %v438 = vsub.f32 0.0, %v382
    %v439 = vsub.f32 0.0, %v383
    %v440 = vsub.f32 0.0, %v384
    %v441 = vsub.f32 0.0, %v385
    %v442 = vmul.f32 %v438, %v382
    %v443 = vmul.f32 %v439, %v383
    %v444 = vmul.f32 %v440, %v384
    %v445 = vmul.f32 %v441, %v385
    %v446 = vmul.f32 %v442, 1.442695
    %v447 = vpow.pop %v446
    %v448 = vmul.f32 %v443, 1.442695
    %v449 = vpow.pop %v448
    %v450 = vmul.f32 %v444, 1.442695
    %v451 = vpow.pop %v450
    %v452 = vmul.f32 %v445, 1.442695
    %v453 = vpow.pop %v452
    %v454 = vmul.f32 %v434, %v447
    %v455 = vmul.f32 %v435, %v449
    %v456 = vmul.f32 %v436, %v451
    %v457 = vmul.f32 %v437, %v453
    %v458 = vsub.f32 1.0, %v454
    %v459 = vsub.f32 1.0, %v455
    %v460 = vsub.f32 1.0, %v456
    %v461 = vsub.f32 1.0, %v457
    %vm462 = vcmp.ge.f32.partialorder %v378, 0.0
    %vm463 = vcmp.ge.f32.partialorder %v379, 0.0
    %vm464 = vcmp.ge.f32.partialorder %v380, 0.0
    %vm465 = vcmp.ge.f32.partialorder %v381, 0.0
    %v466 = vsub.f32 0.0, %v458
    %v467 = vsub.f32 0.0, %v459
    %v468 = vsub.f32 0.0, %v460
    %v469 = vsub.f32 0.0, %v461
    %v470 = vsel %vm462, %v458, %v466
    %v471 = vsel %vm463, %v459, %v467
    %v472 = vsel %vm464, %v460, %v468
    %v473 = vsel %vm465, %v461, %v469
    %v474 = vadd.f32 %v470, 1.0
    %v475 = vadd.f32 %v471, 1.0
    %v476 = vadd.f32 %v472, 1.0
    %v477 = vadd.f32 %v473, 1.0
    %v478 = vmul.f32 %v374, %v474
    %v479 = vmul.f32 %v375, %v475
    %v480 = vmul.f32 %v376, %v476
    %v481 = vmul.f32 %v377, %v477
    %v483 = vsel %vm209, %v187, 0
    %v486 = vsel %vm209, %v188, 0
    %488 = vmatprep.subr.mxu0 0.0
    %489 = vmatpush1.msra.mxu0 %v478
    %490 = vmatprep.subr.mxu0 0.0
    %491 = vmatpush1.msra.mxu0 %v479
    %492 = vmatprep.subr.mxu0 0.0
    %493 = vmatpush1.msra.mxu0 %v480
    %494 = vmatprep.subr.mxu0 0.0
    %495 = vmatpush1.msra.mxu0 %v481
    %496 = vmatprep.subr.mxu0 0.0
    %497 = vmatpush1.msra.mxu0 0.0
    %498 = vmatprep.subr.mxu0 0.0
    %499 = vmatpush1.msra.mxu0 0.0
    %500 = vmatprep.subr.mxu0 0.0
    %501 = vmatpush1.msra.mxu0 0.0
    %502 = vmatprep.subr.mxu0 0.0
    %503 = vmatpush1.msra.mxu0 0.0
    %504 = vmatprep.subr.mxu0 0.0
    %505 = vmatpush1.msra.mxu0 0.0
    %506 = vmatprep.subr.mxu0 0.0
    %507 = vmatpush1.msra.mxu0 0.0
    %508 = vmatprep.subr.mxu0 0.0
    %509 = vmatpush1.msra.mxu0 0.0
    %510 = vmatprep.subr.mxu0 0.0
    %511 = vmatpush1.msra.mxu0 0.0
    %512 = vmatprep.subr.mxu0 0.0
    %513 = vmatpush1.msra.mxu0 0.0
    %514 = vmatprep.subr.mxu0 0.0
    %515 = vmatpush1.msra.mxu0 0.0
    %516 = vmatprep.subr.mxu0 0.0
    %517 = vmatpush1.msra.mxu0 0.0
    %518 = vmatprep.subr.mxu0 0.0
    %519 = vmatpush1.msra.mxu0 0.0
    %520 = vmatprep.subr.mxu0 0.0
    %521 = vmatpush1.msra.mxu0 0.0
    %522 = vmatprep.subr.mxu0 0.0
    %523 = vmatpush1.msra.mxu0 0.0
    %524 = vmatprep.subr.mxu0 0.0
    %525 = vmatpush1.msra.mxu0 0.0
    %526 = vmatprep.subr.mxu0 0.0
    %527 = vmatpush1.msra.mxu0 0.0
    %528 = vmatprep.subr.mxu0 0.0
    %529 = vmatpush1.msra.mxu0 0.0
    %530 = vmatprep.subr.mxu0 0.0
    %531 = vmatpush1.msra.mxu0 0.0
    %532 = vmatprep.subr.mxu0 0.0
    %533 = vmatpush1.msra.mxu0 0.0
    %534 = vmatprep.subr.mxu0 0.0
    %535 = vmatpush1.msra.mxu0 0.0
    %536 = vmatprep.subr.mxu0 0.0
    %537 = vmatpush1.msra.mxu0 0.0
    %538 = vmatprep.subr.mxu0 0.0
    %539 = vmatpush1.msra.mxu0 0.0
    %540 = vmatprep.subr.mxu0 0.0
    %541 = vmatpush1.msra.mxu0 0.0
    %542 = vmatprep.subr.mxu0 0.0
    %543 = vmatpush1.msra.mxu0 0.0
    %544 = vmatprep.subr.mxu0 0.0
    %545 = vmatpush1.msra.mxu0 0.0
    %546 = vmatprep.subr.mxu0 0.0
    %547 = vmatpush1.msra.mxu0 0.0
    %548 = vmatprep.subr.mxu0 0.0
    %549 = vmatpush1.msra.mxu0 0.0
    %550 = vmatprep.subr.mxu0 0.0
    %551 = vmatpush1.msra.mxu0 0.0
    %552 = vmatprep.mubr.f32.mxu0 0.0
    %553 = vmatmul.mubr.f32.gmra.mrb[0].mxu0 %v483
    %v554 = vpop.f32.mrb[0].mxu0
    %v555 = vadd.f32 0.0, %v554
    %v556 = vpop.f32.mrb[0].mxu0
    %557 = vmatprep.mubr.f32.mxu0 0.0
    %558 = vmatmul.mubr.f32.gmra.mrb[0].mxu0 %v486
    %v559 = vpop.f32.mrb[0].mxu0
    %v560 = vadd.f32 0.0, %v559
    %v561 = vpop.f32.mrb[0].mxu0
    %562 = vdwg.mxu0
    %v563 = vadd.f32 %v157, %v555
    %v564 = vadd.f32 %v162, %v560
    %566 = vset.pattern.permute.xlu0 0
    %567 = vperm.xlu0 %566, %v189
    %v568 = vpop.permute.xlu0 %567
    %571 = vset.pattern.permute.xlu0 0
    %572 = vperm.xlu0 %571, %v190
    %v573 = vpop.permute.xlu0 %572
    %v575 = vadd.f32 %v563, %v568
    %v576 = vadd.f32 %v564, %v573
    %v577 = vsel %vm209, %v575, 0.0
    %578 = vadd.xlane.f32.xlu0 %v577
    %v579 = vpop.xlane.xlu0 %578
    %v580 = vsel %vm209, %v576, 0.0
    %581 = vadd.xlane.f32.xlu0 %v580
    %v582 = vpop.xlane.xlu0 %581
    %v583 = vmul.f32 %v579, %v216
    %v584 = vmul.f32 %v582, %v216
    %v585 = vadd.f32 %v583, %v584
    %v586 = vrot.slane %v585, 4
    %v587 = vadd.f32 %v585, %v586
    %v588 = vrot.slane %v587, 2
    %v589 = vadd.f32 %v587, %v588
    %v590 = vrot.slane %v589, 1
    %v591 = vadd.f32 %v589, %v590
    %v592 = vmul.f32 %v591, %v226
    %v593 = vsub.f32 %v575, %v592
    %v594 = vsub.f32 %v576, %v592
    %v595 = vmul.f32 %v593, %v593
    %v596 = vmul.f32 %v594, %v594
    %v597 = vsel %vm209, %v595, 0.0
    %598 = vadd.xlane.f32.xlu0 %v597
    %v599 = vpop.xlane.xlu0 %598
    %v600 = vsel %vm209, %v596, 0.0
    %601 = vadd.xlane.f32.xlu0 %v600
    %v602 = vpop.xlane.xlu0 %601
    %v603 = vmul.f32 %v599, %v216
    %v604 = vmul.f32 %v602, %v216
    %v605 = vadd.f32 %v603, %v604
    %v606 = vrot.slane %v605, 4
    %v607 = vadd.f32 %v605, %v606
    %v608 = vrot.slane %v607, 2
    %v609 = vadd.f32 %v607, %v608
    %v610 = vrot.slane %v609, 1
    %v611 = vadd.f32 %v609, %v610
    %v612 = vmul.f32 %v611, %v226
    %v613 = vadd.f32 %v612, 1e-05
    %v614 = vrsqrt.pop %v613
    %v615 = vmul.f32 %v593, %v614
    %v616 = vmul.f32 %v594, %v614
    %v617 = vmul.f32 %v615, %v191
    %v618 = vmul.f32 %v616, %v192
    %v619 = vadd.f32 %v617, %v193
    %v620 = vadd.f32 %v618, %v194
    %v621 = vsel %vm209, %v167, 0.0
    %622 = vadd.xlane.f32.xlu0 %v621
    %v623 = vpop.xlane.xlu0 %622
    %v624 = vsel %vm209, %v172, 0.0
    %625 = vadd.xlane.f32.xlu0 %v624
    %v626 = vpop.xlane.xlu0 %625
    %v627 = vmul.f32 %v623, %v216
    %v628 = vmul.f32 %v626, %v216
    %v629 = vadd.f32 %v627, %v628
    %v630 = vrot.slane %v629, 4
    %v631 = vadd.f32 %v629, %v630
    %v632 = vrot.slane %v631, 2
    %v633 = vadd.f32 %v631, %v632
    %v634 = vrot.slane %v633, 1
    %v635 = vadd.f32 %v633, %v634
    %v636 = vmul.f32 %v635, %v226
    %v637 = vsub.f32 %v167, %v636
    %v638 = vsub.f32 %v172, %v636
    %v639 = vmul.f32 %v637, %v637
    %v640 = vmul.f32 %v638, %v638
    %v641 = vsel %vm209, %v639, 0.0
    %642 = vadd.xlane.f32.xlu0 %v641
    %v643 = vpop.xlane.xlu0 %642
    %v644 = vsel %vm209, %v640, 0.0
    %645 = vadd.xlane.f32.xlu0 %v644
    %v646 = vpop.xlane.xlu0 %645
    %v647 = vmul.f32 %v643, %v216
    %v648 = vmul.f32 %v646, %v216
    %v649 = vadd.f32 %v647, %v648
    %v650 = vrot.slane %v649, 4
    %v651 = vadd.f32 %v649, %v650
    %v652 = vrot.slane %v651, 2
    %v653 = vadd.f32 %v651, %v652
    %v654 = vrot.slane %v653, 1
    %v655 = vadd.f32 %v653, %v654
    %v656 = vmul.f32 %v655, %v226
    %v657 = vadd.f32 %v656, 1e-05
    %v658 = vrsqrt.pop %v657
    %v659 = vmul.f32 %v637, %v658
    %v660 = vmul.f32 %v638, %v658
    %v661 = vmul.f32 %v659, %v175
    %v662 = vmul.f32 %v660, %v176
    %v663 = vadd.f32 %v661, %v177
    %v664 = vadd.f32 %v662, %v178
    %665 = vmatprep.subr.mxu0 0.0
    %666 = vmatpush1.msra.mxu0 %v663
    %667 = vmatprep.subr.mxu0 0.0
    %668 = vmatpush1.msra.mxu0 %v664
    %669 = vmatprep.subr.mxu0 0.0
    %670 = vmatpush1.msra.mxu0 0.0
    %671 = vmatprep.subr.mxu0 0.0
    %672 = vmatpush1.msra.mxu0 0.0
    %673 = vmatprep.subr.mxu0 0.0
    %674 = vmatpush1.msra.mxu0 0.0
    %675 = vmatprep.subr.mxu0 0.0
    %676 = vmatpush1.msra.mxu0 0.0
    %677 = vmatprep.subr.mxu0 0.0
    %678 = vmatpush1.msra.mxu0 0.0
    %679 = vmatprep.subr.mxu0 0.0
    %680 = vmatpush1.msra.mxu0 0.0
    %681 = vmatprep.subr.mxu0 0.0
    %682 = vmatpush1.msra.mxu0 0.0
    %683 = vmatprep.subr.mxu0 0.0
    %684 = vmatpush1.msra.mxu0 0.0
    %685 = vmatprep.subr.mxu0 0.0
    %686 = vmatpush1.msra.mxu0 0.0
    %687 = vmatprep.subr.mxu0 0.0
    %688 = vmatpush1.msra.mxu0 0.0
    %689 = vmatprep.subr.mxu0 0.0
    %690 = vmatpush1.msra.mxu0 0.0
    %691 = vmatprep.subr.mxu0 0.0
    %692 = vmatpush1.msra.mxu0 0.0
    %693 = vmatprep.subr.mxu0 0.0
    %694 = vmatpush1.msra.mxu0 0.0
    %695 = vmatprep.subr.mxu0 0.0
    %696 = vmatpush1.msra.mxu0 0.0
    %697 = vmatprep.subr.mxu0 0.0
    %698 = vmatpush1.msra.mxu0 0.0
    %699 = vmatprep.subr.mxu0 0.0
    %700 = vmatpush1.msra.mxu0 0.0
    %701 = vmatprep.subr.mxu0 0.0
    %702 = vmatpush1.msra.mxu0 0.0
    %703 = vmatprep.subr.mxu0 0.0
    %704 = vmatpush1.msra.mxu0 0.0
    %705 = vmatprep.subr.mxu0 0.0
    %706 = vmatpush1.msra.mxu0 0.0
    %707 = vmatprep.subr.mxu0 0.0
    %708 = vmatpush1.msra.mxu0 0.0
    %709 = vmatprep.subr.mxu0 0.0
    %710 = vmatpush1.msra.mxu0 0.0
    %711 = vmatprep.subr.mxu0 0.0
    %712 = vmatpush1.msra.mxu0 0.0
    %713 = vmatprep.subr.mxu0 0.0
    %714 = vmatpush1.msra.mxu0 0.0
    %715 = vmatprep.subr.mxu0 0.0
    %716 = vmatpush1.msra.mxu0 0.0
    %717 = vmatprep.subr.mxu0 0.0
    %718 = vmatpush1.msra.mxu0 0.0
    %719 = vmatprep.subr.mxu0 0.0
    %720 = vmatpush1.msra.mxu0 0.0
    %721 = vmatprep.subr.mxu0 0.0
    %722 = vmatpush1.msra.mxu0 0.0
    %723 = vmatprep.subr.mxu0 0.0
    %724 = vmatpush1.msra.mxu0 0.0
    %725 = vmatprep.subr.mxu0 0.0
    %726 = vmatpush1.msra.mxu0 0.0
    %727 = vmatprep.subr.mxu0 0.0
    %728 = vmatpush1.msra.mxu0 0.0
    %729 = vmatprep.mubr.f32.mxu0 0.0
    %730 = vmatmul.mubr.f32.gmra.mrb[0].mxu0 %v278
    %v731 = vpop.f32.mrb[0].mxu0
    %v732 = vadd.f32 %v259, %v731
    %v733 = vpop.f32.mrb[0].mxu0
    %734 = vmatprep.mubr.f32.mxu0 0.0
    %735 = vmatmul.mubr.f32.gmra.mrb[0].mxu0 %v281
    %v736 = vpop.f32.mrb[0].mxu0
    %v737 = vadd.f32 %v264, %v736
    %v738 = vpop.f32.mrb[0].mxu0
    %739 = vmatprep.mubr.f32.mxu0 0.0
    %740 = vmatmul.mubr.f32.gmra.mrb[0].mxu0 %v284
    %v741 = vpop.f32.mrb[0].mxu0
    %v742 = vadd.f32 %v269, %v741
    %v743 = vpop.f32.mrb[0].mxu0
    %744 = vmatprep.mubr.f32.mxu0 0.0
    %745 = vmatmul.mubr.f32.gmra.mrb[0].mxu0 %v287
    %v746 = vpop.f32.mrb[0].mxu0
    %v747 = vadd.f32 %v274, %v746
    %v748 = vpop.f32.mrb[0].mxu0
    %749 = vdwg.mxu0
    %v750 = vmul.f32 %v732, 0.5
    %v751 = vmul.f32 %v737, 0.5
    %v752 = vmul.f32 %v742, 0.5
    %v753 = vmul.f32 %v747, 0.5
    %v754 = vmul.f32 %v732, 0.70710677
    %v755 = vmul.f32 %v737, 0.70710677
    %v756 = vmul.f32 %v742, 0.70710677
    %v757 = vmul.f32 %v747, 0.70710677
    %v758 = vand.u32 2147483647, %v754
    %v759 = vand.u32 2147483647, %v755
    %v760 = vand.u32 2147483647, %v756
    %v761 = vand.u32 2147483647, %v757
    %v762 = vmul.f32 %v758, 0.3275911
    %v763 = vmul.f32 %v759, 0.3275911
    %v764 = vmul.f32 %v760, 0.3275911
    %v765 = vmul.f32 %v761, 0.3275911
    %v766 = vadd.f32 %v762, 1.0
    %v767 = vadd.f32 %v763, 1.0
    %v768 = vadd.f32 %v764, 1.0
    %v769 = vadd.f32 %v765, 1.0
    %v770 = vrcp.pop %v766
    %v771 = vmul.f32 1.0, %v770
    %v772 = vrcp.pop %v767
    %v773 = vmul.f32 1.0, %v772
    %v774 = vrcp.pop %v768
    %v775 = vmul.f32 1.0, %v774
    %v776 = vrcp.pop %v769
    %v777 = vmul.f32 1.0, %v776
    %v778 = vmul.f32 %v771, 1.0614054
    %v779 = vmul.f32 %v773, 1.0614054
    %v780 = vmul.f32 %v775, 1.0614054
    %v781 = vmul.f32 %v777, 1.0614054
    %v782 = vadd.f32 %v778, -1.4531521
    %v783 = vadd.f32 %v779, -1.4531521
    %v784 = vadd.f32 %v780, -1.4531521
    %v785 = vadd.f32 %v781, -1.4531521
    %v786 = vmul.f32 %v782, %v771
    %v787 = vmul.f32 %v783, %v773
    %v788 = vmul.f32 %v784, %v775
    %v789 = vmul.f32 %v785, %v777
    %v790 = vadd.f32 %v786, 1.4214138
    %v791 = vadd.f32 %v787, 1.4214138
    %v792 = vadd.f32 %v788, 1.4214138
    %v793 = vadd.f32 %v789, 1.4214138
    %v794 = vmul.f32 %v790, %v771
    %v795 = vmul.f32 %v791, %v773
    %v796 = vmul.f32 %v792, %v775
    %v797 = vmul.f32 %v793, %v777
    %v798 = vadd.f32 %v794, -0.28449672
    %v799 = vadd.f32 %v795, -0.28449672
    %v800 = vadd.f32 %v796, -0.28449672
    %v801 = vadd.f32 %v797, -0.28449672
    %v802 = vmul.f32 %v798, %v771
    %v803 = vmul.f32 %v799, %v773
    %v804 = vmul.f32 %v800, %v775
    %v805 = vmul.f32 %v801, %v777
    %v806 = vadd.f32 %v802, 0.2548296
    %v807 = vadd.f32 %v803, 0.2548296
    %v808 = vadd.f32 %v804, 0.2548296
    %v809 = vadd.f32 %v805, 0.2548296
    %v810 = vmul.f32 %v806, %v771
    %v811 = vmul.f32 %v807, %v773
    %v812 = vmul.f32 %v808, %v775
    %v813 = vmul.f32 %v809, %v777
    %v814 = vsub.f32 0.0, %v758
    %v815 = vsub.f32 0.0, %v759
    %v816 = vsub.f32 0.0, %v760
    %v817 = vsub.f32 0.0, %v761
    %v818 = vmul.f32 %v814, %v758
    %v819 = vmul.f32 %v815, %v759
    %v820 = vmul.f32 %v816, %v760
    %v821 = vmul.f32 %v817, %v761
    %v822 = vmul.f32 %v818, 1.442695
    %v823 = vpow.pop %v822
    %v824 = vmul.f32 %v819, 1.442695
    %v825 = vpow.pop %v824
    %v826 = vmul.f32 %v820, 1.442695
    %v827 = vpow.pop %v826
    %v828 = vmul.f32 %v821, 1.442695
    %v829 = vpow.pop %v828
    %v830 = vmul.f32 %v810, %v823
    %v831 = vmul.f32 %v811, %v825
    %v832 = vmul.f32 %v812, %v827
    %v833 = vmul.f32 %v813, %v829
    %v834 = vsub.f32 1.0, %v830
    %v835 = vsub.f32 1.0, %v831
    %v836 = vsub.f32 1.0, %v832
    %v837 = vsub.f32 1.0, %v833
    %vm838 = vcmp.ge.f32.partialorder %v754, 0.0
    %vm839 = vcmp.ge.f32.partialorder %v755, 0.0
    %vm840 = vcmp.ge.f32.partialorder %v756, 0.0
    %vm841 = vcmp.ge.f32.partialorder %v757, 0.0
    %v842 = vsub.f32 0.0, %v834
    %v843 = vsub.f32 0.0, %v835
    %v844 = vsub.f32 0.0, %v836
    %v845 = vsub.f32 0.0, %v837
    %v846 = vsel %vm838, %v834, %v842
    %v847 = vsel %vm839, %v835, %v843
    %v848 = vsel %vm840, %v836, %v844
    %v849 = vsel %vm841, %v837, %v845
    %v850 = vadd.f32 %v846, 1.0
    %v851 = vadd.f32 %v847, 1.0
    %v852 = vadd.f32 %v848, 1.0
    %v853 = vadd.f32 %v849, 1.0
    %v854 = vmul.f32 %v750, %v850
    %v855 = vmul.f32 %v751, %v851
    %v856 = vmul.f32 %v752, %v852
    %v857 = vmul.f32 %v753, %v853
    %858 = vmatprep.subr.mxu0 0.0
    %859 = vmatpush1.msra.mxu0 %v854
    %860 = vmatprep.subr.mxu0 0.0
    %861 = vmatpush1.msra.mxu0 %v855
    %862 = vmatprep.subr.mxu0 0.0
    %863 = vmatpush1.msra.mxu0 %v856
    %864 = vmatprep.subr.mxu0 0.0
    %865 = vmatpush1.msra.mxu0 %v857
    %866 = vmatprep.subr.mxu0 0.0
    %867 = vmatpush1.msra.mxu0 0.0
    %868 = vmatprep.subr.mxu0 0.0
    %869 = vmatpush1.msra.mxu0 0.0
    %870 = vmatprep.subr.mxu0 0.0
    %871 = vmatpush1.msra.mxu0 0.0
    %872 = vmatprep.subr.mxu0 0.0
    %873 = vmatpush1.msra.mxu0 0.0
    %874 = vmatprep.subr.mxu0 0.0
    %875 = vmatpush1.msra.mxu0 0.0
    %876 = vmatprep.subr.mxu0 0.0
    %877 = vmatpush1.msra.mxu0 0.0
    %878 = vmatprep.subr.mxu0 0.0
    %879 = vmatpush1.msra.mxu0 0.0
    %880 = vmatprep.subr.mxu0 0.0
    %881 = vmatpush1.msra.mxu0 0.0
    %882 = vmatprep.subr.mxu0 0.0
    %883 = vmatpush1.msra.mxu0 0.0
    %884 = vmatprep.subr.mxu0 0.0
    %885 = vmatpush1.msra.mxu0 0.0
    %886 = vmatprep.subr.mxu0 0.0
    %887 = vmatpush1.msra.mxu0 0.0
    %888 = vmatprep.subr.mxu0 0.0
    %889 = vmatpush1.msra.mxu0 0.0
    %890 = vmatprep.subr.mxu0 0.0
    %891 = vmatpush1.msra.mxu0 0.0
    %892 = vmatprep.subr.mxu0 0.0
    %893 = vmatpush1.msra.mxu0 0.0
    %894 = vmatprep.subr.mxu0 0.0
    %895 = vmatpush1.msra.mxu0 0.0
    %896 = vmatprep.subr.mxu0 0.0
    %897 = vmatpush1.msra.mxu0 0.0
    %898 = vmatprep.subr.mxu0 0.0
    %899 = vmatpush1.msra.mxu0 0.0
    %900 = vmatprep.subr.mxu0 0.0
    %901 = vmatpush1.msra.mxu0 0.0
    %902 = vmatprep.subr.mxu0 0.0
    %903 = vmatpush1.msra.mxu0 0.0
    %904 = vmatprep.subr.mxu0 0.0
    %905 = vmatpush1.msra.mxu0 0.0
    %906 = vmatprep.subr.mxu0 0.0
    %907 = vmatpush1.msra.mxu0 0.0
    %908 = vmatprep.subr.mxu0 0.0
    %909 = vmatpush1.msra.mxu0 0.0
    %910 = vmatprep.subr.mxu0 0.0
    %911 = vmatpush1.msra.mxu0 0.0
    %912 = vmatprep.subr.mxu0 0.0
    %913 = vmatpush1.msra.mxu0 0.0
    %914 = vmatprep.subr.mxu0 0.0
    %915 = vmatpush1.msra.mxu0 0.0
    %916 = vmatprep.subr.mxu0 0.0
    %917 = vmatpush1.msra.mxu0 0.0
    %918 = vmatprep.subr.mxu0 0.0
    %919 = vmatpush1.msra.mxu0 0.0
    %920 = vmatprep.subr.mxu0 0.0
    %921 = vmatpush1.msra.mxu0 0.0
    %922 = vmatprep.mubr.f32.mxu0 0.0
    %923 = vmatmul.mubr.f32.gmra.mrb[0].mxu0 %v483
    %v924 = vpop.f32.mrb[0].mxu0
    %v925 = vadd.f32 0.0, %v924
    %v926 = vpop.f32.mrb[0].mxu0
    %927 = vmatprep.mubr.f32.mxu0 0.0
    %928 = vmatmul.mubr.f32.gmra.mrb[0].mxu0 %v486
    %v929 = vpop.f32.mrb[0].mxu0
    %v930 = vadd.f32 0.0, %v929
    %v931 = vpop.f32.mrb[0].mxu0
    %932 = vdwg.mxu0
    %v933 = vadd.f32 %v167, %v925
    %v934 = vadd.f32 %v172, %v930
    %v935 = vadd.f32 %v933, %v568
    %v936 = vadd.f32 %v934, %v573
    %v937 = vsel %vm209, %v935, 0.0
    %938 = vadd.xlane.f32.xlu0 %v937
    %v939 = vpop.xlane.xlu0 %938
    %v940 = vsel %vm209, %v936, 0.0
    %941 = vadd.xlane.f32.xlu0 %v940
    %v942 = vpop.xlane.xlu0 %941
    %v943 = vmul.f32 %v939, %v216
    %v944 = vmul.f32 %v942, %v216
    %v945 = vadd.f32 %v943, %v944
    %v946 = vrot.slane %v945, 4
    %v947 = vadd.f32 %v945, %v946
    %v948 = vrot.slane %v947, 2
    %v949 = vadd.f32 %v947, %v948
    %v950 = vrot.slane %v949, 1
    %v951 = vadd.f32 %v949, %v950
    %v952 = vmul.f32 %v951, %v226
    %v953 = vsub.f32 %v935, %v952
    %v954 = vsub.f32 %v936, %v952
    %v955 = vmul.f32 %v953, %v953
    %v956 = vmul.f32 %v954, %v954
    %v957 = vsel %vm209, %v955, 0.0
    %958 = vadd.xlane.f32.xlu0 %v957
    %v959 = vpop.xlane.xlu0 %958
    %v960 = vsel %vm209, %v956, 0.0
    %961 = vadd.xlane.f32.xlu0 %v960
    %v962 = vpop.xlane.xlu0 %961
    %v963 = vmul.f32 %v959, %v216
    %v964 = vmul.f32 %v962, %v216
    %v965 = vadd.f32 %v963, %v964
    %v966 = vrot.slane %v965, 4
    %v967 = vadd.f32 %v965, %v966
    %v968 = vrot.slane %v967, 2
    %v969 = vadd.f32 %v967, %v968
    %v970 = vrot.slane %v969, 1
    %v971 = vadd.f32 %v969, %v970
    %v972 = vmul.f32 %v971, %v226
    %v973 = vadd.f32 %v972, 1e-05
    %v974 = vrsqrt.pop %v973
    %v975 = vmul.f32 %v953, %v974
    %v976 = vmul.f32 %v954, %v974
    %v977 = vmul.f32 %v975, %v191
    %v978 = vmul.f32 %v976, %v192
    %v979 = vadd.f32 %v977, %v193
    %v980 = vadd.f32 %v978, %v194
    %v982 = vlaneseq
    %v983 = vshrl.u32 %v982, 7
    %v984 = vsub.s32 0, %v983
    %v985 = vrot.slane %v199, %v984
    %v988 = vsel %vm209, %v619, 0
    %v991 = vsel %vm209, %v620, 0
    %v994 = vsel %vm209, %v979, 0
    %v997 = vsel %vm209, %v980, 0
    %999 = vmatprep.subr.mxu0 0.0
    %1000 = vmatpush1.msra.mxu0 %v195
    %1001 = vmatprep.subr.mxu0 0.0
    %1002 = vmatpush1.msra.mxu0 %v196
    %1003 = vmatprep.subr.mxu0 0.0
    %1004 = vmatpush1.msra.mxu0 %v197
    %1005 = vmatprep.subr.mxu0 0.0
    %1006 = vmatpush1.msra.mxu0 %v198
    %1007 = vmatprep.subr.mxu0 0.0
    %1008 = vmatpush1.msra.mxu0 0.0
    %1009 = vmatprep.subr.mxu0 0.0
    %1010 = vmatpush1.msra.mxu0 0.0
    %1011 = vmatprep.subr.mxu0 0.0
    %1012 = vmatpush1.msra.mxu0 0.0
    %1013 = vmatprep.subr.mxu0 0.0
    %1014 = vmatpush1.msra.mxu0 0.0
    %1015 = vmatprep.subr.mxu0 0.0
    %1016 = vmatpush1.msra.mxu0 0.0
    %1017 = vmatprep.subr.mxu0 0.0
    %1018 = vmatpush1.msra.mxu0 0.0
    %1019 = vmatprep.subr.mxu0 0.0
    %1020 = vmatpush1.msra.mxu0 0.0
    %1021 = vmatprep.subr.mxu0 0.0
    %1022 = vmatpush1.msra.mxu0 0.0
    %1023 = vmatprep.subr.mxu0 0.0
    %1024 = vmatpush1.msra.mxu0 0.0
    %1025 = vmatprep.subr.mxu0 0.0
    %1026 = vmatpush1.msra.mxu0 0.0
    %1027 = vmatprep.subr.mxu0 0.0
    %1028 = vmatpush1.msra.mxu0 0.0
    %1029 = vmatprep.subr.mxu0 0.0
    %1030 = vmatpush1.msra.mxu0 0.0
    %1031 = vmatprep.subr.mxu0 0.0
    %1032 = vmatpush1.msra.mxu0 0.0
    %1033 = vmatprep.subr.mxu0 0.0
    %1034 = vmatpush1.msra.mxu0 0.0
    %1035 = vmatprep.subr.mxu0 0.0
    %1036 = vmatpush1.msra.mxu0 0.0
    %1037 = vmatprep.subr.mxu0 0.0
    %1038 = vmatpush1.msra.mxu0 0.0
    %1039 = vmatprep.subr.mxu0 0.0
    %1040 = vmatpush1.msra.mxu0 0.0
    %1041 = vmatprep.subr.mxu0 0.0
    %1042 = vmatpush1.msra.mxu0 0.0
    %1043 = vmatprep.subr.mxu0 0.0
    %1044 = vmatpush1.msra.mxu0 0.0
    %1045 = vmatprep.subr.mxu0 0.0
    %1046 = vmatpush1.msra.mxu0 0.0
    %1047 = vmatprep.subr.mxu0 0.0
    %1048 = vmatpush1.msra.mxu0 0.0
    %1049 = vmatprep.subr.mxu0 0.0
    %1050 = vmatpush1.msra.mxu0 0.0
    %1051 = vmatprep.subr.mxu0 0.0
    %1052 = vmatpush1.msra.mxu0 0.0
    %1053 = vmatprep.subr.mxu0 0.0
    %1054 = vmatpush1.msra.mxu0 0.0
    %1055 = vmatprep.subr.mxu0 0.0
    %1056 = vmatpush1.msra.mxu0 0.0
    %1057 = vmatprep.subr.mxu0 0.0
    %1058 = vmatpush1.msra.mxu0 0.0
    %1059 = vmatprep.subr.mxu0 0.0
    %1060 = vmatpush1.msra.mxu0 0.0
    %1061 = vmatprep.subr.mxu0 0.0
    %1062 = vmatpush1.msra.mxu0 0.0
    %1063 = vmatprep.mubr.f32.mxu0 0.0
    %1064 = vmatmul.mubr.f32.gmra.mrb[0].mxu0 %v988
    %v1065 = vpop.f32.mrb[0].mxu0
    %v1066 = vadd.f32 %v985, %v1065
    %v1067 = vpop.f32.mrb[0].mxu0
    %1068 = vmatprep.mubr.f32.mxu0 0.0
    %1069 = vmatmul.mubr.f32.gmra.mrb[0].mxu0 %v991
    %v1070 = vpop.f32.mrb[0].mxu0
    %v1071 = vadd.f32 %v985, %v1070
    %v1072 = vpop.f32.mrb[0].mxu0
    %1073 = vmatprep.mubr.f32.mxu0 0.0
    %1074 = vmatmul.mubr.f32.gmra.mrb[0].mxu0 %v994
    %v1075 = vpop.f32.mrb[0].mxu0
    %v1076 = vadd.f32 %v985, %v1075
    %v1077 = vpop.f32.mrb[0].mxu0
    %1078 = vmatprep.mubr.f32.mxu0 0.0
    %1079 = vmatmul.mubr.f32.gmra.mrb[0].mxu0 %v997
    %v1080 = vpop.f32.mrb[0].mxu0
    %v1081 = vadd.f32 %v985, %v1080
    %v1082 = vpop.f32.mrb[0].mxu0
    %1083 = vdwg.mxu0
    %v1084 = vmul.f32 %v1066, 0.5
    %v1085 = vmul.f32 %v1071, 0.5
    %v1086 = vmul.f32 %v1076, 0.5
    %v1087 = vmul.f32 %v1081, 0.5
    %v1088 = vmul.f32 %v1066, 0.70710677
    %v1089 = vmul.f32 %v1071, 0.70710677
    %v1090 = vmul.f32 %v1076, 0.70710677
    %v1091 = vmul.f32 %v1081, 0.70710677
    %v1092 = vand.u32 2147483647, %v1088
    %v1093 = vand.u32 2147483647, %v1089
    %v1094 = vand.u32 2147483647, %v1090
    %v1095 = vand.u32 2147483647, %v1091
    %v1096 = vmul.f32 %v1092, 0.3275911
    %v1097 = vmul.f32 %v1093, 0.3275911
    %v1098 = vmul.f32 %v1094, 0.3275911
    %v1099 = vmul.f32 %v1095, 0.3275911
    %v1100 = vadd.f32 %v1096, 1.0
    %v1101 = vadd.f32 %v1097, 1.0
    %v1102 = vadd.f32 %v1098, 1.0
    %v1103 = vadd.f32 %v1099, 1.0
    %v1104 = vrcp.pop %v1100
    %v1105 = vmul.f32 1.0, %v1104
    %v1106 = vrcp.pop %v1101
    %v1107 = vmul.f32 1.0, %v1106
    %v1108 = vrcp.pop %v1102
    %v1109 = vmul.f32 1.0, %v1108
    %v1110 = vrcp.pop %v1103
    %v1111 = vmul.f32 1.0, %v1110
    %v1112 = vmul.f32 %v1105, 1.0614054
    %v1113 = vmul.f32 %v1107, 1.0614054
    %v1114 = vmul.f32 %v1109, 1.0614054
    %v1115 = vmul.f32 %v1111, 1.0614054
    %v1116 = vadd.f32 %v1112, -1.4531521
    %v1117 = vadd.f32 %v1113, -1.4531521
    %v1118 = vadd.f32 %v1114, -1.4531521
    %v1119 = vadd.f32 %v1115, -1.4531521
    %v1120 = vmul.f32 %v1116, %v1105
    %v1121 = vmul.f32 %v1117, %v1107
    %v1122 = vmul.f32 %v1118, %v1109
    %v1123 = vmul.f32 %v1119, %v1111
    %v1124 = vadd.f32 %v1120, 1.4214138
    %v1125 = vadd.f32 %v1121, 1.4214138
    %v1126 = vadd.f32 %v1122, 1.4214138
    %v1127 = vadd.f32 %v1123, 1.4214138
    %v1128 = vmul.f32 %v1124, %v1105
    %v1129 = vmul.f32 %v1125, %v1107
    %v1130 = vmul.f32 %v1126, %v1109
    %v1131 = vmul.f32 %v1127, %v1111
    %v1132 = vadd.f32 %v1128, -0.28449672
    %v1133 = vadd.f32 %v1129, -0.28449672
    %v1134 = vadd.f32 %v1130, -0.28449672
    %v1135 = vadd.f32 %v1131, -0.28449672
    %v1136 = vmul.f32 %v1132, %v1105
    %v1137 = vmul.f32 %v1133, %v1107
    %v1138 = vmul.f32 %v1134, %v1109
    %v1139 = vmul.f32 %v1135, %v1111
    %v1140 = vadd.f32 %v1136, 0.2548296
    %v1141 = vadd.f32 %v1137, 0.2548296
    %v1142 = vadd.f32 %v1138, 0.2548296
    %v1143 = vadd.f32 %v1139, 0.2548296
    %v1144 = vmul.f32 %v1140, %v1105
    %v1145 = vmul.f32 %v1141, %v1107
    %v1146 = vmul.f32 %v1142, %v1109
    %v1147 = vmul.f32 %v1143, %v1111
    %v1148 = vsub.f32 0.0, %v1092
    %v1149 = vsub.f32 0.0, %v1093
    %v1150 = vsub.f32 0.0, %v1094
    %v1151 = vsub.f32 0.0, %v1095
    %v1152 = vmul.f32 %v1148, %v1092
    %v1153 = vmul.f32 %v1149, %v1093
    %v1154 = vmul.f32 %v1150, %v1094
    %v1155 = vmul.f32 %v1151, %v1095
    %v1156 = vmul.f32 %v1152, 1.442695
    %v1157 = vpow.pop %v1156
    %v1158 = vmul.f32 %v1153, 1.442695
    %v1159 = vpow.pop %v1158
    %v1160 = vmul.f32 %v1154, 1.442695
    %v1161 = vpow.pop %v1160
    %v1162 = vmul.f32 %v1155, 1.442695
    %v1163 = vpow.pop %v1162
    %v1164 = vmul.f32 %v1144, %v1157
    %v1165 = vmul.f32 %v1145, %v1159
    %v1166 = vmul.f32 %v1146, %v1161
    %v1167 = vmul.f32 %v1147, %v1163
    %v1168 = vsub.f32 1.0, %v1164
    %v1169 = vsub.f32 1.0, %v1165
    %v1170 = vsub.f32 1.0, %v1166
    %v1171 = vsub.f32 1.0, %v1167
    %vm1172 = vcmp.ge.f32.partialorder %v1088, 0.0
    %vm1173 = vcmp.ge.f32.partialorder %v1089, 0.0
    %vm1174 = vcmp.ge.f32.partialorder %v1090, 0.0
    %vm1175 = vcmp.ge.f32.partialorder %v1091, 0.0
    %v1176 = vsub.f32 0.0, %v1168
    %v1177 = vsub.f32 0.0, %v1169
    %v1178 = vsub.f32 0.0, %v1170
    %v1179 = vsub.f32 0.0, %v1171
    %v1180 = vsel %vm1172, %v1168, %v1176
    %v1181 = vsel %vm1173, %v1169, %v1177
    %v1182 = vsel %vm1174, %v1170, %v1178
    %v1183 = vsel %vm1175, %v1171, %v1179
    %v1184 = vadd.f32 %v1180, 1.0
    %v1185 = vadd.f32 %v1181, 1.0
    %v1186 = vadd.f32 %v1182, 1.0
    %v1187 = vadd.f32 %v1183, 1.0
    %v1188 = vmul.f32 %v1084, %v1184
    %v1189 = vmul.f32 %v1085, %v1185
    %v1190 = vmul.f32 %v1086, %v1186
    %v1191 = vmul.f32 %v1087, %v1187
    %vm1192 = vcmask 523264
    %v1194 = vsel %vm1192, %v1188, 0
    %v1197 = vsel %vm1192, %v1189, 0
    %v1200 = vsel %vm1192, %v1190, 0
    %v1203 = vsel %vm1192, %v1191, 0
    %1205 = vmatprep.subr.mxu0 0.0
    %1206 = vmatpush1.msra.mxu0 %v200
    %1207 = vmatprep.subr.mxu0 0.0
    %1208 = vmatpush1.msra.mxu0 %v201
    %1209 = vmatprep.subr.mxu0 0.0
    %1210 = vmatpush1.msra.mxu0 %v202
    %1211 = vmatprep.subr.mxu0 0.0
    %1212 = vmatpush1.msra.mxu0 %v203
    %1213 = vmatprep.subr.mxu0 0.0
    %1214 = vmatpush1.msra.mxu0 %v204
    %1215 = vmatprep.subr.mxu0 0.0
    %1216 = vmatpush1.msra.mxu0 %v205
    %1217 = vmatprep.subr.mxu0 0.0
    %1218 = vmatpush1.msra.mxu0 %v206
    %1219 = vmatprep.subr.mxu0 0.0
    %1220 = vmatpush1.msra.mxu0 %v207
    %1221 = vmatprep.subr.mxu0 0.0
    %1222 = vmatpush1.msra.mxu0 0.0
    %1223 = vmatprep.subr.mxu0 0.0
    %1224 = vmatpush1.msra.mxu0 0.0
    %1225 = vmatprep.subr.mxu0 0.0
    %1226 = vmatpush1.msra.mxu0 0.0
    %1227 = vmatprep.subr.mxu0 0.0
    %1228 = vmatpush1.msra.mxu0 0.0
    %1229 = vmatprep.subr.mxu0 0.0
    %1230 = vmatpush1.msra.mxu0 0.0
    %1231 = vmatprep.subr.mxu0 0.0
    %1232 = vmatpush1.msra.mxu0 0.0
    %1233 = vmatprep.subr.mxu0 0.0
    %1234 = vmatpush1.msra.mxu0 0.0
    %1235 = vmatprep.subr.mxu0 0.0
    %1236 = vmatpush1.msra.mxu0 0.0
    %1237 = vmatprep.subr.mxu0 0.0
    %1238 = vmatpush1.msra.mxu0 0.0
    %1239 = vmatprep.subr.mxu0 0.0
    %1240 = vmatpush1.msra.mxu0 0.0
    %1241 = vmatprep.subr.mxu0 0.0
    %1242 = vmatpush1.msra.mxu0 0.0
    %1243 = vmatprep.subr.mxu0 0.0
    %1244 = vmatpush1.msra.mxu0 0.0
    %1245 = vmatprep.subr.mxu0 0.0
    %1246 = vmatpush1.msra.mxu0 0.0
    %1247 = vmatprep.subr.mxu0 0.0
    %1248 = vmatpush1.msra.mxu0 0.0
    %1249 = vmatprep.subr.mxu0 0.0
    %1250 = vmatpush1.msra.mxu0 0.0
    %1251 = vmatprep.subr.mxu0 0.0
    %1252 = vmatpush1.msra.mxu0 0.0
    %1253 = vmatprep.subr.mxu0 0.0
    %1254 = vmatpush1.msra.mxu0 0.0
    %1255 = vmatprep.subr.mxu0 0.0
    %1256 = vmatpush1.msra.mxu0 0.0
    %1257 = vmatprep.subr.mxu0 0.0
    %1258 = vmatpush1.msra.mxu0 0.0
    %1259 = vmatprep.subr.mxu0 0.0
    %1260 = vmatpush1.msra.mxu0 0.0
    %1261 = vmatprep.subr.mxu0 0.0
    %1262 = vmatpush1.msra.mxu0 0.0
    %1263 = vmatprep.subr.mxu0 0.0
    %1264 = vmatpush1.msra.mxu0 0.0
    %1265 = vmatprep.subr.mxu0 0.0
    %1266 = vmatpush1.msra.mxu0 0.0
    %1267 = vmatprep.subr.mxu0 0.0
    %1268 = vmatpush1.msra.mxu0 0.0
    %1269 = vmatprep.mubr.f32.mxu0 0.0
    %1270 = vmatmul.mubr.f32.gmra.mrb[0].mxu0 %v1194
    %v1271 = vpop.f32.mrb[0].mxu0
    %v1272 = vadd.f32 0.0, %v1271
    %v1273 = vpop.f32.mrb[0].mxu0
    %1274 = vmatprep.mubr.f32.mxu0 0.0
    %1275 = vmatmul.mubr.f32.gmra.mrb[0].mxu0 %v1197
    %v1276 = vpop.f32.mrb[0].mxu0
    %v1277 = vadd.f32 0.0, %v1276
    %v1278 = vpop.f32.mrb[0].mxu0
    %1279 = vmatprep.mubr.f32.mxu0 0.0
    %1280 = vmatmul.mubr.f32.gmra.mrb[0].mxu0 %v1200
    %v1281 = vpop.f32.mrb[0].mxu0
    %v1282 = vadd.f32 0.0, %v1281
    %v1283 = vpop.f32.mrb[0].mxu0
    %1284 = vmatprep.mubr.f32.mxu0 0.0
    %1285 = vmatmul.mubr.f32.gmra.mrb[0].mxu0 %v1203
    %v1286 = vpop.f32.mrb[0].mxu0
    %v1287 = vadd.f32 0.0, %v1286
    %v1288 = vpop.f32.mrb[0].mxu0
    %1289 = vdwg.mxu0
    %v1290 = vadd.f32 %v575, %v1272
    %v1291 = vadd.f32 %v576, %v1277
    %v1292 = vadd.f32 %v935, %v1282
    %v1293 = vadd.f32 %v936, %v1287
    %v1295 = vlaneseq
    %v1296 = vshrl.u32 %v1295, 7
    %v1297 = vsub.s32 0, %v1296
    %v1298 = vrot.slane %v208, %v1297
    %v1300 = vadd.f32 %v1290, %v1298
    %v1301 = vadd.f32 %v1291, %v1298
    %v1302 = vadd.f32 %v1292, %v1298
    %v1303 = vadd.f32 %v1293, %v1298
    %s1304 = scalar_lea.vmem %s3, 16
    %v1305 = vld [vmem:[%s1304] sm:$0xff]
    %v1306 = vld [vmem:[%s1304 + $0x8] sm:$0xff]
    %s1307 = scalar_lea.vmem %s4, 16
    %v1308 = vld [vmem:[%s1307] sm:$0xff]
    %v1309 = vld [vmem:[%s1307 + $0x8] sm:$0xff]
    %s1310 = scalar_lea.vmem %s5, 32
    %v1311 = vld [vmem:[%s1310] sm:$0xff]
    %v1312 = vld [vmem:[%s1310 + $0x8] sm:$0xff]
    %v1313 = vld [vmem:[%s1310 + $0x10] sm:$0xff]
    %v1314 = vld [vmem:[%s1310 + $0x18] sm:$0xff]
    %s1315 = scalar_lea.vmem %s6, 32
    %v1316 = vld [vmem:[%s1315] sm:$0xff]
    %v1317 = vld [vmem:[%s1315 + $0x8] sm:$0xff]
    %v1318 = vld [vmem:[%s1315 + $0x10] sm:$0xff]
    %v1319 = vld [vmem:[%s1315 + $0x18] sm:$0xff]
    %s1320 = scalar_lea.vmem %s7, 16
    %v1321 = vld [vmem:[%s1320] sm:$0xff]
    %v1322 = vld [vmem:[%s1320 + $0x8] sm:$0xff]
    %s1323 = scalar_lea.vmem %s8, 16
    %v1324 = vld [vmem:[%s1323] sm:$0xff]
    %v1325 = vld [vmem:[%s1323 + $0x8] sm:$0xff]
    %s1326 = scalar_lea.vmem %s9, 16
    %v1327 = vld [vmem:[%s1326] sm:$0xff]
    %v1328 = vld [vmem:[%s1326 + $0x8] sm:$0xff]
    %s1329 = scalar_lea.vmem %s10, 16
    %v1330 = vld [vmem:[%s1329] sm:$0xff]
    %v1331 = vld [vmem:[%s1329 + $0x8] sm:$0xff]
    %s1332 = scalar_lea.vmem %s11, 32
    %v1333 = vld [vmem:[%s1332] sm:$0xff]
    %v1334 = vld [vmem:[%s1332 + $0x8] sm:$0xff]
    %v1335 = vld [vmem:[%s1332 + $0x10] sm:$0xff]
    %v1336 = vld [vmem:[%s1332 + $0x18] sm:$0xff]
    %s1337 = scalar_lea.vmem %s12, 1
    %v1338 = vld [vmem:[%s1337] sm:$0x1]
    %s1339 = scalar_lea.vmem %s13, 64
    %v1340 = vld [vmem:[%s1339] sm:$0xff]
    %v1341 = vld [vmem:[%s1339 + $0x8] sm:$0xff]
    %v1342 = vld [vmem:[%s1339 + $0x10] sm:$0xff]
    %v1343 = vld [vmem:[%s1339 + $0x18] sm:$0xff]
    %v1344 = vld [vmem:[%s1339 + $0x20] sm:$0xff]
    %v1345 = vld [vmem:[%s1339 + $0x28] sm:$0xff]
    %v1346 = vld [vmem:[%s1339 + $0x30] sm:$0xff]
    %v1347 = vld [vmem:[%s1339 + $0x38] sm:$0xff]
    %s1348 = scalar_lea.vmem %s14, 1
    %v1349 = vld [vmem:[%s1348] sm:$0x1]
    %v1350 = vsel %vm209, %v1300, 0.0
    %1351 = vadd.xlane.f32.xlu0 %v1350
    %v1352 = vpop.xlane.xlu0 %1351
    %v1353 = vsel %vm209, %v1301, 0.0
    %1354 = vadd.xlane.f32.xlu0 %v1353
    %v1355 = vpop.xlane.xlu0 %1354
    %v1356 = vmul.f32 %v1352, %v216
    %v1357 = vmul.f32 %v1355, %v216
    %v1358 = vadd.f32 %v1356, %v1357
    %v1359 = vrot.slane %v1358, 4
    %v1360 = vadd.f32 %v1358, %v1359
    %v1361 = vrot.slane %v1360, 2
    %v1362 = vadd.f32 %v1360, %v1361
    %v1363 = vrot.slane %v1362, 1
    %v1364 = vadd.f32 %v1362, %v1363
    %v1365 = vmul.f32 %v1364, %v226
    %v1366 = vsub.f32 %v1300, %v1365
    %v1367 = vsub.f32 %v1301, %v1365
    %v1368 = vmul.f32 %v1366, %v1366
    %v1369 = vmul.f32 %v1367, %v1367
    %v1370 = vsel %vm209, %v1368, 0.0
    %1371 = vadd.xlane.f32.xlu0 %v1370
    %v1372 = vpop.xlane.xlu0 %1371
    %v1373 = vsel %vm209, %v1369, 0.0
    %1374 = vadd.xlane.f32.xlu0 %v1373
    %v1375 = vpop.xlane.xlu0 %1374
    %v1376 = vmul.f32 %v1372, %v216
    %v1377 = vmul.f32 %v1375, %v216
    %v1378 = vadd.f32 %v1376, %v1377
    %v1379 = vrot.slane %v1378, 4
    %v1380 = vadd.f32 %v1378, %v1379
    %v1381 = vrot.slane %v1380, 2
    %v1382 = vadd.f32 %v1380, %v1381
    %v1383 = vrot.slane %v1382, 1
    %v1384 = vadd.f32 %v1382, %v1383
    %v1385 = vmul.f32 %v1384, %v226
    %v1386 = vadd.f32 %v1385, 1e-05
    %v1387 = vrsqrt.pop %v1386
    %v1388 = vmul.f32 %v1366, %v1387
    %v1389 = vmul.f32 %v1367, %v1387
    %v1390 = vmul.f32 %v1388, %v1305
    %v1391 = vmul.f32 %v1389, %v1306
    %v1392 = vadd.f32 %v1390, %v1308
    %v1393 = vadd.f32 %v1391, %v1309
    %1395 = vset.pattern.permute.xlu0 0
    %1396 = vperm.xlu0 %1395, %v1316
    %v1397 = vpop.permute.xlu0 %1396
    %1400 = vset.pattern.permute.xlu0 0
    %1401 = vperm.xlu0 %1400, %v1317
    %v1402 = vpop.permute.xlu0 %1401
    %1405 = vset.pattern.permute.xlu0 0
    %1406 = vperm.xlu0 %1405, %v1318
    %v1407 = vpop.permute.xlu0 %1406
    %1410 = vset.pattern.permute.xlu0 0
    %1411 = vperm.xlu0 %1410, %v1319
    %v1412 = vpop.permute.xlu0 %1411
    %v1415 = vsel %vm276, %v1311, 0
    %v1418 = vsel %vm276, %v1312, 0
    %v1421 = vsel %vm276, %v1313, 0
    %v1424 = vsel %vm276, %v1314, 0
    %1426 = vmatprep.subr.mxu0 0.0
    %1427 = vmatpush1.msra.mxu0 %v1392
    %1428 = vmatprep.subr.mxu0 0.0
    %1429 = vmatpush1.msra.mxu0 %v1393
    %1430 = vmatprep.subr.mxu0 0.0
    %1431 = vmatpush1.msra.mxu0 0.0
    %1432 = vmatprep.subr.mxu0 0.0
    %1433 = vmatpush1.msra.mxu0 0.0
    %1434 = vmatprep.subr.mxu0 0.0
    %1435 = vmatpush1.msra.mxu0 0.0
    %1436 = vmatprep.subr.mxu0 0.0
    %1437 = vmatpush1.msra.mxu0 0.0
    %1438 = vmatprep.subr.mxu0 0.0
    %1439 = vmatpush1.msra.mxu0 0.0
    %1440 = vmatprep.subr.mxu0 0.0
    %1441 = vmatpush1.msra.mxu0 0.0
    %1442 = vmatprep.subr.mxu0 0.0
    %1443 = vmatpush1.msra.mxu0 0.0
    %1444 = vmatprep.subr.mxu0 0.0
    %1445 = vmatpush1.msra.mxu0 0.0
    %1446 = vmatprep.subr.mxu0 0.0
    %1447 = vmatpush1.msra.mxu0 0.0
    %1448 = vmatprep.subr.mxu0 0.0
    %1449 = vmatpush1.msra.mxu0 0.0
    %1450 = vmatprep.subr.mxu0 0.0
    %1451 = vmatpush1.msra.mxu0 0.0
    %1452 = vmatprep.subr.mxu0 0.0
    %1453 = vmatpush1.msra.mxu0 0.0
    %1454 = vmatprep.subr.mxu0 0.0
    %1455 = vmatpush1.msra.mxu0 0.0
    %1456 = vmatprep.subr.mxu0 0.0
    %1457 = vmatpush1.msra.mxu0 0.0
    %1458 = vmatprep.subr.mxu0 0.0
    %1459 = vmatpush1.msra.mxu0 0.0
    %1460 = vmatprep.subr.mxu0 0.0
    %1461 = vmatpush1.msra.mxu0 0.0
    %1462 = vmatprep.subr.mxu0 0.0
    %1463 = vmatpush1.msra.mxu0 0.0
    %1464 = vmatprep.subr.mxu0 0.0
    %1465 = vmatpush1.msra.mxu0 0.0
    %1466 = vmatprep.subr.mxu0 0.0
    %1467 = vmatpush1.msra.mxu0 0.0
    %1468 = vmatprep.subr.mxu0 0.0
    %1469 = vmatpush1.msra.mxu0 0.0
    %1470 = vmatprep.subr.mxu0 0.0
    %1471 = vmatpush1.msra.mxu0 0.0
    %1472 = vmatprep.subr.mxu0 0.0
    %1473 = vmatpush1.msra.mxu0 0.0
    %1474 = vmatprep.subr.mxu0 0.0
    %1475 = vmatpush1.msra.mxu0 0.0
    %1476 = vmatprep.subr.mxu0 0.0
    %1477 = vmatpush1.msra.mxu0 0.0
    %1478 = vmatprep.subr.mxu0 0.0
    %1479 = vmatpush1.msra.mxu0 0.0
    %1480 = vmatprep.subr.mxu0 0.0
    %1481 = vmatpush1.msra.mxu0 0.0
    %1482 = vmatprep.subr.mxu0 0.0
    %1483 = vmatpush1.msra.mxu0 0.0
    %1484 = vmatprep.subr.mxu0 0.0
    %1485 = vmatpush1.msra.mxu0 0.0
    %1486 = vmatprep.subr.mxu0 0.0
    %1487 = vmatpush1.msra.mxu0 0.0
    %1488 = vmatprep.subr.mxu0 0.0
    %1489 = vmatpush1.msra.mxu0 0.0
    %1490 = vmatprep.mubr.f32.mxu0 0.0
    %1491 = vmatmul.mubr.f32.gmra.mrb[0].mxu0 %v1415
    %v1492 = vpop.f32.mrb[0].mxu0
    %v1493 = vadd.f32 %v1397, %v1492
    %v1494 = vpop.f32.mrb[0].mxu0
    %1495 = vmatprep.mubr.f32.mxu0 0.0
    %1496 = vmatmul.mubr.f32.gmra.mrb[0].mxu0 %v1418
    %v1497 = vpop.f32.mrb[0].mxu0
    %v1498 = vadd.f32 %v1402, %v1497
    %v1499 = vpop.f32.mrb[0].mxu0
    %1500 = vmatprep.mubr.f32.mxu0 0.0
    %1501 = vmatmul.mubr.f32.gmra.mrb[0].mxu0 %v1421
    %v1502 = vpop.f32.mrb[0].mxu0
    %v1503 = vadd.f32 %v1407, %v1502
    %v1504 = vpop.f32.mrb[0].mxu0
    %1505 = vmatprep.mubr.f32.mxu0 0.0
    %1506 = vmatmul.mubr.f32.gmra.mrb[0].mxu0 %v1424
    %v1507 = vpop.f32.mrb[0].mxu0
    %v1508 = vadd.f32 %v1412, %v1507
    %v1509 = vpop.f32.mrb[0].mxu0
    %1510 = vdwg.mxu0
    %v1511 = vmul.f32 %v1493, 0.5
    %v1512 = vmul.f32 %v1498, 0.5
    %v1513 = vmul.f32 %v1503, 0.5
    %v1514 = vmul.f32 %v1508, 0.5
    %v1515 = vmul.f32 %v1493, 0.70710677
    %v1516 = vmul.f32 %v1498, 0.70710677
    %v1517 = vmul.f32 %v1503, 0.70710677
    %v1518 = vmul.f32 %v1508, 0.70710677
    %v1519 = vand.u32 2147483647, %v1515
    %v1520 = vand.u32 2147483647, %v1516
    %v1521 = vand.u32 2147483647, %v1517
    %v1522 = vand.u32 2147483647, %v1518
    %v1523 = vmul.f32 %v1519, 0.3275911
    %v1524 = vmul.f32 %v1520, 0.3275911
    %v1525 = vmul.f32 %v1521, 0.3275911
    %v1526 = vmul.f32 %v1522, 0.3275911
    %v1527 = vadd.f32 %v1523, 1.0
    %v1528 = vadd.f32 %v1524, 1.0
    %v1529 = vadd.f32 %v1525, 1.0
    %v1530 = vadd.f32 %v1526, 1.0
    %v1531 = vrcp.pop %v1527
    %v1532 = vmul.f32 1.0, %v1531
    %v1533 = vrcp.pop %v1528
    %v1534 = vmul.f32 1.0, %v1533
    %v1535 = vrcp.pop %v1529
    %v1536 = vmul.f32 1.0, %v1535
    %v1537 = vrcp.pop %v1530
    %v1538 = vmul.f32 1.0, %v1537
    %v1539 = vmul.f32 %v1532, 1.0614054
    %v1540 = vmul.f32 %v1534, 1.0614054
    %v1541 = vmul.f32 %v1536, 1.0614054
    %v1542 = vmul.f32 %v1538, 1.0614054
    %v1543 = vadd.f32 %v1539, -1.4531521
    %v1544 = vadd.f32 %v1540, -1.4531521
    %v1545 = vadd.f32 %v1541, -1.4531521
    %v1546 = vadd.f32 %v1542, -1.4531521
    %v1547 = vmul.f32 %v1543, %v1532
    %v1548 = vmul.f32 %v1544, %v1534
    %v1549 = vmul.f32 %v1545, %v1536
    %v1550 = vmul.f32 %v1546, %v1538
    %v1551 = vadd.f32 %v1547, 1.4214138
    %v1552 = vadd.f32 %v1548, 1.4214138
    %v1553 = vadd.f32 %v1549, 1.4214138
    %v1554 = vadd.f32 %v1550, 1.4214138
    %v1555 = vmul.f32 %v1551, %v1532
    %v1556 = vmul.f32 %v1552, %v1534
    %v1557 = vmul.f32 %v1553, %v1536
    %v1558 = vmul.f32 %v1554, %v1538
    %v1559 = vadd.f32 %v1555, -0.28449672
    %v1560 = vadd.f32 %v1556, -0.28449672
    %v1561 = vadd.f32 %v1557, -0.28449672
    %v1562 = vadd.f32 %v1558, -0.28449672
    %v1563 = vmul.f32 %v1559, %v1532
    %v1564 = vmul.f32 %v1560, %v1534
    %v1565 = vmul.f32 %v1561, %v1536
    %v1566 = vmul.f32 %v1562, %v1538
    %v1567 = vadd.f32 %v1563, 0.2548296
    %v1568 = vadd.f32 %v1564, 0.2548296
    %v1569 = vadd.f32 %v1565, 0.2548296
    %v1570 = vadd.f32 %v1566, 0.2548296
    %v1571 = vmul.f32 %v1567, %v1532
    %v1572 = vmul.f32 %v1568, %v1534
    %v1573 = vmul.f32 %v1569, %v1536
    %v1574 = vmul.f32 %v1570, %v1538
    %v1575 = vsub.f32 0.0, %v1519
    %v1576 = vsub.f32 0.0, %v1520
    %v1577 = vsub.f32 0.0, %v1521
    %v1578 = vsub.f32 0.0, %v1522
    %v1579 = vmul.f32 %v1575, %v1519
    %v1580 = vmul.f32 %v1576, %v1520
    %v1581 = vmul.f32 %v1577, %v1521
    %v1582 = vmul.f32 %v1578, %v1522
    %v1583 = vmul.f32 %v1579, 1.442695
    %v1584 = vpow.pop %v1583
    %v1585 = vmul.f32 %v1580, 1.442695
    %v1586 = vpow.pop %v1585
    %v1587 = vmul.f32 %v1581, 1.442695
    %v1588 = vpow.pop %v1587
    %v1589 = vmul.f32 %v1582, 1.442695
    %v1590 = vpow.pop %v1589
    %v1591 = vmul.f32 %v1571, %v1584
    %v1592 = vmul.f32 %v1572, %v1586
    %v1593 = vmul.f32 %v1573, %v1588
    %v1594 = vmul.f32 %v1574, %v1590
    %v1595 = vsub.f32 1.0, %v1591
    %v1596 = vsub.f32 1.0, %v1592
    %v1597 = vsub.f32 1.0, %v1593
    %v1598 = vsub.f32 1.0, %v1594
    %vm1599 = vcmp.ge.f32.partialorder %v1515, 0.0
    %vm1600 = vcmp.ge.f32.partialorder %v1516, 0.0
    %vm1601 = vcmp.ge.f32.partialorder %v1517, 0.0
    %vm1602 = vcmp.ge.f32.partialorder %v1518, 0.0
    %v1603 = vsub.f32 0.0, %v1595
    %v1604 = vsub.f32 0.0, %v1596
    %v1605 = vsub.f32 0.0, %v1597
    %v1606 = vsub.f32 0.0, %v1598
    %v1607 = vsel %vm1599, %v1595, %v1603
    %v1608 = vsel %vm1600, %v1596, %v1604
    %v1609 = vsel %vm1601, %v1597, %v1605
    %v1610 = vsel %vm1602, %v1598, %v1606
    %v1611 = vadd.f32 %v1607, 1.0
    %v1612 = vadd.f32 %v1608, 1.0
    %v1613 = vadd.f32 %v1609, 1.0
    %v1614 = vadd.f32 %v1610, 1.0
    %v1615 = vmul.f32 %v1511, %v1611
    %v1616 = vmul.f32 %v1512, %v1612
    %v1617 = vmul.f32 %v1513, %v1613
    %v1618 = vmul.f32 %v1514, %v1614
    %v1620 = vsel %vm209, %v1321, 0
    %v1623 = vsel %vm209, %v1322, 0
    %1625 = vmatprep.subr.mxu0 0.0
    %1626 = vmatpush1.msra.mxu0 %v1615
    %1627 = vmatprep.subr.mxu0 0.0
    %1628 = vmatpush1.msra.mxu0 %v1616
    %1629 = vmatprep.subr.mxu0 0.0
    %1630 = vmatpush1.msra.mxu0 %v1617
    %1631 = vmatprep.subr.mxu0 0.0
    %1632 = vmatpush1.msra.mxu0 %v1618
    %1633 = vmatprep.subr.mxu0 0.0
    %1634 = vmatpush1.msra.mxu0 0.0
    %1635 = vmatprep.subr.mxu0 0.0
    %1636 = vmatpush1.msra.mxu0 0.0
    %1637 = vmatprep.subr.mxu0 0.0
    %1638 = vmatpush1.msra.mxu0 0.0
    %1639 = vmatprep.subr.mxu0 0.0
    %1640 = vmatpush1.msra.mxu0 0.0
    %1641 = vmatprep.subr.mxu0 0.0
    %1642 = vmatpush1.msra.mxu0 0.0
    %1643 = vmatprep.subr.mxu0 0.0
    %1644 = vmatpush1.msra.mxu0 0.0
    %1645 = vmatprep.subr.mxu0 0.0
    %1646 = vmatpush1.msra.mxu0 0.0
    %1647 = vmatprep.subr.mxu0 0.0
    %1648 = vmatpush1.msra.mxu0 0.0
    %1649 = vmatprep.subr.mxu0 0.0
    %1650 = vmatpush1.msra.mxu0 0.0
    %1651 = vmatprep.subr.mxu0 0.0
    %1652 = vmatpush1.msra.mxu0 0.0
    %1653 = vmatprep.subr.mxu0 0.0
    %1654 = vmatpush1.msra.mxu0 0.0
    %1655 = vmatprep.subr.mxu0 0.0
    %1656 = vmatpush1.msra.mxu0 0.0
    %1657 = vmatprep.subr.mxu0 0.0
    %1658 = vmatpush1.msra.mxu0 0.0
    %1659 = vmatprep.subr.mxu0 0.0
    %1660 = vmatpush1.msra.mxu0 0.0
    %1661 = vmatprep.subr.mxu0 0.0
    %1662 = vmatpush1.msra.mxu0 0.0
    %1663 = vmatprep.subr.mxu0 0.0
    %1664 = vmatpush1.msra.mxu0 0.0
    %1665 = vmatprep.subr.mxu0 0.0
    %1666 = vmatpush1.msra.mxu0 0.0
    %1667 = vmatprep.subr.mxu0 0.0
    %1668 = vmatpush1.msra.mxu0 0.0
    %1669 = vmatprep.subr.mxu0 0.0
    %1670 = vmatpush1.msra.mxu0 0.0
    %1671 = vmatprep.subr.mxu0 0.0
    %1672 = vmatpush1.msra.mxu0 0.0
    %1673 = vmatprep.subr.mxu0 0.0
    %1674 = vmatpush1.msra.mxu0 0.0
    %1675 = vmatprep.subr.mxu0 0.0
    %1676 = vmatpush1.msra.mxu0 0.0
    %1677 = vmatprep.subr.mxu0 0.0
    %1678 = vmatpush1.msra.mxu0 0.0
    %1679 = vmatprep.subr.mxu0 0.0
    %1680 = vmatpush1.msra.mxu0 0.0
    %1681 = vmatprep.subr.mxu0 0.0
    %1682 = vmatpush1.msra.mxu0 0.0
    %1683 = vmatprep.subr.mxu0 0.0
    %1684 = vmatpush1.msra.mxu0 0.0
    %1685 = vmatprep.subr.mxu0 0.0
    %1686 = vmatpush1.msra.mxu0 0.0
    %1687 = vmatprep.subr.mxu0 0.0
    %1688 = vmatpush1.msra.mxu0 0.0
    %1689 = vmatprep.mubr.f32.mxu0 0.0
    %1690 = vmatmul.mubr.f32.gmra.mrb[0].mxu0 %v1620
    %v1691 = vpop.f32.mrb[0].mxu0
    %v1692 = vadd.f32 0.0, %v1691
    %v1693 = vpop.f32.mrb[0].mxu0
    %1694 = vmatprep.mubr.f32.mxu0 0.0
    %1695 = vmatmul.mubr.f32.gmra.mrb[0].mxu0 %v1623
    %v1696 = vpop.f32.mrb[0].mxu0
    %v1697 = vadd.f32 0.0, %v1696
    %v1698 = vpop.f32.mrb[0].mxu0
    %1699 = vdwg.mxu0
    %v1700 = vadd.f32 %v1300, %v1692
    %v1701 = vadd.f32 %v1301, %v1697
    %1703 = vset.pattern.permute.xlu0 0
    %1704 = vperm.xlu0 %1703, %v1324
    %v1705 = vpop.permute.xlu0 %1704
    %1708 = vset.pattern.permute.xlu0 0
    %1709 = vperm.xlu0 %1708, %v1325
    %v1710 = vpop.permute.xlu0 %1709
    %v1712 = vadd.f32 %v1700, %v1705
    %v1713 = vadd.f32 %v1701, %v1710
    %v1714 = vsel %vm209, %v1712, 0.0
    %1715 = vadd.xlane.f32.xlu0 %v1714
    %v1716 = vpop.xlane.xlu0 %1715
    %v1717 = vsel %vm209, %v1713, 0.0
    %1718 = vadd.xlane.f32.xlu0 %v1717
    %v1719 = vpop.xlane.xlu0 %1718
    %v1720 = vmul.f32 %v1716, %v216
    %v1721 = vmul.f32 %v1719, %v216
    %v1722 = vadd.f32 %v1720, %v1721
    %v1723 = vrot.slane %v1722, 4
    %v1724 = vadd.f32 %v1722, %v1723
    %v1725 = vrot.slane %v1724, 2
    %v1726 = vadd.f32 %v1724, %v1725
    %v1727 = vrot.slane %v1726, 1
    %v1728 = vadd.f32 %v1726, %v1727
    %v1729 = vmul.f32 %v1728, %v226
    %v1730 = vsub.f32 %v1712, %v1729
    %v1731 = vsub.f32 %v1713, %v1729
    %v1732 = vmul.f32 %v1730, %v1730
    %v1733 = vmul.f32 %v1731, %v1731
    %v1734 = vsel %vm209, %v1732, 0.0
    %1735 = vadd.xlane.f32.xlu0 %v1734
    %v1736 = vpop.xlane.xlu0 %1735
    %v1737 = vsel %vm209, %v1733, 0.0
    %1738 = vadd.xlane.f32.xlu0 %v1737
    %v1739 = vpop.xlane.xlu0 %1738
    %v1740 = vmul.f32 %v1736, %v216
    %v1741 = vmul.f32 %v1739, %v216
    %v1742 = vadd.f32 %v1740, %v1741
    %v1743 = vrot.slane %v1742, 4
    %v1744 = vadd.f32 %v1742, %v1743
    %v1745 = vrot.slane %v1744, 2
    %v1746 = vadd.f32 %v1744, %v1745
    %v1747 = vrot.slane %v1746, 1
    %v1748 = vadd.f32 %v1746, %v1747
    %v1749 = vmul.f32 %v1748, %v226
    %v1750 = vadd.f32 %v1749, 1e-05
    %v1751 = vrsqrt.pop %v1750
    %v1752 = vmul.f32 %v1730, %v1751
    %v1753 = vmul.f32 %v1731, %v1751
    %v1754 = vmul.f32 %v1752, %v1327
    %v1755 = vmul.f32 %v1753, %v1328
    %v1756 = vadd.f32 %v1754, %v1330
    %v1757 = vadd.f32 %v1755, %v1331
    %v1758 = vsel %vm209, %v1302, 0.0
    %1759 = vadd.xlane.f32.xlu0 %v1758
    %v1760 = vpop.xlane.xlu0 %1759
    %v1761 = vsel %vm209, %v1303, 0.0
    %1762 = vadd.xlane.f32.xlu0 %v1761
    %v1763 = vpop.xlane.xlu0 %1762
    %v1764 = vmul.f32 %v1760, %v216
    %v1765 = vmul.f32 %v1763, %v216
    %v1766 = vadd.f32 %v1764, %v1765
    %v1767 = vrot.slane %v1766, 4
    %v1768 = vadd.f32 %v1766, %v1767
    %v1769 = vrot.slane %v1768, 2
    %v1770 = vadd.f32 %v1768, %v1769
    %v1771 = vrot.slane %v1770, 1
    %v1772 = vadd.f32 %v1770, %v1771
    %v1773 = vmul.f32 %v1772, %v226
    %v1774 = vsub.f32 %v1302, %v1773
    %v1775 = vsub.f32 %v1303, %v1773
    %v1776 = vmul.f32 %v1774, %v1774
    %v1777 = vmul.f32 %v1775, %v1775
    %v1778 = vsel %vm209, %v1776, 0.0
    %1779 = vadd.xlane.f32.xlu0 %v1778
    %v1780 = vpop.xlane.xlu0 %1779
    %v1781 = vsel %vm209, %v1777, 0.0
    %1782 = vadd.xlane.f32.xlu0 %v1781
    %v1783 = vpop.xlane.xlu0 %1782
    %v1784 = vmul.f32 %v1780, %v216
    %v1785 = vmul.f32 %v1783, %v216
    %v1786 = vadd.f32 %v1784, %v1785
    %v1787 = vrot.slane %v1786, 4
    %v1788 = vadd.f32 %v1786, %v1787
    %v1789 = vrot.slane %v1788, 2
    %v1790 = vadd.f32 %v1788, %v1789
    %v1791 = vrot.slane %v1790, 1
    %v1792 = vadd.f32 %v1790, %v1791
    %v1793 = vmul.f32 %v1792, %v226
    %v1794 = vadd.f32 %v1793, 1e-05
    %v1795 = vrsqrt.pop %v1794
    %v1796 = vmul.f32 %v1774, %v1795
    %v1797 = vmul.f32 %v1775, %v1795
    %v1798 = vmul.f32 %v1796, %v1305
    %v1799 = vmul.f32 %v1797, %v1306
    %v1800 = vadd.f32 %v1798, %v1308
    %v1801 = vadd.f32 %v1799, %v1309
    %1802 = vmatprep.subr.mxu0 0.0
    %1803 = vmatpush1.msra.mxu0 %v1800
    %1804 = vmatprep.subr.mxu0 0.0
    %1805 = vmatpush1.msra.mxu0 %v1801
    %1806 = vmatprep.subr.mxu0 0.0
    %1807 = vmatpush1.msra.mxu0 0.0
    %1808 = vmatprep.subr.mxu0 0.0
    %1809 = vmatpush1.msra.mxu0 0.0
    %1810 = vmatprep.subr.mxu0 0.0
    %1811 = vmatpush1.msra.mxu0 0.0
    %1812 = vmatprep.subr.mxu0 0.0
    %1813 = vmatpush1.msra.mxu0 0.0
    %1814 = vmatprep.subr.mxu0 0.0
    %1815 = vmatpush1.msra.mxu0 0.0
    %1816 = vmatprep.subr.mxu0 0.0
    %1817 = vmatpush1.msra.mxu0 0.0
    %1818 = vmatprep.subr.mxu0 0.0
    %1819 = vmatpush1.msra.mxu0 0.0
    %1820 = vmatprep.subr.mxu0 0.0
    %1821 = vmatpush1.msra.mxu0 0.0
    %1822 = vmatprep.subr.mxu0 0.0
    %1823 = vmatpush1.msra.mxu0 0.0
    %1824 = vmatprep.subr.mxu0 0.0
    %1825 = vmatpush1.msra.mxu0 0.0
    %1826 = vmatprep.subr.mxu0 0.0
    %1827 = vmatpush1.msra.mxu0 0.0
    %1828 = vmatprep.subr.mxu0 0.0
    %1829 = vmatpush1.msra.mxu0 0.0
    %1830 = vmatprep.subr.mxu0 0.0
    %1831 = vmatpush1.msra.mxu0 0.0
    %1832 = vmatprep.subr.mxu0 0.0
    %1833 = vmatpush1.msra.mxu0 0.0
    %1834 = vmatprep.subr.mxu0 0.0
    %1835 = vmatpush1.msra.mxu0 0.0
    %1836 = vmatprep.subr.mxu0 0.0
    %1837 = vmatpush1.msra.mxu0 0.0
    %1838 = vmatprep.subr.mxu0 0.0
    %1839 = vmatpush1.msra.mxu0 0.0
    %1840 = vmatprep.subr.mxu0 0.0
    %1841 = vmatpush1.msra.mxu0 0.0
    %1842 = vmatprep.subr.mxu0 0.0
    %1843 = vmatpush1.msra.mxu0 0.0
    %1844 = vmatprep.subr.mxu0 0.0
    %1845 = vmatpush1.msra.mxu0 0.0
    %1846 = vmatprep.subr.mxu0 0.0
    %1847 = vmatpush1.msra.mxu0 0.0
    %1848 = vmatprep.subr.mxu0 0.0
    %1849 = vmatpush1.msra.mxu0 0.0
    %1850 = vmatprep.subr.mxu0 0.0
    %1851 = vmatpush1.msra.mxu0 0.0
    %1852 = vmatprep.subr.mxu0 0.0
    %1853 = vmatpush1.msra.mxu0 0.0
    %1854 = vmatprep.subr.mxu0 0.0
    %1855 = vmatpush1.msra.mxu0 0.0
    %1856 = vmatprep.subr.mxu0 0.0
    %1857 = vmatpush1.msra.mxu0 0.0
    %1858 = vmatprep.subr.mxu0 0.0
    %1859 = vmatpush1.msra.mxu0 0.0
    %1860 = vmatprep.subr.mxu0 0.0
    %1861 = vmatpush1.msra.mxu0 0.0
    %1862 = vmatprep.subr.mxu0 0.0
    %1863 = vmatpush1.msra.mxu0 0.0
    %1864 = vmatprep.subr.mxu0 0.0
    %1865 = vmatpush1.msra.mxu0 0.0
    %1866 = vmatprep.mubr.f32.mxu0 0.0
    %1867 = vmatmul.mubr.f32.gmra.mrb[0].mxu0 %v1415
    %v1868 = vpop.f32.mrb[0].mxu0
    %v1869 = vadd.f32 %v1397, %v1868
    %v1870 = vpop.f32.mrb[0].mxu0
    %1871 = vmatprep.mubr.f32.mxu0 0.0
    %1872 = vmatmul.mubr.f32.gmra.mrb[0].mxu0 %v1418
    %v1873 = vpop.f32.mrb[0].mxu0
    %v1874 = vadd.f32 %v1402, %v1873
    %v1875 = vpop.f32.mrb[0].mxu0
    %1876 = vmatprep.mubr.f32.mxu0 0.0
    %1877 = vmatmul.mubr.f32.gmra.mrb[0].mxu0 %v1421
    %v1878 = vpop.f32.mrb[0].mxu0
    %v1879 = vadd.f32 %v1407, %v1878
    %v1880 = vpop.f32.mrb[0].mxu0
    %1881 = vmatprep.mubr.f32.mxu0 0.0
    %1882 = vmatmul.mubr.f32.gmra.mrb[0].mxu0 %v1424
    %v1883 = vpop.f32.mrb[0].mxu0
    %v1884 = vadd.f32 %v1412, %v1883
    %v1885 = vpop.f32.mrb[0].mxu0
    %1886 = vdwg.mxu0
    %v1887 = vmul.f32 %v1869, 0.5
    %v1888 = vmul.f32 %v1874, 0.5
    %v1889 = vmul.f32 %v1879, 0.5
    %v1890 = vmul.f32 %v1884, 0.5
    %v1891 = vmul.f32 %v1869, 0.70710677
    %v1892 = vmul.f32 %v1874, 0.70710677
    %v1893 = vmul.f32 %v1879, 0.70710677
    %v1894 = vmul.f32 %v1884, 0.70710677
    %v1895 = vand.u32 2147483647, %v1891
    %v1896 = vand.u32 2147483647, %v1892
    %v1897 = vand.u32 2147483647, %v1893
    %v1898 = vand.u32 2147483647, %v1894
    %v1899 = vmul.f32 %v1895, 0.3275911
    %v1900 = vmul.f32 %v1896, 0.3275911
    %v1901 = vmul.f32 %v1897, 0.3275911
    %v1902 = vmul.f32 %v1898, 0.3275911
    %v1903 = vadd.f32 %v1899, 1.0
    %v1904 = vadd.f32 %v1900, 1.0
    %v1905 = vadd.f32 %v1901, 1.0
    %v1906 = vadd.f32 %v1902, 1.0
    %v1907 = vrcp.pop %v1903
    %v1908 = vmul.f32 1.0, %v1907
    %v1909 = vrcp.pop %v1904
    %v1910 = vmul.f32 1.0, %v1909
    %v1911 = vrcp.pop %v1905
    %v1912 = vmul.f32 1.0, %v1911
    %v1913 = vrcp.pop %v1906
    %v1914 = vmul.f32 1.0, %v1913
    %v1915 = vmul.f32 %v1908, 1.0614054
    %v1916 = vmul.f32 %v1910, 1.0614054
    %v1917 = vmul.f32 %v1912, 1.0614054
    %v1918 = vmul.f32 %v1914, 1.0614054
    %v1919 = vadd.f32 %v1915, -1.4531521
    %v1920 = vadd.f32 %v1916, -1.4531521
    %v1921 = vadd.f32 %v1917, -1.4531521
    %v1922 = vadd.f32 %v1918, -1.4531521
    %v1923 = vmul.f32 %v1919, %v1908
    %v1924 = vmul.f32 %v1920, %v1910
    %v1925 = vmul.f32 %v1921, %v1912
    %v1926 = vmul.f32 %v1922, %v1914
    %v1927 = vadd.f32 %v1923, 1.4214138
    %v1928 = vadd.f32 %v1924, 1.4214138
    %v1929 = vadd.f32 %v1925, 1.4214138
    %v1930 = vadd.f32 %v1926, 1.4214138
    %v1931 = vmul.f32 %v1927, %v1908
    %v1932 = vmul.f32 %v1928, %v1910
    %v1933 = vmul.f32 %v1929, %v1912
    %v1934 = vmul.f32 %v1930, %v1914
    %v1935 = vadd.f32 %v1931, -0.28449672
    %v1936 = vadd.f32 %v1932, -0.28449672
    %v1937 = vadd.f32 %v1933, -0.28449672
    %v1938 = vadd.f32 %v1934, -0.28449672
    %v1939 = vmul.f32 %v1935, %v1908
    %v1940 = vmul.f32 %v1936, %v1910
    %v1941 = vmul.f32 %v1937, %v1912
    %v1942 = vmul.f32 %v1938, %v1914
    %v1943 = vadd.f32 %v1939, 0.2548296
    %v1944 = vadd.f32 %v1940, 0.2548296
    %v1945 = vadd.f32 %v1941, 0.2548296
    %v1946 = vadd.f32 %v1942, 0.2548296
    %v1947 = vmul.f32 %v1943, %v1908
    %v1948 = vmul.f32 %v1944, %v1910
    %v1949 = vmul.f32 %v1945, %v1912
    %v1950 = vmul.f32 %v1946, %v1914
    %v1951 = vsub.f32 0.0, %v1895
    %v1952 = vsub.f32 0.0, %v1896
    %v1953 = vsub.f32 0.0, %v1897
    %v1954 = vsub.f32 0.0, %v1898
    %v1955 = vmul.f32 %v1951, %v1895
    %v1956 = vmul.f32 %v1952, %v1896
    %v1957 = vmul.f32 %v1953, %v1897
    %v1958 = vmul.f32 %v1954, %v1898
    %v1959 = vmul.f32 %v1955, 1.442695
    %v1960 = vpow.pop %v1959
    %v1961 = vmul.f32 %v1956, 1.442695
    %v1962 = vpow.pop %v1961
    %v1963 = vmul.f32 %v1957, 1.442695
    %v1964 = vpow.pop %v1963
    %v1965 = vmul.f32 %v1958, 1.442695
    %v1966 = vpow.pop %v1965
    %v1967 = vmul.f32 %v1947, %v1960
    %v1968 = vmul.f32 %v1948, %v1962
    %v1969 = vmul.f32 %v1949, %v1964
    %v1970 = vmul.f32 %v1950, %v1966
    %v1971 = vsub.f32 1.0, %v1967
    %v1972 = vsub.f32 1.0, %v1968
    %v1973 = vsub.f32 1.0, %v1969
    %v1974 = vsub.f32 1.0, %v1970
    %vm1975 = vcmp.ge.f32.partialorder %v1891, 0.0
    %vm1976 = vcmp.ge.f32.partialorder %v1892, 0.0
    %vm1977 = vcmp.ge.f32.partialorder %v1893, 0.0
    %vm1978 = vcmp.ge.f32.partialorder %v1894, 0.0
    %v1979 = vsub.f32 0.0, %v1971
    %v1980 = vsub.f32 0.0, %v1972
    %v1981 = vsub.f32 0.0, %v1973
    %v1982 = vsub.f32 0.0, %v1974
    %v1983 = vsel %vm1975, %v1971, %v1979
    %v1984 = vsel %vm1976, %v1972, %v1980
    %v1985 = vsel %vm1977, %v1973, %v1981
    %v1986 = vsel %vm1978, %v1974, %v1982
    %v1987 = vadd.f32 %v1983, 1.0
    %v1988 = vadd.f32 %v1984, 1.0
    %v1989 = vadd.f32 %v1985, 1.0
    %v1990 = vadd.f32 %v1986, 1.0
    %v1991 = vmul.f32 %v1887, %v1987
    %v1992 = vmul.f32 %v1888, %v1988
    %v1993 = vmul.f32 %v1889, %v1989
    %v1994 = vmul.f32 %v1890, %v1990
    %1995 = vmatprep.subr.mxu0 0.0
    %1996 = vmatpush1.msra.mxu0 %v1991
    %1997 = vmatprep.subr.mxu0 0.0
    %1998 = vmatpush1.msra.mxu0 %v1992
    %1999 = vmatprep.subr.mxu0 0.0
    %2000 = vmatpush1.msra.mxu0 %v1993
    %2001 = vmatprep.subr.mxu0 0.0
    %2002 = vmatpush1.msra.mxu0 %v1994
    %2003 = vmatprep.subr.mxu0 0.0
    %2004 = vmatpush1.msra.mxu0 0.0
    %2005 = vmatprep.subr.mxu0 0.0
    %2006 = vmatpush1.msra.mxu0 0.0
    %2007 = vmatprep.subr.mxu0 0.0
    %2008 = vmatpush1.msra.mxu0 0.0
    %2009 = vmatprep.subr.mxu0 0.0
    %2010 = vmatpush1.msra.mxu0 0.0
    %2011 = vmatprep.subr.mxu0 0.0
    %2012 = vmatpush1.msra.mxu0 0.0
    %2013 = vmatprep.subr.mxu0 0.0
    %2014 = vmatpush1.msra.mxu0 0.0
    %2015 = vmatprep.subr.mxu0 0.0
    %2016 = vmatpush1.msra.mxu0 0.0
    %2017 = vmatprep.subr.mxu0 0.0
    %2018 = vmatpush1.msra.mxu0 0.0
    %2019 = vmatprep.subr.mxu0 0.0
    %2020 = vmatpush1.msra.mxu0 0.0
    %2021 = vmatprep.subr.mxu0 0.0
    %2022 = vmatpush1.msra.mxu0 0.0
    %2023 = vmatprep.subr.mxu0 0.0
    %2024 = vmatpush1.msra.mxu0 0.0
    %2025 = vmatprep.subr.mxu0 0.0
    %2026 = vmatpush1.msra.mxu0 0.0
    %2027 = vmatprep.subr.mxu0 0.0
    %2028 = vmatpush1.msra.mxu0 0.0
    %2029 = vmatprep.subr.mxu0 0.0
    %2030 = vmatpush1.msra.mxu0 0.0
    %2031 = vmatprep.subr.mxu0 0.0
    %2032 = vmatpush1.msra.mxu0 0.0
    %2033 = vmatprep.subr.mxu0 0.0
    %2034 = vmatpush1.msra.mxu0 0.0
    %2035 = vmatprep.subr.mxu0 0.0
    %2036 = vmatpush1.msra.mxu0 0.0
    %2037 = vmatprep.subr.mxu0 0.0
    %2038 = vmatpush1.msra.mxu0 0.0
    %2039 = vmatprep.subr.mxu0 0.0
    %2040 = vmatpush1.msra.mxu0 0.0
    %2041 = vmatprep.subr.mxu0 0.0
    %2042 = vmatpush1.msra.mxu0 0.0
    %2043 = vmatprep.subr.mxu0 0.0
    %2044 = vmatpush1.msra.mxu0 0.0
    %2045 = vmatprep.subr.mxu0 0.0
    %2046 = vmatpush1.msra.mxu0 0.0
    %2047 = vmatprep.subr.mxu0 0.0
    %2048 = vmatpush1.msra.mxu0 0.0
    %2049 = vmatprep.subr.mxu0 0.0
    %2050 = vmatpush1.msra.mxu0 0.0
    %2051 = vmatprep.subr.mxu0 0.0
    %2052 = vmatpush1.msra.mxu0 0.0
    %2053 = vmatprep.subr.mxu0 0.0
    %2054 = vmatpush1.msra.mxu0 0.0
    %2055 = vmatprep.subr.mxu0 0.0
    %2056 = vmatpush1.msra.mxu0 0.0
    %2057 = vmatprep.subr.mxu0 0.0
    %2058 = vmatpush1.msra.mxu0 0.0
    %2059 = vmatprep.mubr.f32.mxu0 0.0
    %2060 = vmatmul.mubr.f32.gmra.mrb[0].mxu0 %v1620
    %v2061 = vpop.f32.mrb[0].mxu0
    %v2062 = vadd.f32 0.0, %v2061
    %v2063 = vpop.f32.mrb[0].mxu0
    %2064 = vmatprep.mubr.f32.mxu0 0.0
    %2065 = vmatmul.mubr.f32.gmra.mrb[0].mxu0 %v1623
    %v2066 = vpop.f32.mrb[0].mxu0
    %v2067 = vadd.f32 0.0, %v2066
    %v2068 = vpop.f32.mrb[0].mxu0
    %2069 = vdwg.mxu0
    %v2070 = vadd.f32 %v1302, %v2062
    %v2071 = vadd.f32 %v1303, %v2067
    %v2072 = vadd.f32 %v2070, %v1705
    %v2073 = vadd.f32 %v2071, %v1710
    %v2074 = vsel %vm209, %v2072, 0.0
    %2075 = vadd.xlane.f32.xlu0 %v2074
    %v2076 = vpop.xlane.xlu0 %2075
    %v2077 = vsel %vm209, %v2073, 0.0
    %2078 = vadd.xlane.f32.xlu0 %v2077
    %v2079 = vpop.xlane.xlu0 %2078
    %v2080 = vmul.f32 %v2076, %v216
    %v2081 = vmul.f32 %v2079, %v216
    %v2082 = vadd.f32 %v2080, %v2081
    %v2083 = vrot.slane %v2082, 4
    %v2084 = vadd.f32 %v2082, %v2083
    %v2085 = vrot.slane %v2084, 2
    %v2086 = vadd.f32 %v2084, %v2085
    %v2087 = vrot.slane %v2086, 1
    %v2088 = vadd.f32 %v2086, %v2087
    %v2089 = vmul.f32 %v2088, %v226
    %v2090 = vsub.f32 %v2072, %v2089
    %v2091 = vsub.f32 %v2073, %v2089
    %v2092 = vmul.f32 %v2090, %v2090
    %v2093 = vmul.f32 %v2091, %v2091
    %v2094 = vsel %vm209, %v2092, 0.0
    %2095 = vadd.xlane.f32.xlu0 %v2094
    %v2096 = vpop.xlane.xlu0 %2095
    %v2097 = vsel %vm209, %v2093, 0.0
    %2098 = vadd.xlane.f32.xlu0 %v2097
    %v2099 = vpop.xlane.xlu0 %2098
    %v2100 = vmul.f32 %v2096, %v216
    %v2101 = vmul.f32 %v2099, %v216
    %v2102 = vadd.f32 %v2100, %v2101
    %v2103 = vrot.slane %v2102, 4
    %v2104 = vadd.f32 %v2102, %v2103
    %v2105 = vrot.slane %v2104, 2
    %v2106 = vadd.f32 %v2104, %v2105
    %v2107 = vrot.slane %v2106, 1
    %v2108 = vadd.f32 %v2106, %v2107
    %v2109 = vmul.f32 %v2108, %v226
    %v2110 = vadd.f32 %v2109, 1e-05
    %v2111 = vrsqrt.pop %v2110
    %v2112 = vmul.f32 %v2090, %v2111
    %v2113 = vmul.f32 %v2091, %v2111
    %v2114 = vmul.f32 %v2112, %v1327
    %v2115 = vmul.f32 %v2113, %v1328
    %v2116 = vadd.f32 %v2114, %v1330
    %v2117 = vadd.f32 %v2115, %v1331
    %v2119 = vlaneseq
    %v2120 = vshrl.u32 %v2119, 7
    %v2121 = vsub.s32 0, %v2120
    %v2122 = vrot.slane %v1338, %v2121
    %v2125 = vsel %vm209, %v1756, 0
    %v2128 = vsel %vm209, %v1757, 0
    %v2131 = vsel %vm209, %v2116, 0
    %v2134 = vsel %vm209, %v2117, 0
    %2136 = vmatprep.subr.mxu0 0.0
    %2137 = vmatpush1.msra.mxu0 %v1333
    %2138 = vmatprep.subr.mxu0 0.0
    %2139 = vmatpush1.msra.mxu0 %v1334
    %2140 = vmatprep.subr.mxu0 0.0
    %2141 = vmatpush1.msra.mxu0 %v1335
    %2142 = vmatprep.subr.mxu0 0.0
    %2143 = vmatpush1.msra.mxu0 %v1336
    %2144 = vmatprep.subr.mxu0 0.0
    %2145 = vmatpush1.msra.mxu0 0.0
    %2146 = vmatprep.subr.mxu0 0.0
    %2147 = vmatpush1.msra.mxu0 0.0
    %2148 = vmatprep.subr.mxu0 0.0
    %2149 = vmatpush1.msra.mxu0 0.0
    %2150 = vmatprep.subr.mxu0 0.0
    %2151 = vmatpush1.msra.mxu0 0.0
    %2152 = vmatprep.subr.mxu0 0.0
    %2153 = vmatpush1.msra.mxu0 0.0
    %2154 = vmatprep.subr.mxu0 0.0
    %2155 = vmatpush1.msra.mxu0 0.0
    %2156 = vmatprep.subr.mxu0 0.0
    %2157 = vmatpush1.msra.mxu0 0.0
    %2158 = vmatprep.subr.mxu0 0.0
    %2159 = vmatpush1.msra.mxu0 0.0
    %2160 = vmatprep.subr.mxu0 0.0
    %2161 = vmatpush1.msra.mxu0 0.0
    %2162 = vmatprep.subr.mxu0 0.0
    %2163 = vmatpush1.msra.mxu0 0.0
    %2164 = vmatprep.subr.mxu0 0.0
    %2165 = vmatpush1.msra.mxu0 0.0
    %2166 = vmatprep.subr.mxu0 0.0
    %2167 = vmatpush1.msra.mxu0 0.0
    %2168 = vmatprep.subr.mxu0 0.0
    %2169 = vmatpush1.msra.mxu0 0.0
    %2170 = vmatprep.subr.mxu0 0.0
    %2171 = vmatpush1.msra.mxu0 0.0
    %2172 = vmatprep.subr.mxu0 0.0
    %2173 = vmatpush1.msra.mxu0 0.0
    %2174 = vmatprep.subr.mxu0 0.0
    %2175 = vmatpush1.msra.mxu0 0.0
    %2176 = vmatprep.subr.mxu0 0.0
    %2177 = vmatpush1.msra.mxu0 0.0
    %2178 = vmatprep.subr.mxu0 0.0
    %2179 = vmatpush1.msra.mxu0 0.0
    %2180 = vmatprep.subr.mxu0 0.0
    %2181 = vmatpush1.msra.mxu0 0.0
    %2182 = vmatprep.subr.mxu0 0.0
    %2183 = vmatpush1.msra.mxu0 0.0
    %2184 = vmatprep.subr.mxu0 0.0
    %2185 = vmatpush1.msra.mxu0 0.0
    %2186 = vmatprep.subr.mxu0 0.0
    %2187 = vmatpush1.msra.mxu0 0.0
    %2188 = vmatprep.subr.mxu0 0.0
    %2189 = vmatpush1.msra.mxu0 0.0
    %2190 = vmatprep.subr.mxu0 0.0
    %2191 = vmatpush1.msra.mxu0 0.0
    %2192 = vmatprep.subr.mxu0 0.0
    %2193 = vmatpush1.msra.mxu0 0.0
    %2194 = vmatprep.subr.mxu0 0.0
    %2195 = vmatpush1.msra.mxu0 0.0
    %2196 = vmatprep.subr.mxu0 0.0
    %2197 = vmatpush1.msra.mxu0 0.0
    %2198 = vmatprep.subr.mxu0 0.0
    %2199 = vmatpush1.msra.mxu0 0.0
    %2200 = vmatprep.mubr.f32.mxu0 0.0
    %2201 = vmatmul.mubr.f32.gmra.mrb[0].mxu0 %v2125
    %v2202 = vpop.f32.mrb[0].mxu0
    %v2203 = vadd.f32 %v2122, %v2202
    %v2204 = vpop.f32.mrb[0].mxu0
    %2205 = vmatprep.mubr.f32.mxu0 0.0
    %2206 = vmatmul.mubr.f32.gmra.mrb[0].mxu0 %v2128
    %v2207 = vpop.f32.mrb[0].mxu0
    %v2208 = vadd.f32 %v2122, %v2207
    %v2209 = vpop.f32.mrb[0].mxu0
    %2210 = vmatprep.mubr.f32.mxu0 0.0
    %2211 = vmatmul.mubr.f32.gmra.mrb[0].mxu0 %v2131
    %v2212 = vpop.f32.mrb[0].mxu0
    %v2213 = vadd.f32 %v2122, %v2212
    %v2214 = vpop.f32.mrb[0].mxu0
    %2215 = vmatprep.mubr.f32.mxu0 0.0
    %2216 = vmatmul.mubr.f32.gmra.mrb[0].mxu0 %v2134
    %v2217 = vpop.f32.mrb[0].mxu0
    %v2218 = vadd.f32 %v2122, %v2217
    %v2219 = vpop.f32.mrb[0].mxu0
    %2220 = vdwg.mxu0
    %v2221 = vmul.f32 %v2203, 0.5
    %v2222 = vmul.f32 %v2208, 0.5
    %v2223 = vmul.f32 %v2213, 0.5
    %v2224 = vmul.f32 %v2218, 0.5
    %v2225 = vmul.f32 %v2203, 0.70710677
    %v2226 = vmul.f32 %v2208, 0.70710677
    %v2227 = vmul.f32 %v2213, 0.70710677
    %v2228 = vmul.f32 %v2218, 0.70710677
    %v2229 = vand.u32 2147483647, %v2225
    %v2230 = vand.u32 2147483647, %v2226
    %v2231 = vand.u32 2147483647, %v2227
    %v2232 = vand.u32 2147483647, %v2228
    %v2233 = vmul.f32 %v2229, 0.3275911
    %v2234 = vmul.f32 %v2230, 0.3275911
    %v2235 = vmul.f32 %v2231, 0.3275911
    %v2236 = vmul.f32 %v2232, 0.3275911
    %v2237 = vadd.f32 %v2233, 1.0
    %v2238 = vadd.f32 %v2234, 1.0
    %v2239 = vadd.f32 %v2235, 1.0
    %v2240 = vadd.f32 %v2236, 1.0
    %v2241 = vrcp.pop %v2237
    %v2242 = vmul.f32 1.0, %v2241
    %v2243 = vrcp.pop %v2238
    %v2244 = vmul.f32 1.0, %v2243
    %v2245 = vrcp.pop %v2239
    %v2246 = vmul.f32 1.0, %v2245
    %v2247 = vrcp.pop %v2240
    %v2248 = vmul.f32 1.0, %v2247
    %v2249 = vmul.f32 %v2242, 1.0614054
    %v2250 = vmul.f32 %v2244, 1.0614054
    %v2251 = vmul.f32 %v2246, 1.0614054
    %v2252 = vmul.f32 %v2248, 1.0614054
    %v2253 = vadd.f32 %v2249, -1.4531521
    %v2254 = vadd.f32 %v2250, -1.4531521
    %v2255 = vadd.f32 %v2251, -1.4531521
    %v2256 = vadd.f32 %v2252, -1.4531521
    %v2257 = vmul.f32 %v2253, %v2242
    %v2258 = vmul.f32 %v2254, %v2244
    %v2259 = vmul.f32 %v2255, %v2246
    %v2260 = vmul.f32 %v2256, %v2248
    %v2261 = vadd.f32 %v2257, 1.4214138
    %v2262 = vadd.f32 %v2258, 1.4214138
    %v2263 = vadd.f32 %v2259, 1.4214138
    %v2264 = vadd.f32 %v2260, 1.4214138
    %v2265 = vmul.f32 %v2261, %v2242
    %v2266 = vmul.f32 %v2262, %v2244
    %v2267 = vmul.f32 %v2263, %v2246
    %v2268 = vmul.f32 %v2264, %v2248
    %v2269 = vadd.f32 %v2265, -0.28449672
    %v2270 = vadd.f32 %v2266, -0.28449672
    %v2271 = vadd.f32 %v2267, -0.28449672
    %v2272 = vadd.f32 %v2268, -0.28449672
    %v2273 = vmul.f32 %v2269, %v2242
    %v2274 = vmul.f32 %v2270, %v2244
    %v2275 = vmul.f32 %v2271, %v2246
    %v2276 = vmul.f32 %v2272, %v2248
    %v2277 = vadd.f32 %v2273, 0.2548296
    %v2278 = vadd.f32 %v2274, 0.2548296
    %v2279 = vadd.f32 %v2275, 0.2548296
    %v2280 = vadd.f32 %v2276, 0.2548296
    %v2281 = vmul.f32 %v2277, %v2242
    %v2282 = vmul.f32 %v2278, %v2244
    %v2283 = vmul.f32 %v2279, %v2246
    %v2284 = vmul.f32 %v2280, %v2248
    %v2285 = vsub.f32 0.0, %v2229
    %v2286 = vsub.f32 0.0, %v2230
    %v2287 = vsub.f32 0.0, %v2231
    %v2288 = vsub.f32 0.0, %v2232
    %v2289 = vmul.f32 %v2285, %v2229
    %v2290 = vmul.f32 %v2286, %v2230
    %v2291 = vmul.f32 %v2287, %v2231
    %v2292 = vmul.f32 %v2288, %v2232
    %v2293 = vmul.f32 %v2289, 1.442695
    %v2294 = vpow.pop %v2293
    %v2295 = vmul.f32 %v2290, 1.442695
    %v2296 = vpow.pop %v2295
    %v2297 = vmul.f32 %v2291, 1.442695
    %v2298 = vpow.pop %v2297
    %v2299 = vmul.f32 %v2292, 1.442695
    %v2300 = vpow.pop %v2299
    %v2301 = vmul.f32 %v2281, %v2294
    %v2302 = vmul.f32 %v2282, %v2296
    %v2303 = vmul.f32 %v2283, %v2298
    %v2304 = vmul.f32 %v2284, %v2300
    %v2305 = vsub.f32 1.0, %v2301
    %v2306 = vsub.f32 1.0, %v2302
    %v2307 = vsub.f32 1.0, %v2303
    %v2308 = vsub.f32 1.0, %v2304
    %vm2309 = vcmp.ge.f32.partialorder %v2225, 0.0
    %vm2310 = vcmp.ge.f32.partialorder %v2226, 0.0
    %vm2311 = vcmp.ge.f32.partialorder %v2227, 0.0
    %vm2312 = vcmp.ge.f32.partialorder %v2228, 0.0
    %v2313 = vsub.f32 0.0, %v2305
    %v2314 = vsub.f32 0.0, %v2306
    %v2315 = vsub.f32 0.0, %v2307
    %v2316 = vsub.f32 0.0, %v2308
    %v2317 = vsel %vm2309, %v2305, %v2313
    %v2318 = vsel %vm2310, %v2306, %v2314
    %v2319 = vsel %vm2311, %v2307, %v2315
    %v2320 = vsel %vm2312, %v2308, %v2316
    %v2321 = vadd.f32 %v2317, 1.0
    %v2322 = vadd.f32 %v2318, 1.0
    %v2323 = vadd.f32 %v2319, 1.0
    %v2324 = vadd.f32 %v2320, 1.0
    %v2325 = vmul.f32 %v2221, %v2321
    %v2326 = vmul.f32 %v2222, %v2322
    %v2327 = vmul.f32 %v2223, %v2323
    %v2328 = vmul.f32 %v2224, %v2324
    %v2330 = vsel %vm1192, %v2325, 0
    %v2333 = vsel %vm1192, %v2326, 0
    %v2336 = vsel %vm1192, %v2327, 0
    %v2339 = vsel %vm1192, %v2328, 0
    %2341 = vmatprep.subr.mxu0 0.0
    %2342 = vmatpush1.msra.mxu0 %v1340
    %2343 = vmatprep.subr.mxu0 0.0
    %2344 = vmatpush1.msra.mxu0 %v1341
    %2345 = vmatprep.subr.mxu0 0.0
    %2346 = vmatpush1.msra.mxu0 %v1342
    %2347 = vmatprep.subr.mxu0 0.0
    %2348 = vmatpush1.msra.mxu0 %v1343
    %2349 = vmatprep.subr.mxu0 0.0
    %2350 = vmatpush1.msra.mxu0 %v1344
    %2351 = vmatprep.subr.mxu0 0.0
    %2352 = vmatpush1.msra.mxu0 %v1345
    %2353 = vmatprep.subr.mxu0 0.0
    %2354 = vmatpush1.msra.mxu0 %v1346
    %2355 = vmatprep.subr.mxu0 0.0
    %2356 = vmatpush1.msra.mxu0 %v1347
    %2357 = vmatprep.subr.mxu0 0.0
    %2358 = vmatpush1.msra.mxu0 0.0
    %2359 = vmatprep.subr.mxu0 0.0
    %2360 = vmatpush1.msra.mxu0 0.0
    %2361 = vmatprep.subr.mxu0 0.0
    %2362 = vmatpush1.msra.mxu0 0.0
    %2363 = vmatprep.subr.mxu0 0.0
    %2364 = vmatpush1.msra.mxu0 0.0
    %2365 = vmatprep.subr.mxu0 0.0
    %2366 = vmatpush1.msra.mxu0 0.0
    %2367 = vmatprep.subr.mxu0 0.0
    %2368 = vmatpush1.msra.mxu0 0.0
    %2369 = vmatprep.subr.mxu0 0.0
    %2370 = vmatpush1.msra.mxu0 0.0
    %2371 = vmatprep.subr.mxu0 0.0
    %2372 = vmatpush1.msra.mxu0 0.0
    %2373 = vmatprep.subr.mxu0 0.0
    %2374 = vmatpush1.msra.mxu0 0.0
    %2375 = vmatprep.subr.mxu0 0.0
    %2376 = vmatpush1.msra.mxu0 0.0
    %2377 = vmatprep.subr.mxu0 0.0
    %2378 = vmatpush1.msra.mxu0 0.0
    %2379 = vmatprep.subr.mxu0 0.0
    %2380 = vmatpush1.msra.mxu0 0.0
    %2381 = vmatprep.subr.mxu0 0.0
    %2382 = vmatpush1.msra.mxu0 0.0
    %2383 = vmatprep.subr.mxu0 0.0
    %2384 = vmatpush1.msra.mxu0 0.0
    %2385 = vmatprep.subr.mxu0 0.0
    %2386 = vmatpush1.msra.mxu0 0.0
    %2387 = vmatprep.subr.mxu0 0.0
    %2388 = vmatpush1.msra.mxu0 0.0
    %2389 = vmatprep.subr.mxu0 0.0
    %2390 = vmatpush1.msra.mxu0 0.0
    %2391 = vmatprep.subr.mxu0 0.0
    %2392 = vmatpush1.msra.mxu0 0.0
    %2393 = vmatprep.subr.mxu0 0.0
    %2394 = vmatpush1.msra.mxu0 0.0
    %2395 = vmatprep.subr.mxu0 0.0
    %2396 = vmatpush1.msra.mxu0 0.0
    %2397 = vmatprep.subr.mxu0 0.0
    %2398 = vmatpush1.msra.mxu0 0.0
    %2399 = vmatprep.subr.mxu0 0.0
    %2400 = vmatpush1.msra.mxu0 0.0
    %2401 = vmatprep.subr.mxu0 0.0
    %2402 = vmatpush1.msra.mxu0 0.0
    %2403 = vmatprep.subr.mxu0 0.0
    %2404 = vmatpush1.msra.mxu0 0.0
    %2405 = vmatprep.mubr.f32.mxu0 0.0
    %2406 = vmatmul.mubr.f32.gmra.mrb[0].mxu0 %v2330
    %v2407 = vpop.f32.mrb[0].mxu0
    %v2408 = vadd.f32 0.0, %v2407
    %v2409 = vpop.f32.mrb[0].mxu0
    %2410 = vmatprep.mubr.f32.mxu0 0.0
    %2411 = vmatmul.mubr.f32.gmra.mrb[0].mxu0 %v2333
    %v2412 = vpop.f32.mrb[0].mxu0
    %v2413 = vadd.f32 0.0, %v2412
    %v2414 = vpop.f32.mrb[0].mxu0
    %2415 = vmatprep.mubr.f32.mxu0 0.0
    %2416 = vmatmul.mubr.f32.gmra.mrb[0].mxu0 %v2336
    %v2417 = vpop.f32.mrb[0].mxu0
    %v2418 = vadd.f32 0.0, %v2417
    %v2419 = vpop.f32.mrb[0].mxu0
    %2420 = vmatprep.mubr.f32.mxu0 0.0
    %2421 = vmatmul.mubr.f32.gmra.mrb[0].mxu0 %v2339
    %v2422 = vpop.f32.mrb[0].mxu0
    %v2423 = vadd.f32 0.0, %v2422
    %v2424 = vpop.f32.mrb[0].mxu0
    %2425 = vdwg.mxu0
    %v2426 = vadd.f32 %v1712, %v2408
    %v2427 = vadd.f32 %v1713, %v2413
    %v2428 = vadd.f32 %v2072, %v2418
    %v2429 = vadd.f32 %v2073, %v2423
    %v2431 = vlaneseq
    %v2432 = vshrl.u32 %v2431, 7
    %v2433 = vsub.s32 0, %v2432
    %v2434 = vrot.slane %v1349, %v2433
    %v2436 = vadd.f32 %v2426, %v2434
    %v2437 = vadd.f32 %v2427, %v2434
    %v2438 = vadd.f32 %v2428, %v2434
    %v2439 = vadd.f32 %v2429, %v2434
    %v2440 = vld [vmem:[%s15] sm:$0x3]
    %v2442 = vsel %vm209, %v2440, 0
    %2444 = vmatprep.subr.mxu0 0.0
    %2445 = vmatpush1.msra.mxu0 %v2436
    %2446 = vmatprep.subr.mxu0 0.0
    %2447 = vmatpush1.msra.mxu0 %v2437
    %2448 = vmatprep.subr.mxu0 0.0
    %2449 = vmatpush1.msra.mxu0 %v2438
    %2450 = vmatprep.subr.mxu0 0.0
    %2451 = vmatpush1.msra.mxu0 %v2439
    %2452 = vmatprep.subr.mxu0 0.0
    %2453 = vmatpush1.msra.mxu0 0.0
    %2454 = vmatprep.subr.mxu0 0.0
    %2455 = vmatpush1.msra.mxu0 0.0
    %2456 = vmatprep.subr.mxu0 0.0
    %2457 = vmatpush1.msra.mxu0 0.0
    %2458 = vmatprep.subr.mxu0 0.0
    %2459 = vmatpush1.msra.mxu0 0.0
    %2460 = vmatprep.subr.mxu0 0.0
    %2461 = vmatpush1.msra.mxu0 0.0
    %2462 = vmatprep.subr.mxu0 0.0
    %2463 = vmatpush1.msra.mxu0 0.0
    %2464 = vmatprep.subr.mxu0 0.0
    %2465 = vmatpush1.msra.mxu0 0.0
    %2466 = vmatprep.subr.mxu0 0.0
    %2467 = vmatpush1.msra.mxu0 0.0
    %2468 = vmatprep.subr.mxu0 0.0
    %2469 = vmatpush1.msra.mxu0 0.0
    %2470 = vmatprep.subr.mxu0 0.0
    %2471 = vmatpush1.msra.mxu0 0.0
    %2472 = vmatprep.subr.mxu0 0.0
    %2473 = vmatpush1.msra.mxu0 0.0
    %2474 = vmatprep.subr.mxu0 0.0
    %2475 = vmatpush1.msra.mxu0 0.0
    %2476 = vmatprep.subr.mxu0 0.0
    %2477 = vmatpush1.msra.mxu0 0.0
    %2478 = vmatprep.subr.mxu0 0.0
    %2479 = vmatpush1.msra.mxu0 0.0
    %2480 = vmatprep.subr.mxu0 0.0
    %2481 = vmatpush1.msra.mxu0 0.0
    %2482 = vmatprep.subr.mxu0 0.0
    %2483 = vmatpush1.msra.mxu0 0.0
    %2484 = vmatprep.subr.mxu0 0.0
    %2485 = vmatpush1.msra.mxu0 0.0
    %2486 = vmatprep.subr.mxu0 0.0
    %2487 = vmatpush1.msra.mxu0 0.0
    %2488 = vmatprep.subr.mxu0 0.0
    %2489 = vmatpush1.msra.mxu0 0.0
    %2490 = vmatprep.subr.mxu0 0.0
    %2491 = vmatpush1.msra.mxu0 0.0
    %2492 = vmatprep.subr.mxu0 0.0
    %2493 = vmatpush1.msra.mxu0 0.0
    %2494 = vmatprep.subr.mxu0 0.0
    %2495 = vmatpush1.msra.mxu0 0.0
    %2496 = vmatprep.subr.mxu0 0.0
    %2497 = vmatpush1.msra.mxu0 0.0
    %2498 = vmatprep.subr.mxu0 0.0
    %2499 = vmatpush1.msra.mxu0 0.0
    %2500 = vmatprep.subr.mxu0 0.0
    %2501 = vmatpush1.msra.mxu0 0.0
    %2502 = vmatprep.subr.mxu0 0.0
    %2503 = vmatpush1.msra.mxu0 0.0
    %2504 = vmatprep.subr.mxu0 0.0
    %2505 = vmatpush1.msra.mxu0 0.0
    %2506 = vmatprep.subr.mxu0 0.0
    %2507 = vmatpush1.msra.mxu0 0.0
    %2508 = vmatprep.mubr.f32.mxu0 0.0
    %2509 = vmatmul.mubr.f32.gmra.mrb[0].mxu0 %v2442
    %v2510 = vpop.f32.mrb[0].mxu0
    %v2511 = vadd.f32 0.0, %v2510
    %v2512 = vpop.f32.mrb[0].mxu0
    %2513 = vdwg.mxu0
    %v2514 = vld [vmem:[%s16] sm:$0xff]
    %v2515 = vld [vmem:[%s16 + $0x8] sm:$0xff]
    %v2516 = vld [vmem:[%s16 + $0x10] sm:$0xff]
    %v2517 = vld [vmem:[%s16 + $0x18] sm:$0xff]
    %v2518 = vld [vmem:[%s17] sm:$0x1]
    %v2520 = vlaneseq
    %v2521 = vshrl.u32 %v2520, 7
    %v2522 = vsub.s32 0, %v2521
    %v2523 = vrot.slane %v2518, %v2522
    %v2526 = vsel %vm209, %v2511, 0
    %2528 = vmatprep.subr.mxu0 0.0
    %2529 = vmatpush1.msra.mxu0 %v2514
    %2530 = vmatprep.subr.mxu0 0.0
    %2531 = vmatpush1.msra.mxu0 %v2515
    %2532 = vmatprep.subr.mxu0 0.0
    %2533 = vmatpush1.msra.mxu0 %v2516
    %2534 = vmatprep.subr.mxu0 0.0
    %2535 = vmatpush1.msra.mxu0 %v2517
    %2536 = vmatprep.subr.mxu0 0.0
    %2537 = vmatpush1.msra.mxu0 0.0
    %2538 = vmatprep.subr.mxu0 0.0
    %2539 = vmatpush1.msra.mxu0 0.0
    %2540 = vmatprep.subr.mxu0 0.0
    %2541 = vmatpush1.msra.mxu0 0.0
    %2542 = vmatprep.subr.mxu0 0.0
    %2543 = vmatpush1.msra.mxu0 0.0
    %2544 = vmatprep.subr.mxu0 0.0
    %2545 = vmatpush1.msra.mxu0 0.0
    %2546 = vmatprep.subr.mxu0 0.0
    %2547 = vmatpush1.msra.mxu0 0.0
    %2548 = vmatprep.subr.mxu0 0.0
    %2549 = vmatpush1.msra.mxu0 0.0
    %2550 = vmatprep.subr.mxu0 0.0
    %2551 = vmatpush1.msra.mxu0 0.0
    %2552 = vmatprep.subr.mxu0 0.0
    %2553 = vmatpush1.msra.mxu0 0.0
    %2554 = vmatprep.subr.mxu0 0.0
    %2555 = vmatpush1.msra.mxu0 0.0
    %2556 = vmatprep.subr.mxu0 0.0
    %2557 = vmatpush1.msra.mxu0 0.0
    %2558 = vmatprep.subr.mxu0 0.0
    %2559 = vmatpush1.msra.mxu0 0.0
    %2560 = vmatprep.subr.mxu0 0.0
    %2561 = vmatpush1.msra.mxu0 0.0
    %2562 = vmatprep.subr.mxu0 0.0
    %2563 = vmatpush1.msra.mxu0 0.0
    %2564 = vmatprep.subr.mxu0 0.0
    %2565 = vmatpush1.msra.mxu0 0.0
    %2566 = vmatprep.subr.mxu0 0.0
    %2567 = vmatpush1.msra.mxu0 0.0
    %2568 = vmatprep.subr.mxu0 0.0
    %2569 = vmatpush1.msra.mxu0 0.0
    %2570 = vmatprep.subr.mxu0 0.0
    %2571 = vmatpush1.msra.mxu0 0.0
    %2572 = vmatprep.subr.mxu0 0.0
    %2573 = vmatpush1.msra.mxu0 0.0
    %2574 = vmatprep.subr.mxu0 0.0
    %2575 = vmatpush1.msra.mxu0 0.0
    %2576 = vmatprep.subr.mxu0 0.0
    %2577 = vmatpush1.msra.mxu0 0.0
    %2578 = vmatprep.subr.mxu0 0.0
    %2579 = vmatpush1.msra.mxu0 0.0
    %2580 = vmatprep.subr.mxu0 0.0
    %2581 = vmatpush1.msra.mxu0 0.0
    %2582 = vmatprep.subr.mxu0 0.0
    %2583 = vmatpush1.msra.mxu0 0.0
    %2584 = vmatprep.subr.mxu0 0.0
    %2585 = vmatpush1.msra.mxu0 0.0
    %2586 = vmatprep.subr.mxu0 0.0
    %2587 = vmatpush1.msra.mxu0 0.0
    %2588 = vmatprep.subr.mxu0 0.0
    %2589 = vmatpush1.msra.mxu0 0.0
    %2590 = vmatprep.subr.mxu0 0.0
    %2591 = vmatpush1.msra.mxu0 0.0
    %2592 = vmatprep.mubr.f32.mxu0 0.0
    %2593 = vmatmul.mubr.f32.gmra.mrb[0].mxu0 %v2526
    %v2594 = vpop.f32.mrb[0].mxu0
    %v2595 = vadd.f32 %v2523, %v2594
    %v2596 = vpop.f32.mrb[0].mxu0
    %2597 = vdwg.mxu0
    %vm2598 = vcmask 74752
    %2599 = vst.msk [vmem:[#allocation2] sm:$0x3] %vm2598, %v2595
    // Predicated region
    $region74: #{_forward_impl.1} parent=1 // pred_check
      _
    $region75: #{_forward_impl.1} parent=1 // pred_check_branch
      %2601 = sbr.rel (0) target = $region77
    $region76: #{_forward_impl.1} parent=1 // pred_region
      %s2603 = ssub.s32 32, 32
      %2604 = vsyncadd [#allocation3], %s2603
      %s2606 = sshll.u32 [#allocation2], 4
      %s2607 = int_to_ptr.vmem [resolvable:$true] %s2606
      %2609 = dma.vmem_to_hbm [thread:$0]  %s2607, 32, %s18, [#allocation3]
    $region77: #{_forward_impl.1} parent=1 // pred_fallthru
      _
    // Predicated region
    $region78: #{_forward_impl.1} parent=1 // pred_check
      _
    $region79: #{_forward_impl.1} parent=1 // pred_check_branch
      %2611 = sbr.rel (0) target = $region81
    $region80: #{_forward_impl.1} parent=1 // pred_region
      %2612 = dma.done [#allocation3], 32
    $region81: #{_forward_impl.1} parent=1 // pred_fallthru
      _
    %2613 = vsyncpa [#allocation3], 1

</llo_original>
